<compile_context>
chip_gen: v5e
topology: v5e:2x2
jax: 0.10.0
libtpu: 0.0.40
codegen_flags: <defaults>
</compile_context>

<pallas_src>
import math

import jax
import jax.numpy as jnp
import numpy as np
from jax.experimental import pallas as pl
from jax.experimental.pallas import tpu as pltpu


def _round_up(x, m):
    return (x + m - 1) // m * m


# tap order: t = (dy + 1) * 3 + (dx + 1)   (matches the (ky, kx, cin) weight flattening)
_TAPS = [(dy, dx) for dy in (-1, 0, 1) for dx in (-1, 0, 1)]


def _make_tap_masks(H, W, G, cmax):
    """(9*cmax, G*H*W) f32 masks, pre-broadcast over sublanes and tiled over folded images.

    mask[t*cmax + c, p] == 1 iff tap (dy,dx)=t at flat position p reads an in-bounds pixel
    of ITS OWN image (zero-padding + folded-batch boundaries handled in one mask)."""
    yy, xx = np.meshgrid(np.arange(H), np.arange(W), indexing="ij")
    yy = yy.reshape(-1)
    xx = xx.reshape(-1)
    rows = []
    for dy, dx in _TAPS:
        valid = (yy + dy >= 0) & (yy + dy < H) & (xx + dx >= 0) & (xx + dx < W)
        rows.append(valid.astype(np.float32))
    m = np.stack(rows, axis=0)            # (9, HW)
    m = np.tile(m, (1, G))                # (9, G*HW)   same mask for every folded image
    m = np.repeat(m, cmax, axis=0)        # (9*cmax, G*HW)  sublane pre-broadcast
    return jnp.asarray(m)


# ----------------------------------------------------------------------------
# Fused whole-model Pallas kernel (one grid step = G batch elements)
# ----------------------------------------------------------------------------
def _build_fused_kernel(meta, final_meta, W, lanes, cmax):
    n_w = 2 * len(meta)

    def kernel(x_ref, masks_ref, col_ref, *rest):
        w_refs = rest[:n_w]
        o_ref = rest[n_w]
        cols = rest[n_w + 1]              # VMEM scratch (9*cmax, lanes)

        def im2col(act, cin):
            # 9 rolled+masked taps written straight into VMEM scratch at static sublane
            # offsets (no concatenate -> bounded live vregs; MXU streams operand from VMEM).
            for t, (dy, dx) in enumerate(_TAPS):
                off = dy * W + dx
                if off == 0:
                    tap = act
                else:
                    tap = pltpu.roll(act, shift=(-off) % lanes, axis=1)
                    tap = tap * masks_ref[t * cmax:t * cmax + cin, :]
                cols[t * cin:(t + 1) * cin, :] = tap
            return cols[0:9 * cin, :]

        act = x_ref[...]                   # (Cin_pad, lanes), channels on sublanes
        for bi, m in enumerate(meta):
            cin, cout, rows1 = m["cin"], m["cout"], m["rows1"]
            w1 = w_refs[2 * bi][...]       # (rows1, 9*cin)  BN scale folded in
            w2 = w_refs[2 * bi + 1][...]   # (cout, 9*cout)
            # conv1 (+ fused 1x1 projection shortcut rows): ONE MXU matmul
            y1 = jnp.dot(w1, im2col(act, cin), preferred_element_type=jnp.float32)
            y1 = y1 + col_ref[m["off1"]:m["off1"] + rows1, :]
            if m["has_shortcut"]:
                h = jnp.maximum(y1[:cout], 0.0)
                res = y1[cout:]            # static sublane slice of the same dot result
            else:
                h = jnp.maximum(y1, 0.0)
                res = act
            # conv2: ONE MXU matmul, folded shift + residual + ReLU
            y2 = jnp.dot(w2, im2col(h, cout), preferred_element_type=jnp.float32)
            act = jnp.maximum(y2 + col_ref[m["off2"]:m["off2"] + cout, :] + res, 0.0)

        # Final 1x1 conv, Cout == 1: VPU weighted channel sum, lane-dense store.
        wf = col_ref[final_meta["wf_off"]:final_meta["wf_off"] + final_meta["cin"], :]
        bf = col_ref[final_meta["bf_off"]:final_meta["bf_off"] + 1, :]
        z = jnp.sum(act * wf, axis=0, keepdims=True) + bf        # (1, lanes)
        o_ref[...] = z.astype(o_ref.dtype)

    return kernel


# ----------------------------------------------------------------------------
# Host-side parameter flattening (scales folded into weights, packed shift column)
# ----------------------------------------------------------------------------
def _flatten_conv3x3(w_hwio, cin_pad, scale):
    K, _, cin, cout = w_hwio.shape
    if cin_pad != cin:
        w_hwio = jnp.pad(w_hwio, ((0, 0), (0, 0), (0, cin_pad - cin), (0, 0)))
    # (K, K, Cin_pad, Cout) -> (Cout, K*K*Cin_pad), tap-major (ky, kx, cin)
    w = jnp.transpose(w_hwio, (3, 0, 1, 2)).reshape(cout, K * K * cin_pad)
    return w * scale[:, None]             # fold conv-bias/BN scale into the weight rows


def prepare_kernel_inputs(params, num_heads):
    weights, col_chunks, meta = [], [], []
    col_off = [0]

    def push_col(c):
        off = col_off[0]
        c = jnp.asarray(c, jnp.float32).reshape(-1, 1)
        col_chunks.append(c)
        col_off[0] += c.shape[0]
        return off

    in_c = num_heads
    in_cp = _round_up(num_heads, 8)
    cmax = in_cp
    for blk in params["blocks"]:
        out_c = blk["w1"].shape[-1]
        has_shortcut = "ws" in blk
        if in_cp != in_c:
            assert has_shortcut, "input-channel padding requires a projection shortcut"
        w1 = _flatten_conv3x3(blk["w1"], in_cp, blk["scale1"])
        shift1 = blk["shift1"]
        if has_shortcut:
            # Fuse the (scaled) 1x1 projection into conv1's matmul: its weights live in
            # the center-tap (dy=dx=0, t=4) columns of extra rows appended below W1.
            ws = jnp.transpose(blk["ws"][0, 0]) * blk["scale_s"][:, None]   # (Cout, Cin)
            ws_aug = jnp.zeros((out_c, 9 * in_cp), jnp.float32)
            ws_aug = ws_aug.at[:, 4 * in_cp:4 * in_cp + in_c].set(ws)
            w1 = jnp.concatenate([w1, ws_aug], axis=0)                      # (2*Cout, 9*Cin_pad)
            shift1 = jnp.concatenate([blk["shift1"], blk["shift_s"]])
        w2 = _flatten_conv3x3(blk["w2"], out_c, blk["scale2"])
        weights += [w1.astype(jnp.float32), w2.astype(jnp.float32)]
        meta.append({
            "cin": in_cp, "cout": out_c, "rows1": int(w1.shape[0]),
            "has_shortcut": has_shortcut,
            "off1": push_col(shift1), "off2": push_col(blk["shift2"]),
        })
        cmax = max(cmax, out_c)
        in_c = out_c
        in_cp = out_c

    assert params["final_w"].shape[-1] == 1, "final VPU + symmetrize path assumes output_dim == 1"
    wf_col = params["final_w"][0, 0] * params["final_scale"][None, :]       # (Cin, 1)
    final_meta = {"cin": in_c,
                  "wf_off": push_col(wf_col),
                  "bf_off": push_col(params["final_shift"])}
    col_packed = jnp.concatenate(col_chunks, axis=0)                         # (R, 1)
    return weights, col_packed, meta, final_meta, _round_up(num_heads, 8), cmax


# ----------------------------------------------------------------------------
# Model forward: one fused pallas_call for the whole network
# ----------------------------------------------------------------------------
def model_forward(attentions_asym_nchw, params):
    N, C, H, W = attentions_asym_nchw.shape
    HW = H * W
    weights, col_packed, meta, final_meta, cin_pad, cmax = prepare_kernel_inputs(params, C)

    # Batch folding: keep (at most) 2 "parallel" grid steps so both v7x TensorCores are
    # busy, and fold the remaining batch into the lane axis (wider matmuls, fewer
    # per-step overheads on the single-TC v5e/v6e).
    steps = 2 if (N >= 2 and N % 2 == 0) else 1
    G = N // steps
    lanes = G * HW
    assert lanes % 128 == 0, "flattened spatial axis must be a multiple of 128 lanes"

    masks = _make_tap_masks(H, W, G, cmax)

    # NCHW -> (C_pad, N*HW): channels on sublanes, all images flattened lane-dense.
    x = attentions_asym_nchw.reshape(N, C, HW).astype(jnp.float32)
    x = jnp.transpose(x, (1, 0, 2)).reshape(C, N * HW)
    if cin_pad != C:
        x = jnp.pad(x, ((0, cin_pad - C), (0, 0)))

    kernel = _build_fused_kernel(meta, final_meta, W, lanes, cmax)

    in_specs = [pl.BlockSpec((cin_pad, lanes), lambda i: (0, i)),
                pl.BlockSpec(masks.shape, lambda i: (0, 0)),
                pl.BlockSpec(col_packed.shape, lambda i: (0, 0))]
    in_specs += [pl.BlockSpec(w.shape, lambda i: (0, 0)) for w in weights]

    pre = pl.pallas_call(
        kernel,
        out_shape=jax.ShapeDtypeStruct((1, N * HW), jnp.float32),
        grid=(steps,),
        in_specs=in_specs,
        out_specs=pl.BlockSpec((1, lanes), lambda i: (0, i)),
        scratch_shapes=[pltpu.VMEM((9 * cmax, lanes), jnp.float32)],   # im2col scratch
        compiler_params=pltpu.CompilerParams(
            dimension_semantics=("parallel",)),
    )(x, masks, col_packed, *weights)

    # symmetrize: tiny epilogue on (N,1,H,W); kept in XLA to avoid an in-kernel relayout.
    y = pre.reshape(N, 1, H, W)
    return {"logits": y + jnp.swapaxes(y, -1, -2)}


# ----------------------------------------------------------------------------
# Deterministic parameter initialization (conv + eval-mode BN, folded)
# ----------------------------------------------------------------------------
def _init_conv_bn(key, Cin, Cout, K, with_bn=True):
    ks = jax.random.split(key, 6)
    fan_in = Cin * K * K
    bound = 1.0 / math.sqrt(fan_in)
    w = jax.random.uniform(ks[0], (K, K, Cin, Cout), jnp.float32, -bound, bound)
    b = jax.random.uniform(ks[1], (Cout,), jnp.float32, -bound, bound)
    if not with_bn:
        return w, jnp.ones((Cout,), jnp.float32), b
    eps = 1e-5
    gamma = 1.0 + 0.1 * jax.random.normal(ks[2], (Cout,), jnp.float32)
    beta = 0.1 * jax.random.normal(ks[3], (Cout,), jnp.float32)
    rmean = 0.1 * jax.random.normal(ks[4], (Cout,), jnp.float32)
    rvar = 1.0 + 0.1 * jax.random.uniform(ks[5], (Cout,), jnp.float32)
    scale = gamma / jnp.sqrt(rvar + eps)
    shift = beta + (b - rmean) * scale
    return w, scale, shift


def init_model_params(key, num_heads, output_dim, channels):
    params = {"blocks": []}
    in_c = num_heads
    for out_c in channels:
        key, k1, k2, k3 = jax.random.split(key, 4)
        blk = {}
        blk["w1"], blk["scale1"], blk["shift1"] = _init_conv_bn(k1, in_c, out_c, 3)
        blk["w2"], blk["scale2"], blk["shift2"] = _init_conv_bn(k2, out_c, out_c, 3)
        if in_c != out_c:
            blk["ws"], blk["scale_s"], blk["shift_s"] = _init_conv_bn(k3, in_c, out_c, 1)
        params["blocks"].append(blk)
        in_c = out_c
    key, kf = jax.random.split(key)
    (params["final_w"], params["final_scale"],
     params["final_shift"]) = _init_conv_bn(kf, in_c, output_dim, 1, with_bn=False)
    return params


# ----------------------------------------------------------------------------
# Pure-JAX reference (correctness check for the fused Pallas kernel)
# ----------------------------------------------------------------------------
def _ref_conv(x, w, scale, shift, pad):
    y = jax.lax.conv_general_dilated(
        x, w, (1, 1), [(pad, pad), (pad, pad)],
        dimension_numbers=("NHWC", "HWIO", "NHWC"))
    return y * scale + shift


def ref_forward(attentions_asym_nchw, params):
    x = jnp.transpose(attentions_asym_nchw, (0, 2, 3, 1)).astype(jnp.float32)
    for p in params["blocks"]:
        if "ws" in p:
            residual = _ref_conv(x, p["ws"], p["scale_s"], p["shift_s"], 0)
        else:
            residual = x
        h = jax.nn.relu(_ref_conv(x, p["w1"], p["scale1"], p["shift1"], 1))
        h = _ref_conv(h, p["w2"], p["scale2"], p["shift2"], 1) + residual
        x = jax.nn.relu(h)
    y = _ref_conv(x, params["final_w"], params["final_scale"],
                  params["final_shift"], 0)
    y = y + jnp.swapaxes(y, 1, 2)
    return {"logits": jnp.transpose(y, (0, 3, 1, 2))}


# ----------------------------------------------------------------------------
if __name__ == "__main__":
    # Small, module-consistent shapes: batch=4 (exercises lane batch-folding + the
    # 2-step parallel grid), num_heads=12, spatial=16x16.
    N, NUM_HEADS, H, W = 4, 12, 16, 16
    CHANNELS = [16, 8]
    OUTPUT_DIM = 1

    key = jax.random.PRNGKey(0)
    k_in, k_par = jax.random.split(key)
    attentions_asym = jax.random.normal(k_in, (N, NUM_HEADS, H, W), jnp.float32)
    params = init_model_params(k_par, NUM_HEADS, OUTPUT_DIM, CHANNELS)

    fwd = jax.jit(model_forward)
    out = fwd(attentions_asym, params)
    logits = jax.block_until_ready(out["logits"])
    assert logits.shape == (N, OUTPUT_DIM, H, W), logits.shape

    ref = jax.block_until_ready(ref_forward(attentions_asym, params)["logits"])
    np.testing.assert_allclose(np.asarray(logits), np.asarray(ref),
                               rtol=1e-3, atol=1e-3)

    print("KERNEL_OK")
</pallas_src>

<mosaic_0001>
module attributes {stable_mosaic.version = 11 : i64} {
  func.func @kernel(%arg0: i32, %arg1: memref<16x512xf32, #tpu.memory_space<vmem>>, %arg2: memref<144x512xf32, #tpu.memory_space<vmem>>, %arg3: memref<81x1xf32, #tpu.memory_space<vmem>>, %arg4: memref<32x144xf32, #tpu.memory_space<vmem>>, %arg5: memref<16x144xf32, #tpu.memory_space<vmem>>, %arg6: memref<16x144xf32, #tpu.memory_space<vmem>>, %arg7: memref<8x72xf32, #tpu.memory_space<vmem>>, %arg8: memref<1x512xf32, #tpu.memory_space<vmem>>, %arg9: memref<144x512xf32, #tpu.memory_space<vmem>>) attributes {dimension_semantics = [#tpu.dimension_semantics<parallel>], iteration_bounds = array<i64: 2>, scalar_prefetch = 0 : i64, scratch_operands = 1 : i64, tpu.core_type = #tpu.core_type<tc>, window_params = [{transform_indices = @transform_0, window_bounds = array<i64: 16, 512>}, {pipeline_mode = #tpu.pipeline_mode<synchronous>, transform_indices = @transform_1, window_bounds = array<i64: 144, 512>}, {pipeline_mode = #tpu.pipeline_mode<synchronous>, transform_indices = @transform_2, window_bounds = array<i64: 81, 1>}, {pipeline_mode = #tpu.pipeline_mode<synchronous>, transform_indices = @transform_3, window_bounds = array<i64: 32, 144>}, {pipeline_mode = #tpu.pipeline_mode<synchronous>, transform_indices = @transform_4, window_bounds = array<i64: 16, 144>}, {pipeline_mode = #tpu.pipeline_mode<synchronous>, transform_indices = @transform_5, window_bounds = array<i64: 16, 144>}, {pipeline_mode = #tpu.pipeline_mode<synchronous>, transform_indices = @transform_6, window_bounds = array<i64: 8, 72>}, {transform_indices = @transform_7, window_bounds = array<i64: 1, 512>}]} {
    %c0 = arith.constant 0 : index
    %c0_0 = arith.constant 0 : index
    %0 = vector.load %arg1[%c0, %c0_0] : memref<16x512xf32, #tpu.memory_space<vmem>>, vector<16x512xf32>
    %c0_1 = arith.constant 0 : index
    %c0_2 = arith.constant 0 : index
    %1 = vector.load %arg4[%c0_1, %c0_2] : memref<32x144xf32, #tpu.memory_space<vmem>>, vector<32x144xf32>
    %c0_3 = arith.constant 0 : index
    %c0_4 = arith.constant 0 : index
    %2 = vector.load %arg5[%c0_3, %c0_4] : memref<16x144xf32, #tpu.memory_space<vmem>>, vector<16x144xf32>
    %c17_i32 = arith.constant 17 : i32
    %3 = tpu.dynamic_rotate %0 by %c17_i32 dim 1 : vector<16x512xf32>, i32 -> vector<16x512xf32>
    %c0_5 = arith.constant 0 : index
    %c0_6 = arith.constant 0 : index
    %4 = vector.load %arg2[%c0_5, %c0_6] : memref<144x512xf32, #tpu.memory_space<vmem>>, vector<16x512xf32>
    %5 = arith.mulf %3, %4 : vector<16x512xf32>
    %c0_7 = arith.constant 0 : index
    %c0_8 = arith.constant 0 : index
    %6 = vector.load %arg9[%c0_7, %c0_8] : memref<144x512xf32, #tpu.memory_space<vmem>>, vector<16x512xf32>
    tpu.vector_store %arg9[%c0_7, %c0_8], %5 {strides = array<i32>} : memref<144x512xf32, #tpu.memory_space<vmem>>, vector<16x512xf32>,
    %c16_i32 = arith.constant 16 : i32
    %7 = tpu.dynamic_rotate %0 by %c16_i32 dim 1 : vector<16x512xf32>, i32 -> vector<16x512xf32>
    %c16 = arith.constant 16 : index
    %c0_9 = arith.constant 0 : index
    %8 = vector.load %arg2[%c16, %c0_9] : memref<144x512xf32, #tpu.memory_space<vmem>>, vector<16x512xf32>
    %9 = arith.mulf %7, %8 : vector<16x512xf32>
    %c16_10 = arith.constant 16 : index
    %c0_11 = arith.constant 0 : index
    %10 = vector.load %arg9[%c16_10, %c0_11] : memref<144x512xf32, #tpu.memory_space<vmem>>, vector<16x512xf32>
    tpu.vector_store %arg9[%c16_10, %c0_11], %9 {strides = array<i32>} : memref<144x512xf32, #tpu.memory_space<vmem>>, vector<16x512xf32>,
    %c15_i32 = arith.constant 15 : i32
    %11 = tpu.dynamic_rotate %0 by %c15_i32 dim 1 : vector<16x512xf32>, i32 -> vector<16x512xf32>
    %c32 = arith.constant 32 : index
    %c0_12 = arith.constant 0 : index
    %12 = vector.load %arg2[%c32, %c0_12] : memref<144x512xf32, #tpu.memory_space<vmem>>, vector<16x512xf32>
    %13 = arith.mulf %11, %12 : vector<16x512xf32>
    %c32_13 = arith.constant 32 : index
    %c0_14 = arith.constant 0 : index
    %14 = vector.load %arg9[%c32_13, %c0_14] : memref<144x512xf32, #tpu.memory_space<vmem>>, vector<16x512xf32>
    tpu.vector_store %arg9[%c32_13, %c0_14], %13 {strides = array<i32>} : memref<144x512xf32, #tpu.memory_space<vmem>>, vector<16x512xf32>,
    %c1_i32 = arith.constant 1 : i32
    %15 = tpu.dynamic_rotate %0 by %c1_i32 dim 1 : vector<16x512xf32>, i32 -> vector<16x512xf32>
    %c48 = arith.constant 48 : index
    %c0_15 = arith.constant 0 : index
    %16 = vector.load %arg2[%c48, %c0_15] : memref<144x512xf32, #tpu.memory_space<vmem>>, vector<16x512xf32>
    %17 = arith.mulf %15, %16 : vector<16x512xf32>
    %c48_16 = arith.constant 48 : index
    %c0_17 = arith.constant 0 : index
    %18 = vector.load %arg9[%c48_16, %c0_17] : memref<144x512xf32, #tpu.memory_space<vmem>>, vector<16x512xf32>
    tpu.vector_store %arg9[%c48_16, %c0_17], %17 {strides = array<i32>} : memref<144x512xf32, #tpu.memory_space<vmem>>, vector<16x512xf32>,
    %c64 = arith.constant 64 : index
    %c0_18 = arith.constant 0 : index
    %19 = vector.load %arg9[%c64, %c0_18] : memref<144x512xf32, #tpu.memory_space<vmem>>, vector<16x512xf32>
    tpu.vector_store %arg9[%c64, %c0_18], %0 {strides = array<i32>} : memref<144x512xf32, #tpu.memory_space<vmem>>, vector<16x512xf32>,
    %c511_i32 = arith.constant 511 : i32
    %20 = tpu.dynamic_rotate %0 by %c511_i32 dim 1 : vector<16x512xf32>, i32 -> vector<16x512xf32>
    %c80 = arith.constant 80 : index
    %c0_19 = arith.constant 0 : index
    %21 = vector.load %arg2[%c80, %c0_19] : memref<144x512xf32, #tpu.memory_space<vmem>>, vector<16x512xf32>
    %22 = arith.mulf %20, %21 : vector<16x512xf32>
    %c80_20 = arith.constant 80 : index
    %c0_21 = arith.constant 0 : index
    %23 = vector.load %arg9[%c80_20, %c0_21] : memref<144x512xf32, #tpu.memory_space<vmem>>, vector<16x512xf32>
    tpu.vector_store %arg9[%c80_20, %c0_21], %22 {strides = array<i32>} : memref<144x512xf32, #tpu.memory_space<vmem>>, vector<16x512xf32>,
    %c497_i32 = arith.constant 497 : i32
    %24 = tpu.dynamic_rotate %0 by %c497_i32 dim 1 : vector<16x512xf32>, i32 -> vector<16x512xf32>
    %c96 = arith.constant 96 : index
    %c0_22 = arith.constant 0 : index
    %25 = vector.load %arg2[%c96, %c0_22] : memref<144x512xf32, #tpu.memory_space<vmem>>, vector<16x512xf32>
    %26 = arith.mulf %24, %25 : vector<16x512xf32>
    %c96_23 = arith.constant 96 : index
    %c0_24 = arith.constant 0 : index
    %27 = vector.load %arg9[%c96_23, %c0_24] : memref<144x512xf32, #tpu.memory_space<vmem>>, vector<16x512xf32>
    tpu.vector_store %arg9[%c96_23, %c0_24], %26 {strides = array<i32>} : memref<144x512xf32, #tpu.memory_space<vmem>>, vector<16x512xf32>,
    %c496_i32 = arith.constant 496 : i32
    %28 = tpu.dynamic_rotate %0 by %c496_i32 dim 1 : vector<16x512xf32>, i32 -> vector<16x512xf32>
    %c112 = arith.constant 112 : index
    %c0_25 = arith.constant 0 : index
    %29 = vector.load %arg2[%c112, %c0_25] : memref<144x512xf32, #tpu.memory_space<vmem>>, vector<16x512xf32>
    %30 = arith.mulf %28, %29 : vector<16x512xf32>
    %c112_26 = arith.constant 112 : index
    %c0_27 = arith.constant 0 : index
    %31 = vector.load %arg9[%c112_26, %c0_27] : memref<144x512xf32, #tpu.memory_space<vmem>>, vector<16x512xf32>
    tpu.vector_store %arg9[%c112_26, %c0_27], %30 {strides = array<i32>} : memref<144x512xf32, #tpu.memory_space<vmem>>, vector<16x512xf32>,
    %c495_i32 = arith.constant 495 : i32
    %32 = tpu.dynamic_rotate %0 by %c495_i32 dim 1 : vector<16x512xf32>, i32 -> vector<16x512xf32>
    %c128 = arith.constant 128 : index
    %c0_28 = arith.constant 0 : index
    %33 = vector.load %arg2[%c128, %c0_28] : memref<144x512xf32, #tpu.memory_space<vmem>>, vector<16x512xf32>
    %34 = arith.mulf %32, %33 : vector<16x512xf32>
    %c128_29 = arith.constant 128 : index
    %c0_30 = arith.constant 0 : index
    %35 = vector.load %arg9[%c128_29, %c0_30] : memref<144x512xf32, #tpu.memory_space<vmem>>, vector<16x512xf32>
    tpu.vector_store %arg9[%c128_29, %c0_30], %34 {strides = array<i32>} : memref<144x512xf32, #tpu.memory_space<vmem>>, vector<16x512xf32>,
    %c0_31 = arith.constant 0 : index
    %c0_32 = arith.constant 0 : index
    %36 = vector.load %arg9[%c0_31, %c0_32] : memref<144x512xf32, #tpu.memory_space<vmem>>, vector<144x512xf32>
    %cst = arith.constant dense<0.000000e+00> : vector<32x512xf32>
    %37 = tpu.matmul %1, %36, %cst {dimension_numbers = #tpu.dot_dimension_numbers<[1], [0], [0], [1], [0, 0, 1, 1], [], []>} : vector<32x144xf32>, vector<144x512xf32>, vector<32x512xf32> -> vector<32x512xf32>
    %c0_33 = arith.constant 0 : index
    %c0_34 = arith.constant 0 : index
    %38 = vector.load %arg3[%c0_33, %c0_34] : memref<81x1xf32, #tpu.memory_space<vmem>>, vector<32x1xf32>
    %39 = vector.broadcast %38 : vector<32x1xf32> to vector<32x512xf32>
    %40 = arith.addf %37, %39 : vector<32x512xf32>
    %41 = vector.extract_strided_slice %40 {offsets = [0, 0], sizes = [16, 512], strides = [1, 1]} : vector<32x512xf32> to vector<16x512xf32>
    %cst_35 = arith.constant 0.000000e+00 : f32
    %42 = vector.broadcast %cst_35 : f32 to vector<16x512xf32>
    %43 = arith.maximumf %41, %42 : vector<16x512xf32>
    %44 = vector.extract_strided_slice %40 {offsets = [16, 0], sizes = [16, 512], strides = [1, 1]} : vector<32x512xf32> to vector<16x512xf32>
    %c17_i32_36 = arith.constant 17 : i32
    %45 = tpu.dynamic_rotate %43 by %c17_i32_36 dim 1 : vector<16x512xf32>, i32 -> vector<16x512xf32>
    %c0_37 = arith.constant 0 : index
    %c0_38 = arith.constant 0 : index
    %46 = vector.load %arg2[%c0_37, %c0_38] : memref<144x512xf32, #tpu.memory_space<vmem>>, vector<16x512xf32>
    %47 = arith.mulf %45, %46 : vector<16x512xf32>
    %c0_39 = arith.constant 0 : index
    %c0_40 = arith.constant 0 : index
    %48 = vector.load %arg9[%c0_39, %c0_40] : memref<144x512xf32, #tpu.memory_space<vmem>>, vector<16x512xf32>
    tpu.vector_store %arg9[%c0_39, %c0_40], %47 {strides = array<i32>} : memref<144x512xf32, #tpu.memory_space<vmem>>, vector<16x512xf32>,
    %c16_i32_41 = arith.constant 16 : i32
    %49 = tpu.dynamic_rotate %43 by %c16_i32_41 dim 1 : vector<16x512xf32>, i32 -> vector<16x512xf32>
    %c16_42 = arith.constant 16 : index
    %c0_43 = arith.constant 0 : index
    %50 = vector.load %arg2[%c16_42, %c0_43] : memref<144x512xf32, #tpu.memory_space<vmem>>, vector<16x512xf32>
    %51 = arith.mulf %49, %50 : vector<16x512xf32>
    %c16_44 = arith.constant 16 : index
    %c0_45 = arith.constant 0 : index
    %52 = vector.load %arg9[%c16_44, %c0_45] : memref<144x512xf32, #tpu.memory_space<vmem>>, vector<16x512xf32>
    tpu.vector_store %arg9[%c16_44, %c0_45], %51 {strides = array<i32>} : memref<144x512xf32, #tpu.memory_space<vmem>>, vector<16x512xf32>,
    %c15_i32_46 = arith.constant 15 : i32
    %53 = tpu.dynamic_rotate %43 by %c15_i32_46 dim 1 : vector<16x512xf32>, i32 -> vector<16x512xf32>
    %c32_47 = arith.constant 32 : index
    %c0_48 = arith.constant 0 : index
    %54 = vector.load %arg2[%c32_47, %c0_48] : memref<144x512xf32, #tpu.memory_space<vmem>>, vector<16x512xf32>
    %55 = arith.mulf %53, %54 : vector<16x512xf32>
    %c32_49 = arith.constant 32 : index
    %c0_50 = arith.constant 0 : index
    %56 = vector.load %arg9[%c32_49, %c0_50] : memref<144x512xf32, #tpu.memory_space<vmem>>, vector<16x512xf32>
    tpu.vector_store %arg9[%c32_49, %c0_50], %55 {strides = array<i32>} : memref<144x512xf32, #tpu.memory_space<vmem>>, vector<16x512xf32>,
    %c1_i32_51 = arith.constant 1 : i32
    %57 = tpu.dynamic_rotate %43 by %c1_i32_51 dim 1 : vector<16x512xf32>, i32 -> vector<16x512xf32>
    %c48_52 = arith.constant 48 : index
    %c0_53 = arith.constant 0 : index
    %58 = vector.load %arg2[%c48_52, %c0_53] : memref<144x512xf32, #tpu.memory_space<vmem>>, vector<16x512xf32>
    %59 = arith.mulf %57, %58 : vector<16x512xf32>
    %c48_54 = arith.constant 48 : index
    %c0_55 = arith.constant 0 : index
    %60 = vector.load %arg9[%c48_54, %c0_55] : memref<144x512xf32, #tpu.memory_space<vmem>>, vector<16x512xf32>
    tpu.vector_store %arg9[%c48_54, %c0_55], %59 {strides = array<i32>} : memref<144x512xf32, #tpu.memory_space<vmem>>, vector<16x512xf32>,
    %c64_56 = arith.constant 64 : index
    %c0_57 = arith.constant 0 : index
    %61 = vector.load %arg9[%c64_56, %c0_57] : memref<144x512xf32, #tpu.memory_space<vmem>>, vector<16x512xf32>
    tpu.vector_store %arg9[%c64_56, %c0_57], %43 {strides = array<i32>} : memref<144x512xf32, #tpu.memory_space<vmem>>, vector<16x512xf32>,
    %c511_i32_58 = arith.constant 511 : i32
    %62 = tpu.dynamic_rotate %43 by %c511_i32_58 dim 1 : vector<16x512xf32>, i32 -> vector<16x512xf32>
    %c80_59 = arith.constant 80 : index
    %c0_60 = arith.constant 0 : index
    %63 = vector.load %arg2[%c80_59, %c0_60] : memref<144x512xf32, #tpu.memory_space<vmem>>, vector<16x512xf32>
    %64 = arith.mulf %62, %63 : vector<16x512xf32>
    %c80_61 = arith.constant 80 : index
    %c0_62 = arith.constant 0 : index
    %65 = vector.load %arg9[%c80_61, %c0_62] : memref<144x512xf32, #tpu.memory_space<vmem>>, vector<16x512xf32>
    tpu.vector_store %arg9[%c80_61, %c0_62], %64 {strides = array<i32>} : memref<144x512xf32, #tpu.memory_space<vmem>>, vector<16x512xf32>,
    %c497_i32_63 = arith.constant 497 : i32
    %66 = tpu.dynamic_rotate %43 by %c497_i32_63 dim 1 : vector<16x512xf32>, i32 -> vector<16x512xf32>
    %c96_64 = arith.constant 96 : index
    %c0_65 = arith.constant 0 : index
    %67 = vector.load %arg2[%c96_64, %c0_65] : memref<144x512xf32, #tpu.memory_space<vmem>>, vector<16x512xf32>
    %68 = arith.mulf %66, %67 : vector<16x512xf32>
    %c96_66 = arith.constant 96 : index
    %c0_67 = arith.constant 0 : index
    %69 = vector.load %arg9[%c96_66, %c0_67] : memref<144x512xf32, #tpu.memory_space<vmem>>, vector<16x512xf32>
    tpu.vector_store %arg9[%c96_66, %c0_67], %68 {strides = array<i32>} : memref<144x512xf32, #tpu.memory_space<vmem>>, vector<16x512xf32>,
    %c496_i32_68 = arith.constant 496 : i32
    %70 = tpu.dynamic_rotate %43 by %c496_i32_68 dim 1 : vector<16x512xf32>, i32 -> vector<16x512xf32>
    %c112_69 = arith.constant 112 : index
    %c0_70 = arith.constant 0 : index
    %71 = vector.load %arg2[%c112_69, %c0_70] : memref<144x512xf32, #tpu.memory_space<vmem>>, vector<16x512xf32>
    %72 = arith.mulf %70, %71 : vector<16x512xf32>
    %c112_71 = arith.constant 112 : index
    %c0_72 = arith.constant 0 : index
    %73 = vector.load %arg9[%c112_71, %c0_72] : memref<144x512xf32, #tpu.memory_space<vmem>>, vector<16x512xf32>
    tpu.vector_store %arg9[%c112_71, %c0_72], %72 {strides = array<i32>} : memref<144x512xf32, #tpu.memory_space<vmem>>, vector<16x512xf32>,
    %c495_i32_73 = arith.constant 495 : i32
    %74 = tpu.dynamic_rotate %43 by %c495_i32_73 dim 1 : vector<16x512xf32>, i32 -> vector<16x512xf32>
    %c128_74 = arith.constant 128 : index
    %c0_75 = arith.constant 0 : index
    %75 = vector.load %arg2[%c128_74, %c0_75] : memref<144x512xf32, #tpu.memory_space<vmem>>, vector<16x512xf32>
    %76 = arith.mulf %74, %75 : vector<16x512xf32>
    %c128_76 = arith.constant 128 : index
    %c0_77 = arith.constant 0 : index
    %77 = vector.load %arg9[%c128_76, %c0_77] : memref<144x512xf32, #tpu.memory_space<vmem>>, vector<16x512xf32>
    tpu.vector_store %arg9[%c128_76, %c0_77], %76 {strides = array<i32>} : memref<144x512xf32, #tpu.memory_space<vmem>>, vector<16x512xf32>,
    %c0_78 = arith.constant 0 : index
    %c0_79 = arith.constant 0 : index
    %78 = vector.load %arg9[%c0_78, %c0_79] : memref<144x512xf32, #tpu.memory_space<vmem>>, vector<144x512xf32>
    %cst_80 = arith.constant dense<0.000000e+00> : vector<16x512xf32>
    %79 = tpu.matmul %2, %78, %cst_80 {dimension_numbers = #tpu.dot_dimension_numbers<[1], [0], [0], [1], [0, 0, 1, 1], [], []>} : vector<16x144xf32>, vector<144x512xf32>, vector<16x512xf32> -> vector<16x512xf32>
    %c32_81 = arith.constant 32 : index
    %c0_82 = arith.constant 0 : index
    %80 = vector.load %arg3[%c32_81, %c0_82] : memref<81x1xf32, #tpu.memory_space<vmem>>, vector<16x1xf32>
    %81 = vector.broadcast %80 : vector<16x1xf32> to vector<16x512xf32>
    %82 = arith.addf %79, %81 : vector<16x512xf32>
    %83 = arith.addf %82, %44 : vector<16x512xf32>
    %cst_83 = arith.constant 0.000000e+00 : f32
    %84 = vector.broadcast %cst_83 : f32 to vector<16x512xf32>
    %85 = arith.maximumf %83, %84 : vector<16x512xf32>
    %c0_84 = arith.constant 0 : index
    %c0_85 = arith.constant 0 : index
    %86 = vector.load %arg6[%c0_84, %c0_85] : memref<16x144xf32, #tpu.memory_space<vmem>>, vector<16x144xf32>
    %c0_86 = arith.constant 0 : index
    %c0_87 = arith.constant 0 : index
    %87 = vector.load %arg7[%c0_86, %c0_87] : memref<8x72xf32, #tpu.memory_space<vmem>>, vector<8x72xf32>
    %c17_i32_88 = arith.constant 17 : i32
    %88 = tpu.dynamic_rotate %85 by %c17_i32_88 dim 1 : vector<16x512xf32>, i32 -> vector<16x512xf32>
    %c0_89 = arith.constant 0 : index
    %c0_90 = arith.constant 0 : index
    %89 = vector.load %arg2[%c0_89, %c0_90] : memref<144x512xf32, #tpu.memory_space<vmem>>, vector<16x512xf32>
    %90 = arith.mulf %88, %89 : vector<16x512xf32>
    %c0_91 = arith.constant 0 : index
    %c0_92 = arith.constant 0 : index
    %91 = vector.load %arg9[%c0_91, %c0_92] : memref<144x512xf32, #tpu.memory_space<vmem>>, vector<16x512xf32>
    tpu.vector_store %arg9[%c0_91, %c0_92], %90 {strides = array<i32>} : memref<144x512xf32, #tpu.memory_space<vmem>>, vector<16x512xf32>,
    %c16_i32_93 = arith.constant 16 : i32
    %92 = tpu.dynamic_rotate %85 by %c16_i32_93 dim 1 : vector<16x512xf32>, i32 -> vector<16x512xf32>
    %c16_94 = arith.constant 16 : index
    %c0_95 = arith.constant 0 : index
    %93 = vector.load %arg2[%c16_94, %c0_95] : memref<144x512xf32, #tpu.memory_space<vmem>>, vector<16x512xf32>
    %94 = arith.mulf %92, %93 : vector<16x512xf32>
    %c16_96 = arith.constant 16 : index
    %c0_97 = arith.constant 0 : index
    %95 = vector.load %arg9[%c16_96, %c0_97] : memref<144x512xf32, #tpu.memory_space<vmem>>, vector<16x512xf32>
    tpu.vector_store %arg9[%c16_96, %c0_97], %94 {strides = array<i32>} : memref<144x512xf32, #tpu.memory_space<vmem>>, vector<16x512xf32>,
    %c15_i32_98 = arith.constant 15 : i32
    %96 = tpu.dynamic_rotate %85 by %c15_i32_98 dim 1 : vector<16x512xf32>, i32 -> vector<16x512xf32>
    %c32_99 = arith.constant 32 : index
    %c0_100 = arith.constant 0 : index
    %97 = vector.load %arg2[%c32_99, %c0_100] : memref<144x512xf32, #tpu.memory_space<vmem>>, vector<16x512xf32>
    %98 = arith.mulf %96, %97 : vector<16x512xf32>
    %c32_101 = arith.constant 32 : index
    %c0_102 = arith.constant 0 : index
    %99 = vector.load %arg9[%c32_101, %c0_102] : memref<144x512xf32, #tpu.memory_space<vmem>>, vector<16x512xf32>
    tpu.vector_store %arg9[%c32_101, %c0_102], %98 {strides = array<i32>} : memref<144x512xf32, #tpu.memory_space<vmem>>, vector<16x512xf32>,
    %c1_i32_103 = arith.constant 1 : i32
    %100 = tpu.dynamic_rotate %85 by %c1_i32_103 dim 1 : vector<16x512xf32>, i32 -> vector<16x512xf32>
    %c48_104 = arith.constant 48 : index
    %c0_105 = arith.constant 0 : index
    %101 = vector.load %arg2[%c48_104, %c0_105] : memref<144x512xf32, #tpu.memory_space<vmem>>, vector<16x512xf32>
    %102 = arith.mulf %100, %101 : vector<16x512xf32>
    %c48_106 = arith.constant 48 : index
    %c0_107 = arith.constant 0 : index
    %103 = vector.load %arg9[%c48_106, %c0_107] : memref<144x512xf32, #tpu.memory_space<vmem>>, vector<16x512xf32>
    tpu.vector_store %arg9[%c48_106, %c0_107], %102 {strides = array<i32>} : memref<144x512xf32, #tpu.memory_space<vmem>>, vector<16x512xf32>,
    %c64_108 = arith.constant 64 : index
    %c0_109 = arith.constant 0 : index
    %104 = vector.load %arg9[%c64_108, %c0_109] : memref<144x512xf32, #tpu.memory_space<vmem>>, vector<16x512xf32>
    tpu.vector_store %arg9[%c64_108, %c0_109], %85 {strides = array<i32>} : memref<144x512xf32, #tpu.memory_space<vmem>>, vector<16x512xf32>,
    %c511_i32_110 = arith.constant 511 : i32
    %105 = tpu.dynamic_rotate %85 by %c511_i32_110 dim 1 : vector<16x512xf32>, i32 -> vector<16x512xf32>
    %c80_111 = arith.constant 80 : index
    %c0_112 = arith.constant 0 : index
    %106 = vector.load %arg2[%c80_111, %c0_112] : memref<144x512xf32, #tpu.memory_space<vmem>>, vector<16x512xf32>
    %107 = arith.mulf %105, %106 : vector<16x512xf32>
    %c80_113 = arith.constant 80 : index
    %c0_114 = arith.constant 0 : index
    %108 = vector.load %arg9[%c80_113, %c0_114] : memref<144x512xf32, #tpu.memory_space<vmem>>, vector<16x512xf32>
    tpu.vector_store %arg9[%c80_113, %c0_114], %107 {strides = array<i32>} : memref<144x512xf32, #tpu.memory_space<vmem>>, vector<16x512xf32>,
    %c497_i32_115 = arith.constant 497 : i32
    %109 = tpu.dynamic_rotate %85 by %c497_i32_115 dim 1 : vector<16x512xf32>, i32 -> vector<16x512xf32>
    %c96_116 = arith.constant 96 : index
    %c0_117 = arith.constant 0 : index
    %110 = vector.load %arg2[%c96_116, %c0_117] : memref<144x512xf32, #tpu.memory_space<vmem>>, vector<16x512xf32>
    %111 = arith.mulf %109, %110 : vector<16x512xf32>
    %c96_118 = arith.constant 96 : index
    %c0_119 = arith.constant 0 : index
    %112 = vector.load %arg9[%c96_118, %c0_119] : memref<144x512xf32, #tpu.memory_space<vmem>>, vector<16x512xf32>
    tpu.vector_store %arg9[%c96_118, %c0_119], %111 {strides = array<i32>} : memref<144x512xf32, #tpu.memory_space<vmem>>, vector<16x512xf32>,
    %c496_i32_120 = arith.constant 496 : i32
    %113 = tpu.dynamic_rotate %85 by %c496_i32_120 dim 1 : vector<16x512xf32>, i32 -> vector<16x512xf32>
    %c112_121 = arith.constant 112 : index
    %c0_122 = arith.constant 0 : index
    %114 = vector.load %arg2[%c112_121, %c0_122] : memref<144x512xf32, #tpu.memory_space<vmem>>, vector<16x512xf32>
    %115 = arith.mulf %113, %114 : vector<16x512xf32>
    %c112_123 = arith.constant 112 : index
    %c0_124 = arith.constant 0 : index
    %116 = vector.load %arg9[%c112_123, %c0_124] : memref<144x512xf32, #tpu.memory_space<vmem>>, vector<16x512xf32>
    tpu.vector_store %arg9[%c112_123, %c0_124], %115 {strides = array<i32>} : memref<144x512xf32, #tpu.memory_space<vmem>>, vector<16x512xf32>,
    %c495_i32_125 = arith.constant 495 : i32
    %117 = tpu.dynamic_rotate %85 by %c495_i32_125 dim 1 : vector<16x512xf32>, i32 -> vector<16x512xf32>
    %c128_126 = arith.constant 128 : index
    %c0_127 = arith.constant 0 : index
    %118 = vector.load %arg2[%c128_126, %c0_127] : memref<144x512xf32, #tpu.memory_space<vmem>>, vector<16x512xf32>
    %119 = arith.mulf %117, %118 : vector<16x512xf32>
    %c128_128 = arith.constant 128 : index
    %c0_129 = arith.constant 0 : index
    %120 = vector.load %arg9[%c128_128, %c0_129] : memref<144x512xf32, #tpu.memory_space<vmem>>, vector<16x512xf32>
    tpu.vector_store %arg9[%c128_128, %c0_129], %119 {strides = array<i32>} : memref<144x512xf32, #tpu.memory_space<vmem>>, vector<16x512xf32>,
    %c0_130 = arith.constant 0 : index
    %c0_131 = arith.constant 0 : index
    %121 = vector.load %arg9[%c0_130, %c0_131] : memref<144x512xf32, #tpu.memory_space<vmem>>, vector<144x512xf32>
    %cst_132 = arith.constant dense<0.000000e+00> : vector<16x512xf32>
    %122 = tpu.matmul %86, %121, %cst_132 {dimension_numbers = #tpu.dot_dimension_numbers<[1], [0], [0], [1], [0, 0, 1, 1], [], []>} : vector<16x144xf32>, vector<144x512xf32>, vector<16x512xf32> -> vector<16x512xf32>
    %c48_133 = arith.constant 48 : index
    %c0_134 = arith.constant 0 : index
    %123 = vector.load %arg3[%c48_133, %c0_134] : memref<81x1xf32, #tpu.memory_space<vmem>>, vector<16x1xf32>
    %124 = vector.broadcast %123 : vector<16x1xf32> to vector<16x512xf32>
    %125 = arith.addf %122, %124 : vector<16x512xf32>
    %126 = vector.extract_strided_slice %125 {offsets = [0, 0], sizes = [8, 512], strides = [1, 1]} : vector<16x512xf32> to vector<8x512xf32>
    %cst_135 = arith.constant 0.000000e+00 : f32
    %127 = vector.broadcast %cst_135 : f32 to vector<8x512xf32>
    %128 = arith.maximumf %126, %127 : vector<8x512xf32>
    %129 = vector.extract_strided_slice %125 {offsets = [8, 0], sizes = [8, 512], strides = [1, 1]} : vector<16x512xf32> to vector<8x512xf32>
    %c17_i32_136 = arith.constant 17 : i32
    %130 = tpu.dynamic_rotate %128 by %c17_i32_136 dim 1 : vector<8x512xf32>, i32 -> vector<8x512xf32>
    %c0_137 = arith.constant 0 : index
    %c0_138 = arith.constant 0 : index
    %131 = vector.load %arg2[%c0_137, %c0_138] : memref<144x512xf32, #tpu.memory_space<vmem>>, vector<8x512xf32>
    %132 = arith.mulf %130, %131 : vector<8x512xf32>
    %c0_139 = arith.constant 0 : index
    %c0_140 = arith.constant 0 : index
    %133 = vector.load %arg9[%c0_139, %c0_140] : memref<144x512xf32, #tpu.memory_space<vmem>>, vector<8x512xf32>
    tpu.vector_store %arg9[%c0_139, %c0_140], %132 {strides = array<i32>} : memref<144x512xf32, #tpu.memory_space<vmem>>, vector<8x512xf32>,
    %c16_i32_141 = arith.constant 16 : i32
    %134 = tpu.dynamic_rotate %128 by %c16_i32_141 dim 1 : vector<8x512xf32>, i32 -> vector<8x512xf32>
    %c16_142 = arith.constant 16 : index
    %c0_143 = arith.constant 0 : index
    %135 = vector.load %arg2[%c16_142, %c0_143] : memref<144x512xf32, #tpu.memory_space<vmem>>, vector<8x512xf32>
    %136 = arith.mulf %134, %135 : vector<8x512xf32>
    %c8 = arith.constant 8 : index
    %c0_144 = arith.constant 0 : index
    %137 = vector.load %arg9[%c8, %c0_144] : memref<144x512xf32, #tpu.memory_space<vmem>>, vector<8x512xf32>
    tpu.vector_store %arg9[%c8, %c0_144], %136 {strides = array<i32>} : memref<144x512xf32, #tpu.memory_space<vmem>>, vector<8x512xf32>,
    %c15_i32_145 = arith.constant 15 : i32
    %138 = tpu.dynamic_rotate %128 by %c15_i32_145 dim 1 : vector<8x512xf32>, i32 -> vector<8x512xf32>
    %c32_146 = arith.constant 32 : index
    %c0_147 = arith.constant 0 : index
    %139 = vector.load %arg2[%c32_146, %c0_147] : memref<144x512xf32, #tpu.memory_space<vmem>>, vector<8x512xf32>
    %140 = arith.mulf %138, %139 : vector<8x512xf32>
    %c16_148 = arith.constant 16 : index
    %c0_149 = arith.constant 0 : index
    %141 = vector.load %arg9[%c16_148, %c0_149] : memref<144x512xf32, #tpu.memory_space<vmem>>, vector<8x512xf32>
    tpu.vector_store %arg9[%c16_148, %c0_149], %140 {strides = array<i32>} : memref<144x512xf32, #tpu.memory_space<vmem>>, vector<8x512xf32>,
    %c1_i32_150 = arith.constant 1 : i32
    %142 = tpu.dynamic_rotate %128 by %c1_i32_150 dim 1 : vector<8x512xf32>, i32 -> vector<8x512xf32>
    %c48_151 = arith.constant 48 : index
    %c0_152 = arith.constant 0 : index
    %143 = vector.load %arg2[%c48_151, %c0_152] : memref<144x512xf32, #tpu.memory_space<vmem>>, vector<8x512xf32>
    %144 = arith.mulf %142, %143 : vector<8x512xf32>
    %c24 = arith.constant 24 : index
    %c0_153 = arith.constant 0 : index
    %145 = vector.load %arg9[%c24, %c0_153] : memref<144x512xf32, #tpu.memory_space<vmem>>, vector<8x512xf32>
    tpu.vector_store %arg9[%c24, %c0_153], %144 {strides = array<i32>} : memref<144x512xf32, #tpu.memory_space<vmem>>, vector<8x512xf32>,
    %c32_154 = arith.constant 32 : index
    %c0_155 = arith.constant 0 : index
    %146 = vector.load %arg9[%c32_154, %c0_155] : memref<144x512xf32, #tpu.memory_space<vmem>>, vector<8x512xf32>
    tpu.vector_store %arg9[%c32_154, %c0_155], %128 {strides = array<i32>} : memref<144x512xf32, #tpu.memory_space<vmem>>, vector<8x512xf32>,
    %c511_i32_156 = arith.constant 511 : i32
    %147 = tpu.dynamic_rotate %128 by %c511_i32_156 dim 1 : vector<8x512xf32>, i32 -> vector<8x512xf32>
    %c80_157 = arith.constant 80 : index
    %c0_158 = arith.constant 0 : index
    %148 = vector.load %arg2[%c80_157, %c0_158] : memref<144x512xf32, #tpu.memory_space<vmem>>, vector<8x512xf32>
    %149 = arith.mulf %147, %148 : vector<8x512xf32>
    %c40 = arith.constant 40 : index
    %c0_159 = arith.constant 0 : index
    %150 = vector.load %arg9[%c40, %c0_159] : memref<144x512xf32, #tpu.memory_space<vmem>>, vector<8x512xf32>
    tpu.vector_store %arg9[%c40, %c0_159], %149 {strides = array<i32>} : memref<144x512xf32, #tpu.memory_space<vmem>>, vector<8x512xf32>,
    %c497_i32_160 = arith.constant 497 : i32
    %151 = tpu.dynamic_rotate %128 by %c497_i32_160 dim 1 : vector<8x512xf32>, i32 -> vector<8x512xf32>
    %c96_161 = arith.constant 96 : index
    %c0_162 = arith.constant 0 : index
    %152 = vector.load %arg2[%c96_161, %c0_162] : memref<144x512xf32, #tpu.memory_space<vmem>>, vector<8x512xf32>
    %153 = arith.mulf %151, %152 : vector<8x512xf32>
    %c48_163 = arith.constant 48 : index
    %c0_164 = arith.constant 0 : index
    %154 = vector.load %arg9[%c48_163, %c0_164] : memref<144x512xf32, #tpu.memory_space<vmem>>, vector<8x512xf32>
    tpu.vector_store %arg9[%c48_163, %c0_164], %153 {strides = array<i32>} : memref<144x512xf32, #tpu.memory_space<vmem>>, vector<8x512xf32>,
    %c496_i32_165 = arith.constant 496 : i32
    %155 = tpu.dynamic_rotate %128 by %c496_i32_165 dim 1 : vector<8x512xf32>, i32 -> vector<8x512xf32>
    %c112_166 = arith.constant 112 : index
    %c0_167 = arith.constant 0 : index
    %156 = vector.load %arg2[%c112_166, %c0_167] : memref<144x512xf32, #tpu.memory_space<vmem>>, vector<8x512xf32>
    %157 = arith.mulf %155, %156 : vector<8x512xf32>
    %c56 = arith.constant 56 : index
    %c0_168 = arith.constant 0 : index
    %158 = vector.load %arg9[%c56, %c0_168] : memref<144x512xf32, #tpu.memory_space<vmem>>, vector<8x512xf32>
    tpu.vector_store %arg9[%c56, %c0_168], %157 {strides = array<i32>} : memref<144x512xf32, #tpu.memory_space<vmem>>, vector<8x512xf32>,
    %c495_i32_169 = arith.constant 495 : i32
    %159 = tpu.dynamic_rotate %128 by %c495_i32_169 dim 1 : vector<8x512xf32>, i32 -> vector<8x512xf32>
    %c128_170 = arith.constant 128 : index
    %c0_171 = arith.constant 0 : index
    %160 = vector.load %arg2[%c128_170, %c0_171] : memref<144x512xf32, #tpu.memory_space<vmem>>, vector<8x512xf32>
    %161 = arith.mulf %159, %160 : vector<8x512xf32>
    %c64_172 = arith.constant 64 : index
    %c0_173 = arith.constant 0 : index
    %162 = vector.load %arg9[%c64_172, %c0_173] : memref<144x512xf32, #tpu.memory_space<vmem>>, vector<8x512xf32>
    tpu.vector_store %arg9[%c64_172, %c0_173], %161 {strides = array<i32>} : memref<144x512xf32, #tpu.memory_space<vmem>>, vector<8x512xf32>,
    %c0_174 = arith.constant 0 : index
    %c0_175 = arith.constant 0 : index
    %163 = vector.load %arg9[%c0_174, %c0_175] : memref<144x512xf32, #tpu.memory_space<vmem>>, vector<72x512xf32>
    %cst_176 = arith.constant dense<0.000000e+00> : vector<8x512xf32>
    %164 = tpu.matmul %87, %163, %cst_176 {dimension_numbers = #tpu.dot_dimension_numbers<[1], [0], [0], [1], [0, 0, 1, 1], [], []>} : vector<8x72xf32>, vector<72x512xf32>, vector<8x512xf32> -> vector<8x512xf32>
    %c64_177 = arith.constant 64 : index
    %c0_178 = arith.constant 0 : index
    %165 = vector.load %arg3[%c64_177, %c0_178] : memref<81x1xf32, #tpu.memory_space<vmem>>, vector<8x1xf32>
    %166 = vector.broadcast %165 : vector<8x1xf32> to vector<8x512xf32>
    %167 = arith.addf %164, %166 : vector<8x512xf32>
    %168 = arith.addf %167, %129 : vector<8x512xf32>
    %cst_179 = arith.constant 0.000000e+00 : f32
    %169 = vector.broadcast %cst_179 : f32 to vector<8x512xf32>
    %170 = arith.maximumf %168, %169 : vector<8x512xf32>
    %c72 = arith.constant 72 : index
    %c0_180 = arith.constant 0 : index
    %171 = vector.load %arg3[%c72, %c0_180] : memref<81x1xf32, #tpu.memory_space<vmem>>, vector<8x1xf32>
    %c80_181 = arith.constant 80 : index
    %c0_182 = arith.constant 0 : index
    %172 = vector.load %arg3[%c80_181, %c0_182] : memref<81x1xf32, #tpu.memory_space<vmem>>, vector<1x1xf32>
    %173 = vector.broadcast %171 : vector<8x1xf32> to vector<8x512xf32>
    %174 = arith.mulf %170, %173 : vector<8x512xf32>
    %cst_183 = arith.constant dense<0.000000e+00> : vector<512xf32>
    %175 = vector.multi_reduction <add>, %174, %cst_183 [0] : vector<8x512xf32> to vector<512xf32>
    %176 = vector.shape_cast %175 : vector<512xf32> to vector<1x512xf32>
    %177 = vector.broadcast %172 : vector<1x1xf32> to vector<1x512xf32>
    %178 = arith.addf %176, %177 : vector<1x512xf32>
    %c0_184 = arith.constant 0 : index
    %c0_185 = arith.constant 0 : index
    %179 = vector.load %arg8[%c0_184, %c0_185] : memref<1x512xf32, #tpu.memory_space<vmem>>, vector<1x512xf32>
    tpu.vector_store %arg8[%c0_184, %c0_185], %178 {strides = array<i32>} : memref<1x512xf32, #tpu.memory_space<vmem>>, vector<1x512xf32>,
    return
  }
  func.func @transform_0(%arg0: i32) -> (i32, i32) {
    %c0_i32 = arith.constant 0 : i32
    %c0_i32_0 = arith.constant 0 : i32
    return %c0_i32, %arg0 : i32, i32
  }
  func.func @transform_1(%arg0: i32) -> (i32, i32) {
    %c0_i32 = arith.constant 0 : i32
    %c0_i32_0 = arith.constant 0 : i32
    %c0_i32_1 = arith.constant 0 : i32
    return %c0_i32, %c0_i32_0 : i32, i32
  }
  func.func @transform_2(%arg0: i32) -> (i32, i32) {
    %c0_i32 = arith.constant 0 : i32
    %c0_i32_0 = arith.constant 0 : i32
    %c0_i32_1 = arith.constant 0 : i32
    return %c0_i32, %c0_i32_0 : i32, i32
  }
  func.func @transform_3(%arg0: i32) -> (i32, i32) {
    %c0_i32 = arith.constant 0 : i32
    %c0_i32_0 = arith.constant 0 : i32
    %c0_i32_1 = arith.constant 0 : i32
    return %c0_i32, %c0_i32_0 : i32, i32
  }
  func.func @transform_4(%arg0: i32) -> (i32, i32) {
    %c0_i32 = arith.constant 0 : i32
    %c0_i32_0 = arith.constant 0 : i32
    %c0_i32_1 = arith.constant 0 : i32
    return %c0_i32, %c0_i32_0 : i32, i32
  }
  func.func @transform_5(%arg0: i32) -> (i32, i32) {
    %c0_i32 = arith.constant 0 : i32
    %c0_i32_0 = arith.constant 0 : i32
    %c0_i32_1 = arith.constant 0 : i32
    return %c0_i32, %c0_i32_0 : i32, i32
  }
  func.func @transform_6(%arg0: i32) -> (i32, i32) {
    %c0_i32 = arith.constant 0 : i32
    %c0_i32_0 = arith.constant 0 : i32
    %c0_i32_1 = arith.constant 0 : i32
    return %c0_i32, %c0_i32_0 : i32, i32
  }
  func.func @transform_7(%arg0: i32) -> (i32, i32) {
    %c0_i32 = arith.constant 0 : i32
    %c0_i32_0 = arith.constant 0 : i32
    return %c0_i32, %arg0 : i32, i32
  }
}

</mosaic_0001>

<llo_original>
// kernel: model_forward.1
$region0: #{model_forward.1}
  #allocation0 [shape = 'u32[]', space=smem, size = 0x4, offset = 0x4, fixed_abs, tag = 'smem constant byte address 0x4 - core index']
  #allocation1 [shape = 'u32[72,128]{1,0:T(1,128)}', space=vmem, size = 0x9000, scoped, tag = 'internal scratch']
  #allocation2 [shape = 'f32[144,512]{1,0:T(8,128)}', space=vmem, size = 0x48000, scoped, tag = 'scratch operand']
  %s0 = inlined_call_operand.vmem [shape: f32[16,1024], index: 0, kind: input, shape index: {}]
  %s1 = inlined_call_operand.vmem [shape: f32[144,512], index: 1, kind: input, shape index: {}]
  %s2 = inlined_call_operand.vmem [shape: f32[81,1], index: 2, kind: input, shape index: {}]
  %s3 = inlined_call_operand.vmem [shape: f32[32,144], index: 3, kind: input, shape index: {}]
  %s4 = inlined_call_operand.vmem [shape: f32[16,144], index: 4, kind: input, shape index: {}]
  %s5 = inlined_call_operand.vmem [shape: f32[16,144], index: 5, kind: input, shape index: {}]
  %s6 = inlined_call_operand.vmem [shape: f32[8,72], index: 6, kind: input, shape index: {}]
  %s7 = inlined_call_operand.vmem [shape: f32[1,1024], index: 7, kind: output, shape index: {}]
  %s8 = sld [smem:[#allocation0]]
  $region84: #{model_forward.1} parent=0
    _
  %s10 = ssub.s32 1, %s8
  %s11 = scalar_select 0, %s10, %s8
  $region1: #{model_forward.1} parent=0
    #allocation3 [shape = 'u8[65536]{0}', space=vmem, size = 0x10000, scoped, tag = 'input window, operand 0']
    loop: start=0, step=1, limit=4
    $region2: #{model_forward.1} parent=1 // loop_pre_header
      _
    $region3: #{model_forward.1} parent=1 // loop_header
      %s13 = sphi 0, %s17
      %p14 = scmp.ge.s32.totalorder %s13, 4
      %s23 = sphi 0, %s25
      %s26 = sphi 0, %s23
      %s27 = sphi 0, %s26
      %s43 = sphi 0, %s27
      %s47 = sphi 0, %s47
      %s49 = sphi 0, %s47
      %s50 = sphi 0, %s49
      %s64 = sphi 0, %s50
      %s68 = sphi 0, %s68
      %s70 = sphi 0, %s68
      %s71 = sphi 0, %s70
      %s85 = sphi 0, %s71
      %s89 = sphi 0, %s89
      %s91 = sphi 0, %s89
      %s92 = sphi 0, %s91
      %s106 = sphi 0, %s92
      %s110 = sphi 0, %s110
      %s112 = sphi 0, %s110
      %s113 = sphi 0, %s112
      %s127 = sphi 0, %s113
      %s131 = sphi 0, %s131
      %s133 = sphi 0, %s131
      %s134 = sphi 0, %s133
      %s148 = sphi 0, %s134
      %s152 = sphi 0, %s152
      %s154 = sphi 0, %s152
      %s155 = sphi 0, %s154
      %s169 = sphi 0, %s155
      %s175 = sphi 0, %s177
      %s178 = sphi 0, %s175
      %s179 = sphi 0, %s178
      %s195 = sphi 0, %s179
    $region4: #{model_forward.1} parent=1 // loop_header_branch
      %16 = sbr.rel (%p14) target = $region8
    $region5: #{model_forward.1} parent=1 // loop_body
      %s18 = ssub.s32 %s13, 1
      %s19 = ssub.s32 %s13, 2
      %s20 = sadd.s32 %s13, 1
      %s21 = ssub.s32 %s13, %s20
      %p22 = scmp.eq.s32.totalorder %s21, 0
      %s24 = sadd.s32 %s23, 1
      %s25 = scalar_select %p22, %s23, %s24
      %p28 = pneg %p22
      %p29 = scmp.eq.s32.totalorder %s13, 1
      %p30 = por %p28, %p29
      %p31 = scmp.ne.s32.totalorder %s23, %s26
      %p32 = scmp.eq.s32.totalorder %s13, 0
      %p33 = por %p31, %p32
      %p34 = scmp.ne.s32.totalorder %s23, %s26
      %p35 = scmp.eq.s32.totalorder %s18, 1
      %p36 = por %p34, %p35
      %p37 = scmp.ne.s32.totalorder %s26, %s27
      %p38 = scmp.eq.s32.totalorder %s18, 0
      %p39 = por %p37, %p38
      %p40 = scmp.ne.s32.totalorder %s26, %s27
      %p41 = scmp.eq.s32.totalorder %s19, 1
      %p42 = por %p40, %p41
      %p44 = scmp.ne.s32.totalorder %s27, %s43
      %p45 = scmp.eq.s32.totalorder %s19, 0
      %p46 = por %p44, %p45
      %s48 = sadd.s32 %s47, 1
      %p51 = scmp.eq.s32.totalorder %s13, 1
      %p52 = scmp.ne.s32.totalorder %s47, %s49
      %p53 = scmp.eq.s32.totalorder %s13, 0
      %p54 = por %p52, %p53
      %p55 = scmp.ne.s32.totalorder %s47, %s49
      %p56 = scmp.eq.s32.totalorder %s18, 1
      %p57 = por %p55, %p56
      %p58 = scmp.ne.s32.totalorder %s49, %s50
      %p59 = scmp.eq.s32.totalorder %s18, 0
      %p60 = por %p58, %p59
      %p61 = scmp.ne.s32.totalorder %s49, %s50
      %p62 = scmp.eq.s32.totalorder %s19, 1
      %p63 = por %p61, %p62
      %p65 = scmp.ne.s32.totalorder %s50, %s64
      %p66 = scmp.eq.s32.totalorder %s19, 0
      %p67 = por %p65, %p66
      %s69 = sadd.s32 %s68, 1
      %p72 = scmp.eq.s32.totalorder %s13, 1
      %p73 = scmp.ne.s32.totalorder %s68, %s70
      %p74 = scmp.eq.s32.totalorder %s13, 0
      %p75 = por %p73, %p74
      %p76 = scmp.ne.s32.totalorder %s68, %s70
      %p77 = scmp.eq.s32.totalorder %s18, 1
      %p78 = por %p76, %p77
      %p79 = scmp.ne.s32.totalorder %s70, %s71
      %p80 = scmp.eq.s32.totalorder %s18, 0
      %p81 = por %p79, %p80
      %p82 = scmp.ne.s32.totalorder %s70, %s71
      %p83 = scmp.eq.s32.totalorder %s19, 1
      %p84 = por %p82, %p83
      %p86 = scmp.ne.s32.totalorder %s71, %s85
      %p87 = scmp.eq.s32.totalorder %s19, 0
      %p88 = por %p86, %p87
      %s90 = sadd.s32 %s89, 1
      %p93 = scmp.eq.s32.totalorder %s13, 1
      %p94 = scmp.ne.s32.totalorder %s89, %s91
      %p95 = scmp.eq.s32.totalorder %s13, 0
      %p96 = por %p94, %p95
      %p97 = scmp.ne.s32.totalorder %s89, %s91
      %p98 = scmp.eq.s32.totalorder %s18, 1
      %p99 = por %p97, %p98
      %p100 = scmp.ne.s32.totalorder %s91, %s92
      %p101 = scmp.eq.s32.totalorder %s18, 0
      %p102 = por %p100, %p101
      %p103 = scmp.ne.s32.totalorder %s91, %s92
      %p104 = scmp.eq.s32.totalorder %s19, 1
      %p105 = por %p103, %p104
      %p107 = scmp.ne.s32.totalorder %s92, %s106
      %p108 = scmp.eq.s32.totalorder %s19, 0
      %p109 = por %p107, %p108
      %s111 = sadd.s32 %s110, 1
      %p114 = scmp.eq.s32.totalorder %s13, 1
      %p115 = scmp.ne.s32.totalorder %s110, %s112
      %p116 = scmp.eq.s32.totalorder %s13, 0
      %p117 = por %p115, %p116
      %p118 = scmp.ne.s32.totalorder %s110, %s112
      %p119 = scmp.eq.s32.totalorder %s18, 1
      %p120 = por %p118, %p119
      %p121 = scmp.ne.s32.totalorder %s112, %s113
      %p122 = scmp.eq.s32.totalorder %s18, 0
      %p123 = por %p121, %p122
      %p124 = scmp.ne.s32.totalorder %s112, %s113
      %p125 = scmp.eq.s32.totalorder %s19, 1
      %p126 = por %p124, %p125
      %p128 = scmp.ne.s32.totalorder %s113, %s127
      %p129 = scmp.eq.s32.totalorder %s19, 0
      %p130 = por %p128, %p129
      %s132 = sadd.s32 %s131, 1
      %p135 = scmp.eq.s32.totalorder %s13, 1
      %p136 = scmp.ne.s32.totalorder %s131, %s133
      %p137 = scmp.eq.s32.totalorder %s13, 0
      %p138 = por %p136, %p137
      %p139 = scmp.ne.s32.totalorder %s131, %s133
      %p140 = scmp.eq.s32.totalorder %s18, 1
      %p141 = por %p139, %p140
      %p142 = scmp.ne.s32.totalorder %s133, %s134
      %p143 = scmp.eq.s32.totalorder %s18, 0
      %p144 = por %p142, %p143
      %p145 = scmp.ne.s32.totalorder %s133, %s134
      %p146 = scmp.eq.s32.totalorder %s19, 1
      %p147 = por %p145, %p146
      %p149 = scmp.ne.s32.totalorder %s134, %s148
      %p150 = scmp.eq.s32.totalorder %s19, 0
      %p151 = por %p149, %p150
      %s153 = sadd.s32 %s152, 1
      %p156 = scmp.eq.s32.totalorder %s13, 1
      %p157 = scmp.ne.s32.totalorder %s152, %s154
      %p158 = scmp.eq.s32.totalorder %s13, 0
      %p159 = por %p157, %p158
      %p160 = scmp.ne.s32.totalorder %s152, %s154
      %p161 = scmp.eq.s32.totalorder %s18, 1
      %p162 = por %p160, %p161
      %p163 = scmp.ne.s32.totalorder %s154, %s155
      %p164 = scmp.eq.s32.totalorder %s18, 0
      %p165 = por %p163, %p164
      %p166 = scmp.ne.s32.totalorder %s154, %s155
      %p167 = scmp.eq.s32.totalorder %s19, 1
      %p168 = por %p166, %p167
      %p170 = scmp.ne.s32.totalorder %s155, %s169
      %p171 = scmp.eq.s32.totalorder %s19, 0
      %p172 = por %p170, %p171
      %s173 = ssub.s32 %s13, %s20
      %p174 = scmp.eq.s32.totalorder %s173, 0
      %s176 = sadd.s32 %s175, 1
      %s177 = scalar_select %p174, %s175, %s176
      %p180 = pneg %p174
      %p181 = scmp.eq.s32.totalorder %s13, 1
      %p182 = por %p180, %p181
      %p183 = scmp.ne.s32.totalorder %s175, %s178
      %p184 = scmp.eq.s32.totalorder %s13, 0
      %p185 = por %p183, %p184
      %p186 = scmp.ne.s32.totalorder %s175, %s178
      %p187 = scmp.eq.s32.totalorder %s18, 1
      %p188 = por %p186, %p187
      %p189 = scmp.ne.s32.totalorder %s178, %s179
      %p190 = scmp.eq.s32.totalorder %s18, 0
      %p191 = por %p189, %p190
      %p192 = scmp.ne.s32.totalorder %s178, %s179
      %p193 = scmp.eq.s32.totalorder %s19, 1
      %p194 = por %p192, %p193
      %p196 = scmp.ne.s32.totalorder %s179, %s195
      %p197 = scmp.eq.s32.totalorder %s19, 0
      %p198 = por %p196, %p197
      %p199 = scmp.le.s32.totalorder 1, %s13
      %p200 = scmp.lt.s32.totalorder %s13, 3
      %p201 = pnand %p199, %p200
      %p202 = pneg %p201
      // Predicated region
      $region9: #{model_forward.1} parent=5 // pred_check
        _
      $region10: #{model_forward.1} parent=5 // pred_check_branch
        %204 = sbr.rel (%p201) target = $region12
      $region11: #{model_forward.1} parent=5 // pred_region
        %s205 = ssub.s32 %s13, 1
        // Predicated region
        $region13: #{model_forward.1} parent=11 // pred_check
          %p206 = pneg %p60
        $region14: #{model_forward.1} parent=11 // pred_check_branch
          %208 = sbr.rel (%p206) target = $region16
        $region15: #{model_forward.1} parent=11 // pred_region
          _
        $region16: #{model_forward.1} parent=11 // pred_fallthru
          _
        // Predicated region
        $region17: #{model_forward.1} parent=11 // pred_check
          %p209 = pneg %p81
        $region18: #{model_forward.1} parent=11 // pred_check_branch
          %211 = sbr.rel (%p209) target = $region20
        $region19: #{model_forward.1} parent=11 // pred_region
          _
        $region20: #{model_forward.1} parent=11 // pred_fallthru
          _
        // Predicated region
        $region21: #{model_forward.1} parent=11 // pred_check
          %p212 = pneg %p102
        $region22: #{model_forward.1} parent=11 // pred_check_branch
          %214 = sbr.rel (%p212) target = $region24
        $region23: #{model_forward.1} parent=11 // pred_region
          _
        $region24: #{model_forward.1} parent=11 // pred_fallthru
          _
        // Predicated region
        $region25: #{model_forward.1} parent=11 // pred_check
          %p215 = pneg %p123
        $region26: #{model_forward.1} parent=11 // pred_check_branch
          %217 = sbr.rel (%p215) target = $region28
        $region27: #{model_forward.1} parent=11 // pred_region
          _
        $region28: #{model_forward.1} parent=11 // pred_fallthru
          _
        // Predicated region
        $region29: #{model_forward.1} parent=11 // pred_check
          %p218 = pneg %p144
        $region30: #{model_forward.1} parent=11 // pred_check_branch
          %220 = sbr.rel (%p218) target = $region32
        $region31: #{model_forward.1} parent=11 // pred_region
          _
        $region32: #{model_forward.1} parent=11 // pred_fallthru
          _
        // Predicated region
        $region33: #{model_forward.1} parent=11 // pred_check
          %p221 = pneg %p165
        $region34: #{model_forward.1} parent=11 // pred_check_branch
          %223 = sbr.rel (%p221) target = $region36
        $region35: #{model_forward.1} parent=11 // pred_region
          _
        $region36: #{model_forward.1} parent=11 // pred_fallthru
          _
      $region12: #{model_forward.1} parent=5 // pred_fallthru
        _
      %p224 = scmp.lt.s32.totalorder %s13, 2
      // Predicated region
      $region37: #{model_forward.1} parent=5 // pred_check
        %p225 = pneg %p224
      $region38: #{model_forward.1} parent=5 // pred_check_branch
        %227 = sbr.rel (%p225) target = $region40
      $region39: #{model_forward.1} parent=5 // pred_region
        // Predicated region
        $region41: #{model_forward.1} parent=39 // pred_check
          %p228 = pneg %p33
        $region42: #{model_forward.1} parent=39 // pred_check_branch
          %230 = sbr.rel (%p228) target = $region44
        $region43: #{model_forward.1} parent=39 // pred_region
          %s231 = sand.u32 %s23, 1
          %s232 = sand.u32 %s23, 1
          %s233 = smul.addr %s232, 64
          %s234 = scalar_lea.vmem [#allocation3], %s233
          %s235 = smul.u32 4, %s13
          %s236 = smul.addr %s235, 8
          %s237 = scalar_lea.vmem %s0, %s236
          // Predicated region
          $region45: #{model_forward.1} parent=43 // pred_check
            _
          $region46: #{model_forward.1} parent=43 // pred_check_branch
            %239 = sbr.rel (0) target = $region48
          $region47: #{model_forward.1} parent=43 // pred_region
            // Predicated region
            $region49: #{model_forward.1} parent=47 // pred_check
              _
            $region50: #{model_forward.1} parent=47 // pred_check_branch
              %241 = sbr.rel (0) target = $region52
            $region51: #{model_forward.1} parent=47 // pred_region
              loop: start=0, step=1, limit=1
              $region53: #{model_forward.1} parent=51 // loop_pre_header
                _
              $region54: #{model_forward.1} parent=51 // loop_header
                %s243 = sphi 0, %s247
                %p244 = scmp.ge.s32.totalorder %s243, 1
                %s248 = sphi %s237, %s237
                %s249 = sphi %s234, %s234
              $region55: #{model_forward.1} parent=51 // loop_header_branch
                %246 = sbr.rel (%p244) target = $region59
              $region56: #{model_forward.1} parent=51 // loop_body
                %v250 = vld [vmem:[%s248] sm:$0xff]
                %251 = vst [vmem:[%s249] sm:$0xff] %v250
                %v252 = vld [vmem:[%s248 + $0x8] sm:$0xff]
                %253 = vst [vmem:[%s249 + $0x8] sm:$0xff] %v252
                %v254 = vld [vmem:[%s248 + $0x10] sm:$0xff]
                %255 = vst [vmem:[%s249 + $0x10] sm:$0xff] %v254
                %v256 = vld [vmem:[%s248 + $0x18] sm:$0xff]
                %257 = vst [vmem:[%s249 + $0x18] sm:$0xff] %v256
                %v258 = vld [vmem:[%s248 + $0x40] sm:$0xff]
                %259 = vst [vmem:[%s249 + $0x20] sm:$0xff] %v258
                %v260 = vld [vmem:[%s248 + $0x48] sm:$0xff]
                %261 = vst [vmem:[%s249 + $0x28] sm:$0xff] %v260
                %v262 = vld [vmem:[%s248 + $0x50] sm:$0xff]
                %263 = vst [vmem:[%s249 + $0x30] sm:$0xff] %v262
                %v264 = vld [vmem:[%s248 + $0x58] sm:$0xff]
                %265 = vst [vmem:[%s249 + $0x38] sm:$0xff] %v264
              $region57: #{model_forward.1} parent=51 // loop_footer
                %s247 = sadd.s32 1, %s243
              $region58: #{model_forward.1} parent=51 // loop_footer_branch
                %242 = sbr.rel target = $region54
              $region59: #{model_forward.1} parent=51 // loop_exit
                _
            $region52: #{model_forward.1} parent=47 // pred_fallthru
              _
            // Predicated region
            $region60: #{model_forward.1} parent=47 // pred_check
              _
            $region61: #{model_forward.1} parent=47 // pred_check_branch
              %267 = sbr.rel target = $region63
            $region62: #{model_forward.1} parent=47 // pred_region
              _
            $region63: #{model_forward.1} parent=47 // pred_fallthru
              _
          $region48: #{model_forward.1} parent=43 // pred_fallthru
            _
          %268 = vnop
        $region44: #{model_forward.1} parent=39 // pred_fallthru
          _
      $region40: #{model_forward.1} parent=5 // pred_fallthru
        _
      %p269 = scmp.le.s32.totalorder 1, %s13
      %p270 = scmp.lt.s32.totalorder %s13, 3
      %p271 = pnand %p269, %p270
      %p272 = pneg %p271
      // Predicated region
      $region64: #{model_forward.1} parent=5 // pred_check
        _
      $region65: #{model_forward.1} parent=5 // pred_check_branch
        %274 = sbr.rel (%p271) target = $region67
      $region66: #{model_forward.1} parent=5 // pred_region
        %s275 = ssub.s32 %s13, 1
        %s276 = sand.u32 %s26, 1
        %s277 = sand.u32 %s26, 1
        %s278 = smul.addr %s277, 64
        %s279 = scalar_lea.vmem [#allocation3], %s278
        // Predicated region
        $region68: #{model_forward.1} parent=66 // pred_check
          %p280 = pneg %p39
        $region69: #{model_forward.1} parent=66 // pred_check_branch
          %282 = sbr.rel (%p280) target = $region71
        $region70: #{model_forward.1} parent=66 // pred_region
          _
        $region71: #{model_forward.1} parent=66 // pred_fallthru
          _
        %s283 = sand.u32 %s26, 1
        %s284 = sand.u32 %s26, 1
        %s285 = smul.addr %s284, 64
        %s286 = scalar_lea.vmem [#allocation3], %s285
        %p287 = pneg %p39
        %p288 = pneg %p36
        %p289 = pneg %p60
        %p290 = pneg %p57
        %p291 = pneg %p81
        %p292 = pneg %p78
        %p293 = pneg %p102
        %p294 = pneg %p99
        %p295 = pneg %p123
        %p296 = pneg %p120
        %p297 = pneg %p144
        %p298 = pneg %p141
        %p299 = pneg %p165
        %p300 = pneg %p162
        %p301 = pneg %p191
        %p302 = pneg %p188
        %s303 = smul.u32 4, %s18
        %p304 = scmp.lt.s32.totalorder %s303, 7
        %s305 = scalar_select %p304, %s303, 7
        %s306 = scalar_lea.vmem %s7, %s305
        %s307 = smul.u32 4, %s18
        %s308 = smul.u32 4, %s18
        %p309 = scmp.lt.s32.totalorder %s308, 7
        %s310 = scalar_select %p309, %s308, 7
        %s311 = scalar_lea.vmem %s7, %s310
        %s312 = smul.u32 4, %s18
        %v313 = vld [vmem:[%s279] sm:$0xff]
        %v314 = vld [vmem:[%s279 + $0x8] sm:$0xff]
        %v315 = vld [vmem:[%s279 + $0x10] sm:$0xff]
        %v316 = vld [vmem:[%s279 + $0x18] sm:$0xff]
        %v317 = vld [vmem:[%s279 + $0x20] sm:$0xff]
        %v318 = vld [vmem:[%s279 + $0x28] sm:$0xff]
        %v319 = vld [vmem:[%s279 + $0x30] sm:$0xff]
        %v320 = vld [vmem:[%s279 + $0x38] sm:$0xff]
        %v321 = vld [vmem:[%s3] sm:$0xff]
        %v322 = vld [vmem:[%s3 + $0x8] sm:$0xff]
        %v323 = vld [vmem:[%s3 + $0x10] sm:$0xff]
        %v324 = vld [vmem:[%s3 + $0x18] sm:$0xff]
        %v325 = vld [vmem:[%s3 + $0x20] sm:$0xff]
        %v326 = vld [vmem:[%s3 + $0x28] sm:$0xff]
        %v327 = vld [vmem:[%s3 + $0x30] sm:$0xff]
        %v328 = vld [vmem:[%s3 + $0x38] sm:$0xff]
        %v329 = vld [vmem:[%s4] sm:$0xff]
        %v330 = vld [vmem:[%s4 + $0x8] sm:$0xff]
        %v331 = vld [vmem:[%s4 + $0x10] sm:$0xff]
        %v332 = vld [vmem:[%s4 + $0x18] sm:$0xff]
        %333 = vrot.lane.b32.xlu0 %v313, 17
        %v334 = vpop.permute.xlu0 %333
        %335 = vrot.lane.b32.xlu0 %v317, 17
        %v336 = vpop.permute.xlu0 %335
        %337 = vrot.lane.b32.xlu0 %v314, 17
        %v338 = vpop.permute.xlu0 %337
        %339 = vrot.lane.b32.xlu0 %v318, 17
        %v340 = vpop.permute.xlu0 %339
        %341 = vrot.lane.b32.xlu0 %v315, 17
        %v342 = vpop.permute.xlu0 %341
        %343 = vrot.lane.b32.xlu0 %v319, 17
        %v344 = vpop.permute.xlu0 %343
        %345 = vrot.lane.b32.xlu0 %v316, 17
        %v346 = vpop.permute.xlu0 %345
        %347 = vrot.lane.b32.xlu0 %v320, 17
        %v348 = vpop.permute.xlu0 %347
        %v349 = vlaneseq
        %v350 = vand.u32 %v349, 127
        %vm351 = vcmp.lt.s32.totalorder %v350, 17
        %v352 = vsel %vm351, %v342, %v346
        %v353 = vsel %vm351, %v344, %v348
        %v354 = vsel %vm351, %v338, %v342
        %v355 = vsel %vm351, %v340, %v344
        %v356 = vsel %vm351, %v334, %v338
        %v357 = vsel %vm351, %v336, %v340
        %v358 = vsel %vm351, %v346, %v334
        %v359 = vsel %vm351, %v348, %v336
        %v360 = vld [vmem:[%s1] sm:$0xff]
        %v361 = vld [vmem:[%s1 + $0x8] sm:$0xff]
        %v362 = vld [vmem:[%s1 + $0x10] sm:$0xff]
        %v363 = vld [vmem:[%s1 + $0x18] sm:$0xff]
        %v364 = vld [vmem:[%s1 + $0x20] sm:$0xff]
        %v365 = vld [vmem:[%s1 + $0x28] sm:$0xff]
        %v366 = vld [vmem:[%s1 + $0x30] sm:$0xff]
        %v367 = vld [vmem:[%s1 + $0x38] sm:$0xff]
        %v368 = vmul.f32 %v358, %v360
        %v369 = vmul.f32 %v356, %v361
        %v370 = vmul.f32 %v354, %v362
        %v371 = vmul.f32 %v352, %v363
        %v372 = vmul.f32 %v359, %v364
        %v373 = vmul.f32 %v357, %v365
        %v374 = vmul.f32 %v355, %v366
        %v375 = vmul.f32 %v353, %v367
        %376 = vst [vmem:[#allocation2] sm:$0xff] %v368
        %377 = vst [vmem:[#allocation2 + $0x8] sm:$0xff] %v369
        %378 = vst [vmem:[#allocation2 + $0x10] sm:$0xff] %v370
        %379 = vst [vmem:[#allocation2 + $0x18] sm:$0xff] %v371
        %380 = vst [vmem:[#allocation2 + $0x20] sm:$0xff] %v372
        %381 = vst [vmem:[#allocation2 + $0x28] sm:$0xff] %v373
        %382 = vst [vmem:[#allocation2 + $0x30] sm:$0xff] %v374
        %383 = vst [vmem:[#allocation2 + $0x38] sm:$0xff] %v375
        %384 = vrot.lane.b32.xlu0 %v313, 16
        %v385 = vpop.permute.xlu0 %384
        %386 = vrot.lane.b32.xlu0 %v317, 16
        %v387 = vpop.permute.xlu0 %386
        %388 = vrot.lane.b32.xlu0 %v314, 16
        %v389 = vpop.permute.xlu0 %388
        %390 = vrot.lane.b32.xlu0 %v318, 16
        %v391 = vpop.permute.xlu0 %390
        %392 = vrot.lane.b32.xlu0 %v315, 16
        %v393 = vpop.permute.xlu0 %392
        %394 = vrot.lane.b32.xlu0 %v319, 16
        %v395 = vpop.permute.xlu0 %394
        %396 = vrot.lane.b32.xlu0 %v316, 16
        %v397 = vpop.permute.xlu0 %396
        %398 = vrot.lane.b32.xlu0 %v320, 16
        %v399 = vpop.permute.xlu0 %398
        %vm400 = vcmp.lt.s32.totalorder %v350, 16
        %v401 = vsel %vm400, %v393, %v397
        %v402 = vsel %vm400, %v395, %v399
        %v403 = vsel %vm400, %v389, %v393
        %v404 = vsel %vm400, %v391, %v395
        %v405 = vsel %vm400, %v385, %v389
        %v406 = vsel %vm400, %v387, %v391
        %v407 = vsel %vm400, %v397, %v385
        %v408 = vsel %vm400, %v399, %v387
        %v409 = vld [vmem:[%s1 + $0x40] sm:$0xff]
        %v410 = vld [vmem:[%s1 + $0x48] sm:$0xff]
        %v411 = vld [vmem:[%s1 + $0x50] sm:$0xff]
        %v412 = vld [vmem:[%s1 + $0x58] sm:$0xff]
        %v413 = vld [vmem:[%s1 + $0x60] sm:$0xff]
        %v414 = vld [vmem:[%s1 + $0x68] sm:$0xff]
        %v415 = vld [vmem:[%s1 + $0x70] sm:$0xff]
        %v416 = vld [vmem:[%s1 + $0x78] sm:$0xff]
        %v417 = vmul.f32 %v407, %v409
        %v418 = vmul.f32 %v405, %v410
        %v419 = vmul.f32 %v403, %v411
        %v420 = vmul.f32 %v401, %v412
        %v421 = vmul.f32 %v408, %v413
        %v422 = vmul.f32 %v406, %v414
        %v423 = vmul.f32 %v404, %v415
        %v424 = vmul.f32 %v402, %v416
        %425 = vst [vmem:[#allocation2 + $0x40] sm:$0xff] %v417
        %426 = vst [vmem:[#allocation2 + $0x48] sm:$0xff] %v418
        %427 = vst [vmem:[#allocation2 + $0x50] sm:$0xff] %v419
        %428 = vst [vmem:[#allocation2 + $0x58] sm:$0xff] %v420
        %429 = vst [vmem:[#allocation2 + $0x60] sm:$0xff] %v421
        %430 = vst [vmem:[#allocation2 + $0x68] sm:$0xff] %v422
        %431 = vst [vmem:[#allocation2 + $0x70] sm:$0xff] %v423
        %432 = vst [vmem:[#allocation2 + $0x78] sm:$0xff] %v424
        %433 = vrot.lane.b32.xlu0 %v313, 15
        %v434 = vpop.permute.xlu0 %433
        %435 = vrot.lane.b32.xlu0 %v317, 15
        %v436 = vpop.permute.xlu0 %435
        %437 = vrot.lane.b32.xlu0 %v314, 15
        %v438 = vpop.permute.xlu0 %437
        %439 = vrot.lane.b32.xlu0 %v318, 15
        %v440 = vpop.permute.xlu0 %439
        %441 = vrot.lane.b32.xlu0 %v315, 15
        %v442 = vpop.permute.xlu0 %441
        %443 = vrot.lane.b32.xlu0 %v319, 15
        %v444 = vpop.permute.xlu0 %443
        %445 = vrot.lane.b32.xlu0 %v316, 15
        %v446 = vpop.permute.xlu0 %445
        %447 = vrot.lane.b32.xlu0 %v320, 15
        %v448 = vpop.permute.xlu0 %447
        %vm449 = vcmp.lt.s32.totalorder %v350, 15
        %v450 = vsel %vm449, %v442, %v446
        %v451 = vsel %vm449, %v444, %v448
        %v452 = vsel %vm449, %v438, %v442
        %v453 = vsel %vm449, %v440, %v444
        %v454 = vsel %vm449, %v434, %v438
        %v455 = vsel %vm449, %v436, %v440
        %v456 = vsel %vm449, %v446, %v434
        %v457 = vsel %vm449, %v448, %v436
        %v458 = vld [vmem:[%s1 + $0x80] sm:$0xff]
        %v459 = vld [vmem:[%s1 + $0x88] sm:$0xff]
        %v460 = vld [vmem:[%s1 + $0x90] sm:$0xff]
        %v461 = vld [vmem:[%s1 + $0x98] sm:$0xff]
        %v462 = vld [vmem:[%s1 + $0xa0] sm:$0xff]
        %v463 = vld [vmem:[%s1 + $0xa8] sm:$0xff]
        %v464 = vld [vmem:[%s1 + $0xb0] sm:$0xff]
        %v465 = vld [vmem:[%s1 + $0xb8] sm:$0xff]
        %v466 = vmul.f32 %v456, %v458
        %v467 = vmul.f32 %v454, %v459
        %v468 = vmul.f32 %v452, %v460
        %v469 = vmul.f32 %v450, %v461
        %v470 = vmul.f32 %v457, %v462
        %v471 = vmul.f32 %v455, %v463
        %v472 = vmul.f32 %v453, %v464
        %v473 = vmul.f32 %v451, %v465
        %474 = vst [vmem:[#allocation2 + $0x80] sm:$0xff] %v466
        %475 = vst [vmem:[#allocation2 + $0x88] sm:$0xff] %v467
        %476 = vst [vmem:[#allocation2 + $0x90] sm:$0xff] %v468
        %477 = vst [vmem:[#allocation2 + $0x98] sm:$0xff] %v469
        %478 = vst [vmem:[#allocation2 + $0xa0] sm:$0xff] %v470
        %479 = vst [vmem:[#allocation2 + $0xa8] sm:$0xff] %v471
        %480 = vst [vmem:[#allocation2 + $0xb0] sm:$0xff] %v472
        %481 = vst [vmem:[#allocation2 + $0xb8] sm:$0xff] %v473
        %482 = vrot.lane.b32.xlu0 %v313, 1
        %v483 = vpop.permute.xlu0 %482
        %484 = vrot.lane.b32.xlu0 %v317, 1
        %v485 = vpop.permute.xlu0 %484
        %486 = vrot.lane.b32.xlu0 %v314, 1
        %v487 = vpop.permute.xlu0 %486
        %488 = vrot.lane.b32.xlu0 %v318, 1
        %v489 = vpop.permute.xlu0 %488
        %490 = vrot.lane.b32.xlu0 %v315, 1
        %v491 = vpop.permute.xlu0 %490
        %492 = vrot.lane.b32.xlu0 %v319, 1
        %v493 = vpop.permute.xlu0 %492
        %494 = vrot.lane.b32.xlu0 %v316, 1
        %v495 = vpop.permute.xlu0 %494
        %496 = vrot.lane.b32.xlu0 %v320, 1
        %v497 = vpop.permute.xlu0 %496
        %vm498 = vcmp.lt.s32.totalorder %v350, 1
        %v499 = vsel %vm498, %v491, %v495
        %v500 = vsel %vm498, %v493, %v497
        %v501 = vsel %vm498, %v487, %v491
        %v502 = vsel %vm498, %v489, %v493
        %v503 = vsel %vm498, %v483, %v487
        %v504 = vsel %vm498, %v485, %v489
        %v505 = vsel %vm498, %v495, %v483
        %v506 = vsel %vm498, %v497, %v485
        %v507 = vld [vmem:[%s1 + $0xc0] sm:$0xff]
        %v508 = vld [vmem:[%s1 + $0xc8] sm:$0xff]
        %v509 = vld [vmem:[%s1 + $0xd0] sm:$0xff]
        %v510 = vld [vmem:[%s1 + $0xd8] sm:$0xff]
        %v511 = vld [vmem:[%s1 + $0xe0] sm:$0xff]
        %v512 = vld [vmem:[%s1 + $0xe8] sm:$0xff]
        %v513 = vld [vmem:[%s1 + $0xf0] sm:$0xff]
        %v514 = vld [vmem:[%s1 + $0xf8] sm:$0xff]
        %v515 = vmul.f32 %v505, %v507
        %v516 = vmul.f32 %v503, %v508
        %v517 = vmul.f32 %v501, %v509
        %v518 = vmul.f32 %v499, %v510
        %v519 = vmul.f32 %v506, %v511
        %v520 = vmul.f32 %v504, %v512
        %v521 = vmul.f32 %v502, %v513
        %v522 = vmul.f32 %v500, %v514
        %523 = vst [vmem:[#allocation2 + $0xc0] sm:$0xff] %v515
        %524 = vst [vmem:[#allocation2 + $0xc8] sm:$0xff] %v516
        %525 = vst [vmem:[#allocation2 + $0xd0] sm:$0xff] %v517
        %526 = vst [vmem:[#allocation2 + $0xd8] sm:$0xff] %v518
        %527 = vst [vmem:[#allocation2 + $0xe0] sm:$0xff] %v519
        %528 = vst [vmem:[#allocation2 + $0xe8] sm:$0xff] %v520
        %529 = vst [vmem:[#allocation2 + $0xf0] sm:$0xff] %v521
        %530 = vst [vmem:[#allocation2 + $0xf8] sm:$0xff] %v522
        %531 = vst [vmem:[#allocation2 + $0x100] sm:$0xff] %v313
        %532 = vst [vmem:[#allocation2 + $0x108] sm:$0xff] %v314
        %533 = vst [vmem:[#allocation2 + $0x110] sm:$0xff] %v315
        %534 = vst [vmem:[#allocation2 + $0x118] sm:$0xff] %v316
        %535 = vst [vmem:[#allocation2 + $0x120] sm:$0xff] %v317
        %536 = vst [vmem:[#allocation2 + $0x128] sm:$0xff] %v318
        %537 = vst [vmem:[#allocation2 + $0x130] sm:$0xff] %v319
        %538 = vst [vmem:[#allocation2 + $0x138] sm:$0xff] %v320
        %539 = vrot.lane.b32.xlu0 %v313, 127
        %v540 = vpop.permute.xlu0 %539
        %541 = vrot.lane.b32.xlu0 %v317, 127
        %v542 = vpop.permute.xlu0 %541
        %543 = vrot.lane.b32.xlu0 %v314, 127
        %v544 = vpop.permute.xlu0 %543
        %545 = vrot.lane.b32.xlu0 %v318, 127
        %v546 = vpop.permute.xlu0 %545
        %547 = vrot.lane.b32.xlu0 %v315, 127
        %v548 = vpop.permute.xlu0 %547
        %549 = vrot.lane.b32.xlu0 %v319, 127
        %v550 = vpop.permute.xlu0 %549
        %551 = vrot.lane.b32.xlu0 %v316, 127
        %v552 = vpop.permute.xlu0 %551
        %553 = vrot.lane.b32.xlu0 %v320, 127
        %v554 = vpop.permute.xlu0 %553
        %vm555 = vcmp.lt.s32.totalorder %v350, 127
        %v556 = vsel %vm555, %v548, %v552
        %v557 = vsel %vm555, %v550, %v554
        %v558 = vsel %vm555, %v544, %v548
        %v559 = vsel %vm555, %v546, %v550
        %v560 = vsel %vm555, %v540, %v544
        %v561 = vsel %vm555, %v542, %v546
        %v562 = vsel %vm555, %v552, %v540
        %v563 = vsel %vm555, %v554, %v542
        %v564 = vld [vmem:[%s1 + $0x140] sm:$0xff]
        %v565 = vld [vmem:[%s1 + $0x148] sm:$0xff]
        %v566 = vld [vmem:[%s1 + $0x150] sm:$0xff]
        %v567 = vld [vmem:[%s1 + $0x158] sm:$0xff]
        %v568 = vld [vmem:[%s1 + $0x160] sm:$0xff]
        %v569 = vld [vmem:[%s1 + $0x168] sm:$0xff]
        %v570 = vld [vmem:[%s1 + $0x170] sm:$0xff]
        %v571 = vld [vmem:[%s1 + $0x178] sm:$0xff]
        %v572 = vmul.f32 %v560, %v564
        %v573 = vmul.f32 %v558, %v565
        %v574 = vmul.f32 %v556, %v566
        %v575 = vmul.f32 %v562, %v567
        %v576 = vmul.f32 %v561, %v568
        %v577 = vmul.f32 %v559, %v569
        %v578 = vmul.f32 %v557, %v570
        %v579 = vmul.f32 %v563, %v571
        %580 = vst [vmem:[#allocation2 + $0x140] sm:$0xff] %v572
        %581 = vst [vmem:[#allocation2 + $0x148] sm:$0xff] %v573
        %582 = vst [vmem:[#allocation2 + $0x150] sm:$0xff] %v574
        %583 = vst [vmem:[#allocation2 + $0x158] sm:$0xff] %v575
        %584 = vst [vmem:[#allocation2 + $0x160] sm:$0xff] %v576
        %585 = vst [vmem:[#allocation2 + $0x168] sm:$0xff] %v577
        %586 = vst [vmem:[#allocation2 + $0x170] sm:$0xff] %v578
        %587 = vst [vmem:[#allocation2 + $0x178] sm:$0xff] %v579
        %588 = vrot.lane.b32.xlu0 %v313, 113
        %v589 = vpop.permute.xlu0 %588
        %590 = vrot.lane.b32.xlu0 %v317, 113
        %v591 = vpop.permute.xlu0 %590
        %592 = vrot.lane.b32.xlu0 %v314, 113
        %v593 = vpop.permute.xlu0 %592
        %594 = vrot.lane.b32.xlu0 %v318, 113
        %v595 = vpop.permute.xlu0 %594
        %596 = vrot.lane.b32.xlu0 %v315, 113
        %v597 = vpop.permute.xlu0 %596
        %598 = vrot.lane.b32.xlu0 %v319, 113
        %v599 = vpop.permute.xlu0 %598
        %600 = vrot.lane.b32.xlu0 %v316, 113
        %v601 = vpop.permute.xlu0 %600
        %602 = vrot.lane.b32.xlu0 %v320, 113
        %v603 = vpop.permute.xlu0 %602
        %vm604 = vcmp.lt.s32.totalorder %v350, 113
        %v605 = vsel %vm604, %v597, %v601
        %v606 = vsel %vm604, %v599, %v603
        %v607 = vsel %vm604, %v593, %v597
        %v608 = vsel %vm604, %v595, %v599
        %v609 = vsel %vm604, %v589, %v593
        %v610 = vsel %vm604, %v591, %v595
        %v611 = vsel %vm604, %v601, %v589
        %v612 = vsel %vm604, %v603, %v591
        %v613 = vld [vmem:[%s1 + $0x180] sm:$0xff]
        %v614 = vld [vmem:[%s1 + $0x188] sm:$0xff]
        %v615 = vld [vmem:[%s1 + $0x190] sm:$0xff]
        %v616 = vld [vmem:[%s1 + $0x198] sm:$0xff]
        %v617 = vld [vmem:[%s1 + $0x1a0] sm:$0xff]
        %v618 = vld [vmem:[%s1 + $0x1a8] sm:$0xff]
        %v619 = vld [vmem:[%s1 + $0x1b0] sm:$0xff]
        %v620 = vld [vmem:[%s1 + $0x1b8] sm:$0xff]
        %v621 = vmul.f32 %v609, %v613
        %v622 = vmul.f32 %v607, %v614
        %v623 = vmul.f32 %v605, %v615
        %v624 = vmul.f32 %v611, %v616
        %v625 = vmul.f32 %v610, %v617
        %v626 = vmul.f32 %v608, %v618
        %v627 = vmul.f32 %v606, %v619
        %v628 = vmul.f32 %v612, %v620
        %629 = vst [vmem:[#allocation2 + $0x180] sm:$0xff] %v621
        %630 = vst [vmem:[#allocation2 + $0x188] sm:$0xff] %v622
        %631 = vst [vmem:[#allocation2 + $0x190] sm:$0xff] %v623
        %632 = vst [vmem:[#allocation2 + $0x198] sm:$0xff] %v624
        %633 = vst [vmem:[#allocation2 + $0x1a0] sm:$0xff] %v625
        %634 = vst [vmem:[#allocation2 + $0x1a8] sm:$0xff] %v626
        %635 = vst [vmem:[#allocation2 + $0x1b0] sm:$0xff] %v627
        %636 = vst [vmem:[#allocation2 + $0x1b8] sm:$0xff] %v628
        %637 = vrot.lane.b32.xlu0 %v313, 112
        %v638 = vpop.permute.xlu0 %637
        %639 = vrot.lane.b32.xlu0 %v317, 112
        %v640 = vpop.permute.xlu0 %639
        %641 = vrot.lane.b32.xlu0 %v314, 112
        %v642 = vpop.permute.xlu0 %641
        %643 = vrot.lane.b32.xlu0 %v318, 112
        %v644 = vpop.permute.xlu0 %643
        %645 = vrot.lane.b32.xlu0 %v315, 112
        %v646 = vpop.permute.xlu0 %645
        %647 = vrot.lane.b32.xlu0 %v319, 112
        %v648 = vpop.permute.xlu0 %647
        %649 = vrot.lane.b32.xlu0 %v316, 112
        %v650 = vpop.permute.xlu0 %649
        %651 = vrot.lane.b32.xlu0 %v320, 112
        %v652 = vpop.permute.xlu0 %651
        %vm653 = vcmp.lt.s32.totalorder %v350, 112
        %v654 = vsel %vm653, %v646, %v650
        %v655 = vsel %vm653, %v648, %v652
        %v656 = vsel %vm653, %v642, %v646
        %v657 = vsel %vm653, %v644, %v648
        %v658 = vsel %vm653, %v638, %v642
        %v659 = vsel %vm653, %v640, %v644
        %v660 = vsel %vm653, %v650, %v638
        %v661 = vsel %vm653, %v652, %v640
        %v662 = vld [vmem:[%s1 + $0x1c0] sm:$0xff]
        %v663 = vld [vmem:[%s1 + $0x1c8] sm:$0xff]
        %v664 = vld [vmem:[%s1 + $0x1d0] sm:$0xff]
        %v665 = vld [vmem:[%s1 + $0x1d8] sm:$0xff]
        %v666 = vld [vmem:[%s1 + $0x1e0] sm:$0xff]
        %v667 = vld [vmem:[%s1 + $0x1e8] sm:$0xff]
        %v668 = vld [vmem:[%s1 + $0x1f0] sm:$0xff]
        %v669 = vld [vmem:[%s1 + $0x1f8] sm:$0xff]
        %v670 = vmul.f32 %v658, %v662
        %v671 = vmul.f32 %v656, %v663
        %v672 = vmul.f32 %v654, %v664
        %v673 = vmul.f32 %v660, %v665
        %v674 = vmul.f32 %v659, %v666
        %v675 = vmul.f32 %v657, %v667
        %v676 = vmul.f32 %v655, %v668
        %v677 = vmul.f32 %v661, %v669
        %678 = vst [vmem:[#allocation2 + $0x1c0] sm:$0xff] %v670
        %679 = vst [vmem:[#allocation2 + $0x1c8] sm:$0xff] %v671
        %680 = vst [vmem:[#allocation2 + $0x1d0] sm:$0xff] %v672
        %681 = vst [vmem:[#allocation2 + $0x1d8] sm:$0xff] %v673
        %682 = vst [vmem:[#allocation2 + $0x1e0] sm:$0xff] %v674
        %683 = vst [vmem:[#allocation2 + $0x1e8] sm:$0xff] %v675
        %684 = vst [vmem:[#allocation2 + $0x1f0] sm:$0xff] %v676
        %685 = vst [vmem:[#allocation2 + $0x1f8] sm:$0xff] %v677
        %686 = vrot.lane.b32.xlu0 %v313, 111
        %v687 = vpop.permute.xlu0 %686
        %688 = vrot.lane.b32.xlu0 %v317, 111
        %v689 = vpop.permute.xlu0 %688
        %690 = vrot.lane.b32.xlu0 %v314, 111
        %v691 = vpop.permute.xlu0 %690
        %692 = vrot.lane.b32.xlu0 %v318, 111
        %v693 = vpop.permute.xlu0 %692
        %694 = vrot.lane.b32.xlu0 %v315, 111
        %v695 = vpop.permute.xlu0 %694
        %696 = vrot.lane.b32.xlu0 %v319, 111
        %v697 = vpop.permute.xlu0 %696
        %698 = vrot.lane.b32.xlu0 %v316, 111
        %v699 = vpop.permute.xlu0 %698
        %700 = vrot.lane.b32.xlu0 %v320, 111
        %v701 = vpop.permute.xlu0 %700
        %vm702 = vcmp.lt.s32.totalorder %v350, 111
        %v703 = vsel %vm702, %v695, %v699
        %v704 = vsel %vm702, %v697, %v701
        %v705 = vsel %vm702, %v691, %v695
        %v706 = vsel %vm702, %v693, %v697
        %v707 = vsel %vm702, %v687, %v691
        %v708 = vsel %vm702, %v689, %v693
        %v709 = vsel %vm702, %v699, %v687
        %v710 = vsel %vm702, %v701, %v689
        %v711 = vld [vmem:[%s1 + $0x200] sm:$0xff]
        %v712 = vld [vmem:[%s1 + $0x208] sm:$0xff]
        %v713 = vld [vmem:[%s1 + $0x210] sm:$0xff]
        %v714 = vld [vmem:[%s1 + $0x218] sm:$0xff]
        %v715 = vld [vmem:[%s1 + $0x220] sm:$0xff]
        %v716 = vld [vmem:[%s1 + $0x228] sm:$0xff]
        %v717 = vld [vmem:[%s1 + $0x230] sm:$0xff]
        %v718 = vld [vmem:[%s1 + $0x238] sm:$0xff]
        %v719 = vmul.f32 %v707, %v711
        %v720 = vmul.f32 %v705, %v712
        %v721 = vmul.f32 %v703, %v713
        %v722 = vmul.f32 %v709, %v714
        %v723 = vmul.f32 %v708, %v715
        %v724 = vmul.f32 %v706, %v716
        %v725 = vmul.f32 %v704, %v717
        %v726 = vmul.f32 %v710, %v718
        %727 = vst [vmem:[#allocation2 + $0x200] sm:$0xff] %v719
        %728 = vst [vmem:[#allocation2 + $0x208] sm:$0xff] %v720
        %729 = vst [vmem:[#allocation2 + $0x210] sm:$0xff] %v721
        %730 = vst [vmem:[#allocation2 + $0x218] sm:$0xff] %v722
        %731 = vst [vmem:[#allocation2 + $0x220] sm:$0xff] %v723
        %732 = vst [vmem:[#allocation2 + $0x228] sm:$0xff] %v724
        %733 = vst [vmem:[#allocation2 + $0x230] sm:$0xff] %v725
        %734 = vst [vmem:[#allocation2 + $0x238] sm:$0xff] %v726
        %v735 = vld [vmem:[#allocation2] sm:$0xff]
        %v736 = vld [vmem:[#allocation2 + $0x8] sm:$0xff]
        %v737 = vld [vmem:[#allocation2 + $0x10] sm:$0xff]
        %v738 = vld [vmem:[#allocation2 + $0x18] sm:$0xff]
        %v739 = vld [vmem:[#allocation2 + $0x20] sm:$0xff]
        %v740 = vld [vmem:[#allocation2 + $0x28] sm:$0xff]
        %v741 = vld [vmem:[#allocation2 + $0x30] sm:$0xff]
        %v742 = vld [vmem:[#allocation2 + $0x38] sm:$0xff]
        %v743 = vld [vmem:[#allocation2 + $0x40] sm:$0xff]
        %v744 = vld [vmem:[#allocation2 + $0x48] sm:$0xff]
        %v745 = vld [vmem:[#allocation2 + $0x50] sm:$0xff]
        %v746 = vld [vmem:[#allocation2 + $0x58] sm:$0xff]
        %v747 = vld [vmem:[#allocation2 + $0x60] sm:$0xff]
        %v748 = vld [vmem:[#allocation2 + $0x68] sm:$0xff]
        %v749 = vld [vmem:[#allocation2 + $0x70] sm:$0xff]
        %v750 = vld [vmem:[#allocation2 + $0x78] sm:$0xff]
        %v751 = vld [vmem:[#allocation2 + $0x80] sm:$0xff]
        %v752 = vld [vmem:[#allocation2 + $0x88] sm:$0xff]
        %v753 = vld [vmem:[#allocation2 + $0x90] sm:$0xff]
        %v754 = vld [vmem:[#allocation2 + $0x98] sm:$0xff]
        %v755 = vld [vmem:[#allocation2 + $0xa0] sm:$0xff]
        %v756 = vld [vmem:[#allocation2 + $0xa8] sm:$0xff]
        %v757 = vld [vmem:[#allocation2 + $0xb0] sm:$0xff]
        %v758 = vld [vmem:[#allocation2 + $0xb8] sm:$0xff]
        %v759 = vld [vmem:[#allocation2 + $0xc0] sm:$0xff]
        %v760 = vld [vmem:[#allocation2 + $0xc8] sm:$0xff]
        %v761 = vld [vmem:[#allocation2 + $0xd0] sm:$0xff]
        %v762 = vld [vmem:[#allocation2 + $0xd8] sm:$0xff]
        %v763 = vld [vmem:[#allocation2 + $0xe0] sm:$0xff]
        %v764 = vld [vmem:[#allocation2 + $0xe8] sm:$0xff]
        %v765 = vld [vmem:[#allocation2 + $0xf0] sm:$0xff]
        %v766 = vld [vmem:[#allocation2 + $0xf8] sm:$0xff]
        %v767 = vld [vmem:[#allocation2 + $0x100] sm:$0xff]
        %v768 = vld [vmem:[#allocation2 + $0x108] sm:$0xff]
        %v769 = vld [vmem:[#allocation2 + $0x110] sm:$0xff]
        %v770 = vld [vmem:[#allocation2 + $0x118] sm:$0xff]
        %v771 = vld [vmem:[#allocation2 + $0x120] sm:$0xff]
        %v772 = vld [vmem:[#allocation2 + $0x128] sm:$0xff]
        %v773 = vld [vmem:[#allocation2 + $0x130] sm:$0xff]
        %v774 = vld [vmem:[#allocation2 + $0x138] sm:$0xff]
        %v775 = vld [vmem:[#allocation2 + $0x140] sm:$0xff]
        %v776 = vld [vmem:[#allocation2 + $0x148] sm:$0xff]
        %v777 = vld [vmem:[#allocation2 + $0x150] sm:$0xff]
        %v778 = vld [vmem:[#allocation2 + $0x158] sm:$0xff]
        %v779 = vld [vmem:[#allocation2 + $0x160] sm:$0xff]
        %v780 = vld [vmem:[#allocation2 + $0x168] sm:$0xff]
        %v781 = vld [vmem:[#allocation2 + $0x170] sm:$0xff]
        %v782 = vld [vmem:[#allocation2 + $0x178] sm:$0xff]
        %v783 = vld [vmem:[#allocation2 + $0x180] sm:$0xff]
        %v784 = vld [vmem:[#allocation2 + $0x188] sm:$0xff]
        %v785 = vld [vmem:[#allocation2 + $0x190] sm:$0xff]
        %v786 = vld [vmem:[#allocation2 + $0x198] sm:$0xff]
        %v787 = vld [vmem:[#allocation2 + $0x1a0] sm:$0xff]
        %v788 = vld [vmem:[#allocation2 + $0x1a8] sm:$0xff]
        %v789 = vld [vmem:[#allocation2 + $0x1b0] sm:$0xff]
        %v790 = vld [vmem:[#allocation2 + $0x1b8] sm:$0xff]
        %v791 = vld [vmem:[#allocation2 + $0x1c0] sm:$0xff]
        %v792 = vld [vmem:[#allocation2 + $0x1c8] sm:$0xff]
        %v793 = vld [vmem:[#allocation2 + $0x1d0] sm:$0xff]
        %v794 = vld [vmem:[#allocation2 + $0x1d8] sm:$0xff]
        %v795 = vld [vmem:[#allocation2 + $0x1e0] sm:$0xff]
        %v796 = vld [vmem:[#allocation2 + $0x1e8] sm:$0xff]
        %v797 = vld [vmem:[#allocation2 + $0x1f0] sm:$0xff]
        %v798 = vld [vmem:[#allocation2 + $0x1f8] sm:$0xff]
        %v799 = vld [vmem:[#allocation2 + $0x200] sm:$0xff]
        %v800 = vld [vmem:[#allocation2 + $0x208] sm:$0xff]
        %v801 = vld [vmem:[#allocation2 + $0x210] sm:$0xff]
        %v802 = vld [vmem:[#allocation2 + $0x218] sm:$0xff]
        %v803 = vld [vmem:[#allocation2 + $0x220] sm:$0xff]
        %v804 = vld [vmem:[#allocation2 + $0x228] sm:$0xff]
        %v805 = vld [vmem:[#allocation2 + $0x230] sm:$0xff]
        %v806 = vld [vmem:[#allocation2 + $0x238] sm:$0xff]
        %v807 = vld [vmem:[%s2] sm:$0xff]
        %v808 = vld [vmem:[%s2 + $0x8] sm:$0xff]
        %v809 = vld [vmem:[%s2 + $0x10] sm:$0xff]
        %v810 = vld [vmem:[%s2 + $0x18] sm:$0xff]
        %812 = vset.pattern.permute.xlu0 0
        %813 = vperm.xlu0 %812, %v807
        %v814 = vpop.permute.xlu0 %813
        %817 = vset.pattern.permute.xlu0 0
        %818 = vperm.xlu0 %817, %v808
        %v819 = vpop.permute.xlu0 %818
        %822 = vset.pattern.permute.xlu0 0
        %823 = vperm.xlu0 %822, %v809
        %v824 = vpop.permute.xlu0 %823
        %827 = vset.pattern.permute.xlu0 0
        %828 = vperm.xlu0 %827, %v810
        %v829 = vpop.permute.xlu0 %828
        %vm831 = vcmask 130048
        %v833 = vsel %vm831, %v322, 0
        %v836 = vsel %vm831, %v324, 0
        %v839 = vsel %vm831, %v326, 0
        %v842 = vsel %vm831, %v328, 0
        %844 = vmatpush.msra.mxu0 %v795
        %845 = vmatpush.msra.mxu0 %v791
        %846 = vmatpush.msra.mxu0 %v787
        %847 = vmatpush.msra.mxu0 %v783
        %848 = vmatpush.msra.mxu0 %v779
        %849 = vmatpush.msra.mxu0 %v775
        %850 = vmatpush.msra.mxu0 %v771
        %851 = vmatpush.msra.mxu0 %v767
        %852 = vmatpush.msra.mxu0 %v763
        %853 = vmatpush.msra.mxu0 %v759
        %854 = vmatpush.msra.mxu0 %v755
        %855 = vmatpush.msra.mxu0 %v751
        %856 = vmatpush.msra.mxu0 %v747
        %857 = vmatpush.msra.mxu0 %v743
        %858 = vmatpush.msra.mxu0 %v739
        %859 = vmatpush.msra.mxu0 %v735
        %860 = vmatmul.f32.gmra.mxu0 %v321
        %v861 = vpop.f32.mrf.mxu0
        %v862 = vadd.f32 %v814, %v861
        %863 = vmatmul.f32.gmra.mxu0 %v323
        %v864 = vpop.f32.mrf.mxu0
        %v865 = vadd.f32 %v819, %v864
        %866 = vmatmul.f32.gmra.mxu0 %v325
        %v867 = vpop.f32.mrf.mxu0
        %v868 = vadd.f32 %v824, %v867
        %869 = vmatmul.f32.gmra.mxu0 %v327
        %v870 = vpop.f32.mrf.mxu0
        %v871 = vadd.f32 %v829, %v870
        %872 = vdwg.mxu0
        %873 = vmatpush.msra.mxu0 0.0
        %874 = vmatpush.msra.mxu0 0.0
        %875 = vmatpush.msra.mxu0 0.0
        %876 = vmatpush.msra.mxu0 0.0
        %877 = vmatpush.msra.mxu0 0.0
        %878 = vmatpush.msra.mxu0 0.0
        %879 = vmatpush.msra.mxu0 0.0
        %880 = vmatpush.msra.mxu0 0.0
        %881 = vmatpush.msra.mxu0 0.0
        %882 = vmatpush.msra.mxu0 0.0
        %883 = vmatpush.msra.mxu0 0.0
        %884 = vmatpush.msra.mxu0 0.0
        %885 = vmatpush.msra.mxu0 0.0
        %886 = vmatpush.msra.mxu0 0.0
        %887 = vmatpush.msra.mxu0 %v803
        %888 = vmatpush.msra.mxu0 %v799
        %889 = vmatmul.f32.gmra.mxu0 %v833
        %v890 = vpop.f32.mrf.mxu0
        %v891 = vadd.f32 %v862, %v890
        %892 = vmatmul.f32.gmra.mxu0 %v836
        %v893 = vpop.f32.mrf.mxu0
        %v894 = vadd.f32 %v865, %v893
        %895 = vmatmul.f32.gmra.mxu0 %v839
        %v896 = vpop.f32.mrf.mxu0
        %v897 = vadd.f32 %v868, %v896
        %898 = vmatmul.f32.gmra.mxu0 %v842
        %v899 = vpop.f32.mrf.mxu0
        %v900 = vadd.f32 %v871, %v899
        %901 = vdwg.mxu0
        %902 = vmatpush.msra.mxu0 %v796
        %903 = vmatpush.msra.mxu0 %v792
        %904 = vmatpush.msra.mxu0 %v788
        %905 = vmatpush.msra.mxu0 %v784
        %906 = vmatpush.msra.mxu0 %v780
        %907 = vmatpush.msra.mxu0 %v776
        %908 = vmatpush.msra.mxu0 %v772
        %909 = vmatpush.msra.mxu0 %v768
        %910 = vmatpush.msra.mxu0 %v764
        %911 = vmatpush.msra.mxu0 %v760
        %912 = vmatpush.msra.mxu0 %v756
        %913 = vmatpush.msra.mxu0 %v752
        %914 = vmatpush.msra.mxu0 %v748
        %915 = vmatpush.msra.mxu0 %v744
        %916 = vmatpush.msra.mxu0 %v740
        %917 = vmatpush.msra.mxu0 %v736
        %918 = vmatmul.f32.gmra.mxu0 %v321
        %v919 = vpop.f32.mrf.mxu0
        %v920 = vadd.f32 %v814, %v919
        %921 = vmatmul.f32.gmra.mxu0 %v323
        %v922 = vpop.f32.mrf.mxu0
        %v923 = vadd.f32 %v819, %v922
        %924 = vmatmul.f32.gmra.mxu0 %v325
        %v925 = vpop.f32.mrf.mxu0
        %v926 = vadd.f32 %v824, %v925
        %927 = vmatmul.f32.gmra.mxu0 %v327
        %v928 = vpop.f32.mrf.mxu0
        %v929 = vadd.f32 %v829, %v928
        %930 = vdwg.mxu0
        %931 = vmatpush.msra.mxu0 0.0
        %932 = vmatpush.msra.mxu0 0.0
        %933 = vmatpush.msra.mxu0 0.0
        %934 = vmatpush.msra.mxu0 0.0
        %935 = vmatpush.msra.mxu0 0.0
        %936 = vmatpush.msra.mxu0 0.0
        %937 = vmatpush.msra.mxu0 0.0
        %938 = vmatpush.msra.mxu0 0.0
        %939 = vmatpush.msra.mxu0 0.0
        %940 = vmatpush.msra.mxu0 0.0
        %941 = vmatpush.msra.mxu0 0.0
        %942 = vmatpush.msra.mxu0 0.0
        %943 = vmatpush.msra.mxu0 0.0
        %944 = vmatpush.msra.mxu0 0.0
        %945 = vmatpush.msra.mxu0 %v804
        %946 = vmatpush.msra.mxu0 %v800
        %947 = vmatmul.f32.gmra.mxu0 %v833
        %v948 = vpop.f32.mrf.mxu0
        %v949 = vadd.f32 %v920, %v948
        %950 = vmatmul.f32.gmra.mxu0 %v836
        %v951 = vpop.f32.mrf.mxu0
        %v952 = vadd.f32 %v923, %v951
        %953 = vmatmul.f32.gmra.mxu0 %v839
        %v954 = vpop.f32.mrf.mxu0
        %v955 = vadd.f32 %v926, %v954
        %956 = vmatmul.f32.gmra.mxu0 %v842
        %v957 = vpop.f32.mrf.mxu0
        %v958 = vadd.f32 %v929, %v957
        %959 = vdwg.mxu0
        %960 = vmatpush.msra.mxu0 %v797
        %961 = vmatpush.msra.mxu0 %v793
        %962 = vmatpush.msra.mxu0 %v789
        %963 = vmatpush.msra.mxu0 %v785
        %964 = vmatpush.msra.mxu0 %v781
        %965 = vmatpush.msra.mxu0 %v777
        %966 = vmatpush.msra.mxu0 %v773
        %967 = vmatpush.msra.mxu0 %v769
        %968 = vmatpush.msra.mxu0 %v765
        %969 = vmatpush.msra.mxu0 %v761
        %970 = vmatpush.msra.mxu0 %v757
        %971 = vmatpush.msra.mxu0 %v753
        %972 = vmatpush.msra.mxu0 %v749
        %973 = vmatpush.msra.mxu0 %v745
        %974 = vmatpush.msra.mxu0 %v741
        %975 = vmatpush.msra.mxu0 %v737
        %976 = vmatmul.f32.gmra.mxu0 %v321
        %v977 = vpop.f32.mrf.mxu0
        %v978 = vadd.f32 %v814, %v977
        %979 = vmatmul.f32.gmra.mxu0 %v323
        %v980 = vpop.f32.mrf.mxu0
        %v981 = vadd.f32 %v819, %v980
        %982 = vmatmul.f32.gmra.mxu0 %v325
        %v983 = vpop.f32.mrf.mxu0
        %v984 = vadd.f32 %v824, %v983
        %985 = vmatmul.f32.gmra.mxu0 %v327
        %v986 = vpop.f32.mrf.mxu0
        %v987 = vadd.f32 %v829, %v986
        %988 = vdwg.mxu0
        %989 = vmatpush.msra.mxu0 0.0
        %990 = vmatpush.msra.mxu0 0.0
        %991 = vmatpush.msra.mxu0 0.0
        %992 = vmatpush.msra.mxu0 0.0
        %993 = vmatpush.msra.mxu0 0.0
        %994 = vmatpush.msra.mxu0 0.0
        %995 = vmatpush.msra.mxu0 0.0
        %996 = vmatpush.msra.mxu0 0.0
        %997 = vmatpush.msra.mxu0 0.0
        %998 = vmatpush.msra.mxu0 0.0
        %999 = vmatpush.msra.mxu0 0.0
        %1000 = vmatpush.msra.mxu0 0.0
        %1001 = vmatpush.msra.mxu0 0.0
        %1002 = vmatpush.msra.mxu0 0.0
        %1003 = vmatpush.msra.mxu0 %v805
        %1004 = vmatpush.msra.mxu0 %v801
        %1005 = vmatmul.f32.gmra.mxu0 %v833
        %v1006 = vpop.f32.mrf.mxu0
        %v1007 = vadd.f32 %v978, %v1006
        %1008 = vmatmul.f32.gmra.mxu0 %v836
        %v1009 = vpop.f32.mrf.mxu0
        %v1010 = vadd.f32 %v981, %v1009
        %1011 = vmatmul.f32.gmra.mxu0 %v839
        %v1012 = vpop.f32.mrf.mxu0
        %v1013 = vadd.f32 %v984, %v1012
        %1014 = vmatmul.f32.gmra.mxu0 %v842
        %v1015 = vpop.f32.mrf.mxu0
        %v1016 = vadd.f32 %v987, %v1015
        %1017 = vdwg.mxu0
        %1018 = vmatpush.msra.mxu0 %v798
        %1019 = vmatpush.msra.mxu0 %v794
        %1020 = vmatpush.msra.mxu0 %v790
        %1021 = vmatpush.msra.mxu0 %v786
        %1022 = vmatpush.msra.mxu0 %v782
        %1023 = vmatpush.msra.mxu0 %v778
        %1024 = vmatpush.msra.mxu0 %v774
        %1025 = vmatpush.msra.mxu0 %v770
        %1026 = vmatpush.msra.mxu0 %v766
        %1027 = vmatpush.msra.mxu0 %v762
        %1028 = vmatpush.msra.mxu0 %v758
        %1029 = vmatpush.msra.mxu0 %v754
        %1030 = vmatpush.msra.mxu0 %v750
        %1031 = vmatpush.msra.mxu0 %v746
        %1032 = vmatpush.msra.mxu0 %v742
        %1033 = vmatpush.msra.mxu0 %v738
        %1034 = vmatmul.f32.gmra.mxu0 %v321
        %v1035 = vpop.f32.mrf.mxu0
        %v1036 = vadd.f32 %v814, %v1035
        %1037 = vmatmul.f32.gmra.mxu0 %v323
        %v1038 = vpop.f32.mrf.mxu0
        %v1039 = vadd.f32 %v819, %v1038
        %1040 = vmatmul.f32.gmra.mxu0 %v325
        %v1041 = vpop.f32.mrf.mxu0
        %v1042 = vadd.f32 %v824, %v1041
        %1043 = vmatmul.f32.gmra.mxu0 %v327
        %v1044 = vpop.f32.mrf.mxu0
        %v1045 = vadd.f32 %v829, %v1044
        %1046 = vdwg.mxu0
        %1047 = vmatpush.msra.mxu0 0.0
        %1048 = vmatpush.msra.mxu0 0.0
        %1049 = vmatpush.msra.mxu0 0.0
        %1050 = vmatpush.msra.mxu0 0.0
        %1051 = vmatpush.msra.mxu0 0.0
        %1052 = vmatpush.msra.mxu0 0.0
        %1053 = vmatpush.msra.mxu0 0.0
        %1054 = vmatpush.msra.mxu0 0.0
        %1055 = vmatpush.msra.mxu0 0.0
        %1056 = vmatpush.msra.mxu0 0.0
        %1057 = vmatpush.msra.mxu0 0.0
        %1058 = vmatpush.msra.mxu0 0.0
        %1059 = vmatpush.msra.mxu0 0.0
        %1060 = vmatpush.msra.mxu0 0.0
        %1061 = vmatpush.msra.mxu0 %v806
        %1062 = vmatpush.msra.mxu0 %v802
        %1063 = vmatmul.f32.gmra.mxu0 %v833
        %v1064 = vpop.f32.mrf.mxu0
        %v1065 = vadd.f32 %v1036, %v1064
        %1066 = vmatmul.f32.gmra.mxu0 %v836
        %v1067 = vpop.f32.mrf.mxu0
        %v1068 = vadd.f32 %v1039, %v1067
        %1069 = vmatmul.f32.gmra.mxu0 %v839
        %v1070 = vpop.f32.mrf.mxu0
        %v1071 = vadd.f32 %v1042, %v1070
        %1072 = vmatmul.f32.gmra.mxu0 %v842
        %v1073 = vpop.f32.mrf.mxu0
        %v1074 = vadd.f32 %v1045, %v1073
        %1075 = vdwg.mxu0
        %v1076 = vmax.f32 %v891, 0.0
        %v1077 = vmax.f32 %v949, 0.0
        %v1078 = vmax.f32 %v1007, 0.0
        %v1079 = vmax.f32 %v1065, 0.0
        %v1080 = vmax.f32 %v894, 0.0
        %v1081 = vmax.f32 %v952, 0.0
        %v1082 = vmax.f32 %v1010, 0.0
        %v1083 = vmax.f32 %v1068, 0.0
        %1084 = vrot.lane.b32.xlu0 %v1076, 17
        %v1085 = vpop.permute.xlu0 %1084
        %1086 = vrot.lane.b32.xlu0 %v1080, 17
        %v1087 = vpop.permute.xlu0 %1086
        %1088 = vrot.lane.b32.xlu0 %v1077, 17
        %v1089 = vpop.permute.xlu0 %1088
        %1090 = vrot.lane.b32.xlu0 %v1081, 17
        %v1091 = vpop.permute.xlu0 %1090
        %1092 = vrot.lane.b32.xlu0 %v1078, 17
        %v1093 = vpop.permute.xlu0 %1092
        %1094 = vrot.lane.b32.xlu0 %v1082, 17
        %v1095 = vpop.permute.xlu0 %1094
        %1096 = vrot.lane.b32.xlu0 %v1079, 17
        %v1097 = vpop.permute.xlu0 %1096
        %1098 = vrot.lane.b32.xlu0 %v1083, 17
        %v1099 = vpop.permute.xlu0 %1098
        %v1100 = vsel %vm351, %v1093, %v1097
        %v1101 = vsel %vm351, %v1095, %v1099
        %v1102 = vsel %vm351, %v1089, %v1093
        %v1103 = vsel %vm351, %v1091, %v1095
        %v1104 = vsel %vm351, %v1085, %v1089
        %v1105 = vsel %vm351, %v1087, %v1091
        %v1106 = vsel %vm351, %v1097, %v1085
        %v1107 = vsel %vm351, %v1099, %v1087
        %v1108 = vld [vmem:[%s1] sm:$0xff]
        %v1109 = vld [vmem:[%s1 + $0x8] sm:$0xff]
        %v1110 = vld [vmem:[%s1 + $0x10] sm:$0xff]
        %v1111 = vld [vmem:[%s1 + $0x18] sm:$0xff]
        %v1112 = vld [vmem:[%s1 + $0x20] sm:$0xff]
        %v1113 = vld [vmem:[%s1 + $0x28] sm:$0xff]
        %v1114 = vld [vmem:[%s1 + $0x30] sm:$0xff]
        %v1115 = vld [vmem:[%s1 + $0x38] sm:$0xff]
        %v1116 = vmul.f32 %v1106, %v1108
        %v1117 = vmul.f32 %v1104, %v1109
        %v1118 = vmul.f32 %v1102, %v1110
        %v1119 = vmul.f32 %v1100, %v1111
        %v1120 = vmul.f32 %v1107, %v1112
        %v1121 = vmul.f32 %v1105, %v1113
        %v1122 = vmul.f32 %v1103, %v1114
        %v1123 = vmul.f32 %v1101, %v1115
        %1124 = vst [vmem:[#allocation2] sm:$0xff] %v1116
        %1125 = vst [vmem:[#allocation2 + $0x8] sm:$0xff] %v1117
        %1126 = vst [vmem:[#allocation2 + $0x10] sm:$0xff] %v1118
        %1127 = vst [vmem:[#allocation2 + $0x18] sm:$0xff] %v1119
        %1128 = vst [vmem:[#allocation2 + $0x20] sm:$0xff] %v1120
        %1129 = vst [vmem:[#allocation2 + $0x28] sm:$0xff] %v1121
        %1130 = vst [vmem:[#allocation2 + $0x30] sm:$0xff] %v1122
        %1131 = vst [vmem:[#allocation2 + $0x38] sm:$0xff] %v1123
        %1132 = vrot.lane.b32.xlu0 %v1076, 16
        %v1133 = vpop.permute.xlu0 %1132
        %1134 = vrot.lane.b32.xlu0 %v1080, 16
        %v1135 = vpop.permute.xlu0 %1134
        %1136 = vrot.lane.b32.xlu0 %v1077, 16
        %v1137 = vpop.permute.xlu0 %1136
        %1138 = vrot.lane.b32.xlu0 %v1081, 16
        %v1139 = vpop.permute.xlu0 %1138
        %1140 = vrot.lane.b32.xlu0 %v1078, 16
        %v1141 = vpop.permute.xlu0 %1140
        %1142 = vrot.lane.b32.xlu0 %v1082, 16
        %v1143 = vpop.permute.xlu0 %1142
        %1144 = vrot.lane.b32.xlu0 %v1079, 16
        %v1145 = vpop.permute.xlu0 %1144
        %1146 = vrot.lane.b32.xlu0 %v1083, 16
        %v1147 = vpop.permute.xlu0 %1146
        %v1148 = vsel %vm400, %v1141, %v1145
        %v1149 = vsel %vm400, %v1143, %v1147
        %v1150 = vsel %vm400, %v1137, %v1141
        %v1151 = vsel %vm400, %v1139, %v1143
        %v1152 = vsel %vm400, %v1133, %v1137
        %v1153 = vsel %vm400, %v1135, %v1139
        %v1154 = vsel %vm400, %v1145, %v1133
        %v1155 = vsel %vm400, %v1147, %v1135
        %v1156 = vld [vmem:[%s1 + $0x40] sm:$0xff]
        %v1157 = vld [vmem:[%s1 + $0x48] sm:$0xff]
        %v1158 = vld [vmem:[%s1 + $0x50] sm:$0xff]
        %v1159 = vld [vmem:[%s1 + $0x58] sm:$0xff]
        %v1160 = vld [vmem:[%s1 + $0x60] sm:$0xff]
        %v1161 = vld [vmem:[%s1 + $0x68] sm:$0xff]
        %v1162 = vld [vmem:[%s1 + $0x70] sm:$0xff]
        %v1163 = vld [vmem:[%s1 + $0x78] sm:$0xff]
        %v1164 = vmul.f32 %v1154, %v1156
        %v1165 = vmul.f32 %v1152, %v1157
        %v1166 = vmul.f32 %v1150, %v1158
        %v1167 = vmul.f32 %v1148, %v1159
        %v1168 = vmul.f32 %v1155, %v1160
        %v1169 = vmul.f32 %v1153, %v1161
        %v1170 = vmul.f32 %v1151, %v1162
        %v1171 = vmul.f32 %v1149, %v1163
        %1172 = vst [vmem:[#allocation2 + $0x40] sm:$0xff] %v1164
        %1173 = vst [vmem:[#allocation2 + $0x48] sm:$0xff] %v1165
        %1174 = vst [vmem:[#allocation2 + $0x50] sm:$0xff] %v1166
        %1175 = vst [vmem:[#allocation2 + $0x58] sm:$0xff] %v1167
        %1176 = vst [vmem:[#allocation2 + $0x60] sm:$0xff] %v1168
        %1177 = vst [vmem:[#allocation2 + $0x68] sm:$0xff] %v1169
        %1178 = vst [vmem:[#allocation2 + $0x70] sm:$0xff] %v1170
        %1179 = vst [vmem:[#allocation2 + $0x78] sm:$0xff] %v1171
        %1180 = vrot.lane.b32.xlu0 %v1076, 15
        %v1181 = vpop.permute.xlu0 %1180
        %1182 = vrot.lane.b32.xlu0 %v1080, 15
        %v1183 = vpop.permute.xlu0 %1182
        %1184 = vrot.lane.b32.xlu0 %v1077, 15
        %v1185 = vpop.permute.xlu0 %1184
        %1186 = vrot.lane.b32.xlu0 %v1081, 15
        %v1187 = vpop.permute.xlu0 %1186
        %1188 = vrot.lane.b32.xlu0 %v1078, 15
        %v1189 = vpop.permute.xlu0 %1188
        %1190 = vrot.lane.b32.xlu0 %v1082, 15
        %v1191 = vpop.permute.xlu0 %1190
        %1192 = vrot.lane.b32.xlu0 %v1079, 15
        %v1193 = vpop.permute.xlu0 %1192
        %1194 = vrot.lane.b32.xlu0 %v1083, 15
        %v1195 = vpop.permute.xlu0 %1194
        %v1196 = vsel %vm449, %v1189, %v1193
        %v1197 = vsel %vm449, %v1191, %v1195
        %v1198 = vsel %vm449, %v1185, %v1189
        %v1199 = vsel %vm449, %v1187, %v1191
        %v1200 = vsel %vm449, %v1181, %v1185
        %v1201 = vsel %vm449, %v1183, %v1187
        %v1202 = vsel %vm449, %v1193, %v1181
        %v1203 = vsel %vm449, %v1195, %v1183
        %v1204 = vld [vmem:[%s1 + $0x80] sm:$0xff]
        %v1205 = vld [vmem:[%s1 + $0x88] sm:$0xff]
        %v1206 = vld [vmem:[%s1 + $0x90] sm:$0xff]
        %v1207 = vld [vmem:[%s1 + $0x98] sm:$0xff]
        %v1208 = vld [vmem:[%s1 + $0xa0] sm:$0xff]
        %v1209 = vld [vmem:[%s1 + $0xa8] sm:$0xff]
        %v1210 = vld [vmem:[%s1 + $0xb0] sm:$0xff]
        %v1211 = vld [vmem:[%s1 + $0xb8] sm:$0xff]
        %v1212 = vmul.f32 %v1202, %v1204
        %v1213 = vmul.f32 %v1200, %v1205
        %v1214 = vmul.f32 %v1198, %v1206
        %v1215 = vmul.f32 %v1196, %v1207
        %v1216 = vmul.f32 %v1203, %v1208
        %v1217 = vmul.f32 %v1201, %v1209
        %v1218 = vmul.f32 %v1199, %v1210
        %v1219 = vmul.f32 %v1197, %v1211
        %1220 = vst [vmem:[#allocation2 + $0x80] sm:$0xff] %v1212
        %1221 = vst [vmem:[#allocation2 + $0x88] sm:$0xff] %v1213
        %1222 = vst [vmem:[#allocation2 + $0x90] sm:$0xff] %v1214
        %1223 = vst [vmem:[#allocation2 + $0x98] sm:$0xff] %v1215
        %1224 = vst [vmem:[#allocation2 + $0xa0] sm:$0xff] %v1216
        %1225 = vst [vmem:[#allocation2 + $0xa8] sm:$0xff] %v1217
        %1226 = vst [vmem:[#allocation2 + $0xb0] sm:$0xff] %v1218
        %1227 = vst [vmem:[#allocation2 + $0xb8] sm:$0xff] %v1219
        %1228 = vrot.lane.b32.xlu0 %v1076, 1
        %v1229 = vpop.permute.xlu0 %1228
        %1230 = vrot.lane.b32.xlu0 %v1080, 1
        %v1231 = vpop.permute.xlu0 %1230
        %1232 = vrot.lane.b32.xlu0 %v1077, 1
        %v1233 = vpop.permute.xlu0 %1232
        %1234 = vrot.lane.b32.xlu0 %v1081, 1
        %v1235 = vpop.permute.xlu0 %1234
        %1236 = vrot.lane.b32.xlu0 %v1078, 1
        %v1237 = vpop.permute.xlu0 %1236
        %1238 = vrot.lane.b32.xlu0 %v1082, 1
        %v1239 = vpop.permute.xlu0 %1238
        %1240 = vrot.lane.b32.xlu0 %v1079, 1
        %v1241 = vpop.permute.xlu0 %1240
        %1242 = vrot.lane.b32.xlu0 %v1083, 1
        %v1243 = vpop.permute.xlu0 %1242
        %v1244 = vsel %vm498, %v1237, %v1241
        %v1245 = vsel %vm498, %v1239, %v1243
        %v1246 = vsel %vm498, %v1233, %v1237
        %v1247 = vsel %vm498, %v1235, %v1239
        %v1248 = vsel %vm498, %v1229, %v1233
        %v1249 = vsel %vm498, %v1231, %v1235
        %v1250 = vsel %vm498, %v1241, %v1229
        %v1251 = vsel %vm498, %v1243, %v1231
        %v1252 = vld [vmem:[%s1 + $0xc0] sm:$0xff]
        %v1253 = vld [vmem:[%s1 + $0xc8] sm:$0xff]
        %v1254 = vld [vmem:[%s1 + $0xd0] sm:$0xff]
        %v1255 = vld [vmem:[%s1 + $0xd8] sm:$0xff]
        %v1256 = vld [vmem:[%s1 + $0xe0] sm:$0xff]
        %v1257 = vld [vmem:[%s1 + $0xe8] sm:$0xff]
        %v1258 = vld [vmem:[%s1 + $0xf0] sm:$0xff]
        %v1259 = vld [vmem:[%s1 + $0xf8] sm:$0xff]
        %v1260 = vmul.f32 %v1250, %v1252
        %v1261 = vmul.f32 %v1248, %v1253
        %v1262 = vmul.f32 %v1246, %v1254
        %v1263 = vmul.f32 %v1244, %v1255
        %v1264 = vmul.f32 %v1251, %v1256
        %v1265 = vmul.f32 %v1249, %v1257
        %v1266 = vmul.f32 %v1247, %v1258
        %v1267 = vmul.f32 %v1245, %v1259
        %1268 = vst [vmem:[#allocation2 + $0xc0] sm:$0xff] %v1260
        %1269 = vst [vmem:[#allocation2 + $0xc8] sm:$0xff] %v1261
        %1270 = vst [vmem:[#allocation2 + $0xd0] sm:$0xff] %v1262
        %1271 = vst [vmem:[#allocation2 + $0xd8] sm:$0xff] %v1263
        %1272 = vst [vmem:[#allocation2 + $0xe0] sm:$0xff] %v1264
        %1273 = vst [vmem:[#allocation2 + $0xe8] sm:$0xff] %v1265
        %1274 = vst [vmem:[#allocation2 + $0xf0] sm:$0xff] %v1266
        %1275 = vst [vmem:[#allocation2 + $0xf8] sm:$0xff] %v1267
        %1276 = vst [vmem:[#allocation2 + $0x100] sm:$0xff] %v1076
        %1277 = vst [vmem:[#allocation2 + $0x108] sm:$0xff] %v1077
        %1278 = vst [vmem:[#allocation2 + $0x110] sm:$0xff] %v1078
        %1279 = vst [vmem:[#allocation2 + $0x118] sm:$0xff] %v1079
        %1280 = vst [vmem:[#allocation2 + $0x120] sm:$0xff] %v1080
        %1281 = vst [vmem:[#allocation2 + $0x128] sm:$0xff] %v1081
        %1282 = vst [vmem:[#allocation2 + $0x130] sm:$0xff] %v1082
        %1283 = vst [vmem:[#allocation2 + $0x138] sm:$0xff] %v1083
        %1284 = vrot.lane.b32.xlu0 %v1076, 127
        %v1285 = vpop.permute.xlu0 %1284
        %1286 = vrot.lane.b32.xlu0 %v1080, 127
        %v1287 = vpop.permute.xlu0 %1286
        %1288 = vrot.lane.b32.xlu0 %v1077, 127
        %v1289 = vpop.permute.xlu0 %1288
        %1290 = vrot.lane.b32.xlu0 %v1081, 127
        %v1291 = vpop.permute.xlu0 %1290
        %1292 = vrot.lane.b32.xlu0 %v1078, 127
        %v1293 = vpop.permute.xlu0 %1292
        %1294 = vrot.lane.b32.xlu0 %v1082, 127
        %v1295 = vpop.permute.xlu0 %1294
        %1296 = vrot.lane.b32.xlu0 %v1079, 127
        %v1297 = vpop.permute.xlu0 %1296
        %1298 = vrot.lane.b32.xlu0 %v1083, 127
        %v1299 = vpop.permute.xlu0 %1298
        %v1300 = vsel %vm555, %v1293, %v1297
        %v1301 = vsel %vm555, %v1295, %v1299
        %v1302 = vsel %vm555, %v1289, %v1293
        %v1303 = vsel %vm555, %v1291, %v1295
        %v1304 = vsel %vm555, %v1285, %v1289
        %v1305 = vsel %vm555, %v1287, %v1291
        %v1306 = vsel %vm555, %v1297, %v1285
        %v1307 = vsel %vm555, %v1299, %v1287
        %v1308 = vld [vmem:[%s1 + $0x140] sm:$0xff]
        %v1309 = vld [vmem:[%s1 + $0x148] sm:$0xff]
        %v1310 = vld [vmem:[%s1 + $0x150] sm:$0xff]
        %v1311 = vld [vmem:[%s1 + $0x158] sm:$0xff]
        %v1312 = vld [vmem:[%s1 + $0x160] sm:$0xff]
        %v1313 = vld [vmem:[%s1 + $0x168] sm:$0xff]
        %v1314 = vld [vmem:[%s1 + $0x170] sm:$0xff]
        %v1315 = vld [vmem:[%s1 + $0x178] sm:$0xff]
        %v1316 = vmul.f32 %v1304, %v1308
        %v1317 = vmul.f32 %v1302, %v1309
        %v1318 = vmul.f32 %v1300, %v1310
        %v1319 = vmul.f32 %v1306, %v1311
        %v1320 = vmul.f32 %v1305, %v1312
        %v1321 = vmul.f32 %v1303, %v1313
        %v1322 = vmul.f32 %v1301, %v1314
        %v1323 = vmul.f32 %v1307, %v1315
        %1324 = vst [vmem:[#allocation2 + $0x140] sm:$0xff] %v1316
        %1325 = vst [vmem:[#allocation2 + $0x148] sm:$0xff] %v1317
        %1326 = vst [vmem:[#allocation2 + $0x150] sm:$0xff] %v1318
        %1327 = vst [vmem:[#allocation2 + $0x158] sm:$0xff] %v1319
        %1328 = vst [vmem:[#allocation2 + $0x160] sm:$0xff] %v1320
        %1329 = vst [vmem:[#allocation2 + $0x168] sm:$0xff] %v1321
        %1330 = vst [vmem:[#allocation2 + $0x170] sm:$0xff] %v1322
        %1331 = vst [vmem:[#allocation2 + $0x178] sm:$0xff] %v1323
        %1332 = vrot.lane.b32.xlu0 %v1076, 113
        %v1333 = vpop.permute.xlu0 %1332
        %1334 = vrot.lane.b32.xlu0 %v1080, 113
        %v1335 = vpop.permute.xlu0 %1334
        %1336 = vrot.lane.b32.xlu0 %v1077, 113
        %v1337 = vpop.permute.xlu0 %1336
        %1338 = vrot.lane.b32.xlu0 %v1081, 113
        %v1339 = vpop.permute.xlu0 %1338
        %1340 = vrot.lane.b32.xlu0 %v1078, 113
        %v1341 = vpop.permute.xlu0 %1340
        %1342 = vrot.lane.b32.xlu0 %v1082, 113
        %v1343 = vpop.permute.xlu0 %1342
        %1344 = vrot.lane.b32.xlu0 %v1079, 113
        %v1345 = vpop.permute.xlu0 %1344
        %1346 = vrot.lane.b32.xlu0 %v1083, 113
        %v1347 = vpop.permute.xlu0 %1346
        %v1348 = vsel %vm604, %v1341, %v1345
        %v1349 = vsel %vm604, %v1343, %v1347
        %v1350 = vsel %vm604, %v1337, %v1341
        %v1351 = vsel %vm604, %v1339, %v1343
        %v1352 = vsel %vm604, %v1333, %v1337
        %v1353 = vsel %vm604, %v1335, %v1339
        %v1354 = vsel %vm604, %v1345, %v1333
        %v1355 = vsel %vm604, %v1347, %v1335
        %v1356 = vld [vmem:[%s1 + $0x180] sm:$0xff]
        %v1357 = vld [vmem:[%s1 + $0x188] sm:$0xff]
        %v1358 = vld [vmem:[%s1 + $0x190] sm:$0xff]
        %v1359 = vld [vmem:[%s1 + $0x198] sm:$0xff]
        %v1360 = vld [vmem:[%s1 + $0x1a0] sm:$0xff]
        %v1361 = vld [vmem:[%s1 + $0x1a8] sm:$0xff]
        %v1362 = vld [vmem:[%s1 + $0x1b0] sm:$0xff]
        %v1363 = vld [vmem:[%s1 + $0x1b8] sm:$0xff]
        %v1364 = vmul.f32 %v1352, %v1356
        %v1365 = vmul.f32 %v1350, %v1357
        %v1366 = vmul.f32 %v1348, %v1358
        %v1367 = vmul.f32 %v1354, %v1359
        %v1368 = vmul.f32 %v1353, %v1360
        %v1369 = vmul.f32 %v1351, %v1361
        %v1370 = vmul.f32 %v1349, %v1362
        %v1371 = vmul.f32 %v1355, %v1363
        %1372 = vst [vmem:[#allocation2 + $0x180] sm:$0xff] %v1364
        %1373 = vst [vmem:[#allocation2 + $0x188] sm:$0xff] %v1365
        %1374 = vst [vmem:[#allocation2 + $0x190] sm:$0xff] %v1366
        %1375 = vst [vmem:[#allocation2 + $0x198] sm:$0xff] %v1367
        %1376 = vst [vmem:[#allocation2 + $0x1a0] sm:$0xff] %v1368
        %1377 = vst [vmem:[#allocation2 + $0x1a8] sm:$0xff] %v1369
        %1378 = vst [vmem:[#allocation2 + $0x1b0] sm:$0xff] %v1370
        %1379 = vst [vmem:[#allocation2 + $0x1b8] sm:$0xff] %v1371
        %1380 = vrot.lane.b32.xlu0 %v1076, 112
        %v1381 = vpop.permute.xlu0 %1380
        %1382 = vrot.lane.b32.xlu0 %v1080, 112
        %v1383 = vpop.permute.xlu0 %1382
        %1384 = vrot.lane.b32.xlu0 %v1077, 112
        %v1385 = vpop.permute.xlu0 %1384
        %1386 = vrot.lane.b32.xlu0 %v1081, 112
        %v1387 = vpop.permute.xlu0 %1386
        %1388 = vrot.lane.b32.xlu0 %v1078, 112
        %v1389 = vpop.permute.xlu0 %1388
        %1390 = vrot.lane.b32.xlu0 %v1082, 112
        %v1391 = vpop.permute.xlu0 %1390
        %1392 = vrot.lane.b32.xlu0 %v1079, 112
        %v1393 = vpop.permute.xlu0 %1392
        %1394 = vrot.lane.b32.xlu0 %v1083, 112
        %v1395 = vpop.permute.xlu0 %1394
        %v1396 = vsel %vm653, %v1389, %v1393
        %v1397 = vsel %vm653, %v1391, %v1395
        %v1398 = vsel %vm653, %v1385, %v1389
        %v1399 = vsel %vm653, %v1387, %v1391
        %v1400 = vsel %vm653, %v1381, %v1385
        %v1401 = vsel %vm653, %v1383, %v1387
        %v1402 = vsel %vm653, %v1393, %v1381
        %v1403 = vsel %vm653, %v1395, %v1383
        %v1404 = vld [vmem:[%s1 + $0x1c0] sm:$0xff]
        %v1405 = vld [vmem:[%s1 + $0x1c8] sm:$0xff]
        %v1406 = vld [vmem:[%s1 + $0x1d0] sm:$0xff]
        %v1407 = vld [vmem:[%s1 + $0x1d8] sm:$0xff]
        %v1408 = vld [vmem:[%s1 + $0x1e0] sm:$0xff]
        %v1409 = vld [vmem:[%s1 + $0x1e8] sm:$0xff]
        %v1410 = vld [vmem:[%s1 + $0x1f0] sm:$0xff]
        %v1411 = vld [vmem:[%s1 + $0x1f8] sm:$0xff]
        %v1412 = vmul.f32 %v1400, %v1404
        %v1413 = vmul.f32 %v1398, %v1405
        %v1414 = vmul.f32 %v1396, %v1406
        %v1415 = vmul.f32 %v1402, %v1407
        %v1416 = vmul.f32 %v1401, %v1408
        %v1417 = vmul.f32 %v1399, %v1409
        %v1418 = vmul.f32 %v1397, %v1410
        %v1419 = vmul.f32 %v1403, %v1411
        %1420 = vst [vmem:[#allocation2 + $0x1c0] sm:$0xff] %v1412
        %1421 = vst [vmem:[#allocation2 + $0x1c8] sm:$0xff] %v1413
        %1422 = vst [vmem:[#allocation2 + $0x1d0] sm:$0xff] %v1414
        %1423 = vst [vmem:[#allocation2 + $0x1d8] sm:$0xff] %v1415
        %1424 = vst [vmem:[#allocation2 + $0x1e0] sm:$0xff] %v1416
        %1425 = vst [vmem:[#allocation2 + $0x1e8] sm:$0xff] %v1417
        %1426 = vst [vmem:[#allocation2 + $0x1f0] sm:$0xff] %v1418
        %1427 = vst [vmem:[#allocation2 + $0x1f8] sm:$0xff] %v1419
        %1428 = vrot.lane.b32.xlu0 %v1076, 111
        %v1429 = vpop.permute.xlu0 %1428
        %1430 = vrot.lane.b32.xlu0 %v1080, 111
        %v1431 = vpop.permute.xlu0 %1430
        %1432 = vrot.lane.b32.xlu0 %v1077, 111
        %v1433 = vpop.permute.xlu0 %1432
        %1434 = vrot.lane.b32.xlu0 %v1081, 111
        %v1435 = vpop.permute.xlu0 %1434
        %1436 = vrot.lane.b32.xlu0 %v1078, 111
        %v1437 = vpop.permute.xlu0 %1436
        %1438 = vrot.lane.b32.xlu0 %v1082, 111
        %v1439 = vpop.permute.xlu0 %1438
        %1440 = vrot.lane.b32.xlu0 %v1079, 111
        %v1441 = vpop.permute.xlu0 %1440
        %1442 = vrot.lane.b32.xlu0 %v1083, 111
        %v1443 = vpop.permute.xlu0 %1442
        %v1444 = vsel %vm702, %v1437, %v1441
        %v1445 = vsel %vm702, %v1439, %v1443
        %v1446 = vsel %vm702, %v1433, %v1437
        %v1447 = vsel %vm702, %v1435, %v1439
        %v1448 = vsel %vm702, %v1429, %v1433
        %v1449 = vsel %vm702, %v1431, %v1435
        %v1450 = vsel %vm702, %v1441, %v1429
        %v1451 = vsel %vm702, %v1443, %v1431
        %v1452 = vld [vmem:[%s1 + $0x200] sm:$0xff]
        %v1453 = vld [vmem:[%s1 + $0x208] sm:$0xff]
        %v1454 = vld [vmem:[%s1 + $0x210] sm:$0xff]
        %v1455 = vld [vmem:[%s1 + $0x218] sm:$0xff]
        %v1456 = vld [vmem:[%s1 + $0x220] sm:$0xff]
        %v1457 = vld [vmem:[%s1 + $0x228] sm:$0xff]
        %v1458 = vld [vmem:[%s1 + $0x230] sm:$0xff]
        %v1459 = vld [vmem:[%s1 + $0x238] sm:$0xff]
        %v1460 = vmul.f32 %v1448, %v1452
        %v1461 = vmul.f32 %v1446, %v1453
        %v1462 = vmul.f32 %v1444, %v1454
        %v1463 = vmul.f32 %v1450, %v1455
        %v1464 = vmul.f32 %v1449, %v1456
        %v1465 = vmul.f32 %v1447, %v1457
        %v1466 = vmul.f32 %v1445, %v1458
        %v1467 = vmul.f32 %v1451, %v1459
        %1468 = vst [vmem:[#allocation2 + $0x200] sm:$0xff] %v1460
        %1469 = vst [vmem:[#allocation2 + $0x208] sm:$0xff] %v1461
        %1470 = vst [vmem:[#allocation2 + $0x210] sm:$0xff] %v1462
        %1471 = vst [vmem:[#allocation2 + $0x218] sm:$0xff] %v1463
        %1472 = vst [vmem:[#allocation2 + $0x220] sm:$0xff] %v1464
        %1473 = vst [vmem:[#allocation2 + $0x228] sm:$0xff] %v1465
        %1474 = vst [vmem:[#allocation2 + $0x230] sm:$0xff] %v1466
        %1475 = vst [vmem:[#allocation2 + $0x238] sm:$0xff] %v1467
        %v1476 = vld [vmem:[#allocation2] sm:$0xff]
        %v1477 = vld [vmem:[#allocation2 + $0x8] sm:$0xff]
        %v1478 = vld [vmem:[#allocation2 + $0x10] sm:$0xff]
        %v1479 = vld [vmem:[#allocation2 + $0x18] sm:$0xff]
        %v1480 = vld [vmem:[#allocation2 + $0x20] sm:$0xff]
        %v1481 = vld [vmem:[#allocation2 + $0x28] sm:$0xff]
        %v1482 = vld [vmem:[#allocation2 + $0x30] sm:$0xff]
        %v1483 = vld [vmem:[#allocation2 + $0x38] sm:$0xff]
        %v1484 = vld [vmem:[#allocation2 + $0x40] sm:$0xff]
        %v1485 = vld [vmem:[#allocation2 + $0x48] sm:$0xff]
        %v1486 = vld [vmem:[#allocation2 + $0x50] sm:$0xff]
        %v1487 = vld [vmem:[#allocation2 + $0x58] sm:$0xff]
        %v1488 = vld [vmem:[#allocation2 + $0x60] sm:$0xff]
        %v1489 = vld [vmem:[#allocation2 + $0x68] sm:$0xff]
        %v1490 = vld [vmem:[#allocation2 + $0x70] sm:$0xff]
        %v1491 = vld [vmem:[#allocation2 + $0x78] sm:$0xff]
        %v1492 = vld [vmem:[#allocation2 + $0x80] sm:$0xff]
        %v1493 = vld [vmem:[#allocation2 + $0x88] sm:$0xff]
        %v1494 = vld [vmem:[#allocation2 + $0x90] sm:$0xff]
        %v1495 = vld [vmem:[#allocation2 + $0x98] sm:$0xff]
        %v1496 = vld [vmem:[#allocation2 + $0xa0] sm:$0xff]
        %v1497 = vld [vmem:[#allocation2 + $0xa8] sm:$0xff]
        %v1498 = vld [vmem:[#allocation2 + $0xb0] sm:$0xff]
        %v1499 = vld [vmem:[#allocation2 + $0xb8] sm:$0xff]
        %v1500 = vld [vmem:[#allocation2 + $0xc0] sm:$0xff]
        %v1501 = vld [vmem:[#allocation2 + $0xc8] sm:$0xff]
        %v1502 = vld [vmem:[#allocation2 + $0xd0] sm:$0xff]
        %v1503 = vld [vmem:[#allocation2 + $0xd8] sm:$0xff]
        %v1504 = vld [vmem:[#allocation2 + $0xe0] sm:$0xff]
        %v1505 = vld [vmem:[#allocation2 + $0xe8] sm:$0xff]
        %v1506 = vld [vmem:[#allocation2 + $0xf0] sm:$0xff]
        %v1507 = vld [vmem:[#allocation2 + $0xf8] sm:$0xff]
        %v1508 = vld [vmem:[#allocation2 + $0x100] sm:$0xff]
        %v1509 = vld [vmem:[#allocation2 + $0x108] sm:$0xff]
        %v1510 = vld [vmem:[#allocation2 + $0x110] sm:$0xff]
        %v1511 = vld [vmem:[#allocation2 + $0x118] sm:$0xff]
        %v1512 = vld [vmem:[#allocation2 + $0x120] sm:$0xff]
        %v1513 = vld [vmem:[#allocation2 + $0x128] sm:$0xff]
        %v1514 = vld [vmem:[#allocation2 + $0x130] sm:$0xff]
        %v1515 = vld [vmem:[#allocation2 + $0x138] sm:$0xff]
        %v1516 = vld [vmem:[#allocation2 + $0x140] sm:$0xff]
        %v1517 = vld [vmem:[#allocation2 + $0x148] sm:$0xff]
        %v1518 = vld [vmem:[#allocation2 + $0x150] sm:$0xff]
        %v1519 = vld [vmem:[#allocation2 + $0x158] sm:$0xff]
        %v1520 = vld [vmem:[#allocation2 + $0x160] sm:$0xff]
        %v1521 = vld [vmem:[#allocation2 + $0x168] sm:$0xff]
        %v1522 = vld [vmem:[#allocation2 + $0x170] sm:$0xff]
        %v1523 = vld [vmem:[#allocation2 + $0x178] sm:$0xff]
        %v1524 = vld [vmem:[#allocation2 + $0x180] sm:$0xff]
        %v1525 = vld [vmem:[#allocation2 + $0x188] sm:$0xff]
        %v1526 = vld [vmem:[#allocation2 + $0x190] sm:$0xff]
        %v1527 = vld [vmem:[#allocation2 + $0x198] sm:$0xff]
        %v1528 = vld [vmem:[#allocation2 + $0x1a0] sm:$0xff]
        %v1529 = vld [vmem:[#allocation2 + $0x1a8] sm:$0xff]
        %v1530 = vld [vmem:[#allocation2 + $0x1b0] sm:$0xff]
        %v1531 = vld [vmem:[#allocation2 + $0x1b8] sm:$0xff]
        %v1532 = vld [vmem:[#allocation2 + $0x1c0] sm:$0xff]
        %v1533 = vld [vmem:[#allocation2 + $0x1c8] sm:$0xff]
        %v1534 = vld [vmem:[#allocation2 + $0x1d0] sm:$0xff]
        %v1535 = vld [vmem:[#allocation2 + $0x1d8] sm:$0xff]
        %v1536 = vld [vmem:[#allocation2 + $0x1e0] sm:$0xff]
        %v1537 = vld [vmem:[#allocation2 + $0x1e8] sm:$0xff]
        %v1538 = vld [vmem:[#allocation2 + $0x1f0] sm:$0xff]
        %v1539 = vld [vmem:[#allocation2 + $0x1f8] sm:$0xff]
        %v1540 = vld [vmem:[#allocation2 + $0x200] sm:$0xff]
        %v1541 = vld [vmem:[#allocation2 + $0x208] sm:$0xff]
        %v1542 = vld [vmem:[#allocation2 + $0x210] sm:$0xff]
        %v1543 = vld [vmem:[#allocation2 + $0x218] sm:$0xff]
        %v1544 = vld [vmem:[#allocation2 + $0x220] sm:$0xff]
        %v1545 = vld [vmem:[#allocation2 + $0x228] sm:$0xff]
        %v1546 = vld [vmem:[#allocation2 + $0x230] sm:$0xff]
        %v1547 = vld [vmem:[#allocation2 + $0x238] sm:$0xff]
        %v1548 = vld [vmem:[%s2 + $0x20] sm:$0xff]
        %v1549 = vld [vmem:[%s2 + $0x28] sm:$0xff]
        %1551 = vset.pattern.permute.xlu0 0
        %1552 = vperm.xlu0 %1551, %v1548
        %v1553 = vpop.permute.xlu0 %1552
        %1556 = vset.pattern.permute.xlu0 0
        %1557 = vperm.xlu0 %1556, %v1549
        %v1558 = vpop.permute.xlu0 %1557
        %v1561 = vsel %vm831, %v330, 0
        %v1564 = vsel %vm831, %v332, 0
        %1566 = vmatpush.msra.mxu0 %v1536
        %1567 = vmatpush.msra.mxu0 %v1532
        %1568 = vmatpush.msra.mxu0 %v1528
        %1569 = vmatpush.msra.mxu0 %v1524
        %1570 = vmatpush.msra.mxu0 %v1520
        %1571 = vmatpush.msra.mxu0 %v1516
        %1572 = vmatpush.msra.mxu0 %v1512
        %1573 = vmatpush.msra.mxu0 %v1508
        %1574 = vmatpush.msra.mxu0 %v1504
        %1575 = vmatpush.msra.mxu0 %v1500
        %1576 = vmatpush.msra.mxu0 %v1496
        %1577 = vmatpush.msra.mxu0 %v1492
        %1578 = vmatpush.msra.mxu0 %v1488
        %1579 = vmatpush.msra.mxu0 %v1484
        %1580 = vmatpush.msra.mxu0 %v1480
        %1581 = vmatpush.msra.mxu0 %v1476
        %1582 = vmatmul.f32.gmra.mxu0 %v329
        %v1583 = vpop.f32.mrf.mxu0
        %v1584 = vadd.f32 %v1553, %v1583
        %1585 = vmatmul.f32.gmra.mxu0 %v331
        %v1586 = vpop.f32.mrf.mxu0
        %v1587 = vadd.f32 %v1558, %v1586
        %1588 = vdwg.mxu0
        %1589 = vmatpush.msra.mxu0 0.0
        %1590 = vmatpush.msra.mxu0 0.0
        %1591 = vmatpush.msra.mxu0 0.0
        %1592 = vmatpush.msra.mxu0 0.0
        %1593 = vmatpush.msra.mxu0 0.0
        %1594 = vmatpush.msra.mxu0 0.0
        %1595 = vmatpush.msra.mxu0 0.0
        %1596 = vmatpush.msra.mxu0 0.0
        %1597 = vmatpush.msra.mxu0 0.0
        %1598 = vmatpush.msra.mxu0 0.0
        %1599 = vmatpush.msra.mxu0 0.0
        %1600 = vmatpush.msra.mxu0 0.0
        %1601 = vmatpush.msra.mxu0 0.0
        %1602 = vmatpush.msra.mxu0 0.0
        %1603 = vmatpush.msra.mxu0 %v1544
        %1604 = vmatpush.msra.mxu0 %v1540
        %1605 = vmatmul.f32.gmra.mxu0 %v1561
        %v1606 = vpop.f32.mrf.mxu0
        %v1607 = vadd.f32 %v1584, %v1606
        %1608 = vmatmul.f32.gmra.mxu0 %v1564
        %v1609 = vpop.f32.mrf.mxu0
        %v1610 = vadd.f32 %v1587, %v1609
        %1611 = vdwg.mxu0
        %1612 = vmatpush.msra.mxu0 %v1537
        %1613 = vmatpush.msra.mxu0 %v1533
        %1614 = vmatpush.msra.mxu0 %v1529
        %1615 = vmatpush.msra.mxu0 %v1525
        %1616 = vmatpush.msra.mxu0 %v1521
        %1617 = vmatpush.msra.mxu0 %v1517
        %1618 = vmatpush.msra.mxu0 %v1513
        %1619 = vmatpush.msra.mxu0 %v1509
        %1620 = vmatpush.msra.mxu0 %v1505
        %1621 = vmatpush.msra.mxu0 %v1501
        %1622 = vmatpush.msra.mxu0 %v1497
        %1623 = vmatpush.msra.mxu0 %v1493
        %1624 = vmatpush.msra.mxu0 %v1489
        %1625 = vmatpush.msra.mxu0 %v1485
        %1626 = vmatpush.msra.mxu0 %v1481
        %1627 = vmatpush.msra.mxu0 %v1477
        %1628 = vmatmul.f32.gmra.mxu0 %v329
        %v1629 = vpop.f32.mrf.mxu0
        %v1630 = vadd.f32 %v1553, %v1629
        %1631 = vmatmul.f32.gmra.mxu0 %v331
        %v1632 = vpop.f32.mrf.mxu0
        %v1633 = vadd.f32 %v1558, %v1632
        %1634 = vdwg.mxu0
        %1635 = vmatpush.msra.mxu0 0.0
        %1636 = vmatpush.msra.mxu0 0.0
        %1637 = vmatpush.msra.mxu0 0.0
        %1638 = vmatpush.msra.mxu0 0.0
        %1639 = vmatpush.msra.mxu0 0.0
        %1640 = vmatpush.msra.mxu0 0.0
        %1641 = vmatpush.msra.mxu0 0.0
        %1642 = vmatpush.msra.mxu0 0.0
        %1643 = vmatpush.msra.mxu0 0.0
        %1644 = vmatpush.msra.mxu0 0.0
        %1645 = vmatpush.msra.mxu0 0.0
        %1646 = vmatpush.msra.mxu0 0.0
        %1647 = vmatpush.msra.mxu0 0.0
        %1648 = vmatpush.msra.mxu0 0.0
        %1649 = vmatpush.msra.mxu0 %v1545
        %1650 = vmatpush.msra.mxu0 %v1541
        %1651 = vmatmul.f32.gmra.mxu0 %v1561
        %v1652 = vpop.f32.mrf.mxu0
        %v1653 = vadd.f32 %v1630, %v1652
        %1654 = vmatmul.f32.gmra.mxu0 %v1564
        %v1655 = vpop.f32.mrf.mxu0
        %v1656 = vadd.f32 %v1633, %v1655
        %1657 = vdwg.mxu0
        %1658 = vmatpush.msra.mxu0 %v1538
        %1659 = vmatpush.msra.mxu0 %v1534
        %1660 = vmatpush.msra.mxu0 %v1530
        %1661 = vmatpush.msra.mxu0 %v1526
        %1662 = vmatpush.msra.mxu0 %v1522
        %1663 = vmatpush.msra.mxu0 %v1518
        %1664 = vmatpush.msra.mxu0 %v1514
        %1665 = vmatpush.msra.mxu0 %v1510
        %1666 = vmatpush.msra.mxu0 %v1506
        %1667 = vmatpush.msra.mxu0 %v1502
        %1668 = vmatpush.msra.mxu0 %v1498
        %1669 = vmatpush.msra.mxu0 %v1494
        %1670 = vmatpush.msra.mxu0 %v1490
        %1671 = vmatpush.msra.mxu0 %v1486
        %1672 = vmatpush.msra.mxu0 %v1482
        %1673 = vmatpush.msra.mxu0 %v1478
        %1674 = vmatmul.f32.gmra.mxu0 %v329
        %v1675 = vpop.f32.mrf.mxu0
        %v1676 = vadd.f32 %v1553, %v1675
        %1677 = vmatmul.f32.gmra.mxu0 %v331
        %v1678 = vpop.f32.mrf.mxu0
        %v1679 = vadd.f32 %v1558, %v1678
        %1680 = vdwg.mxu0
        %1681 = vmatpush.msra.mxu0 0.0
        %1682 = vmatpush.msra.mxu0 0.0
        %1683 = vmatpush.msra.mxu0 0.0
        %1684 = vmatpush.msra.mxu0 0.0
        %1685 = vmatpush.msra.mxu0 0.0
        %1686 = vmatpush.msra.mxu0 0.0
        %1687 = vmatpush.msra.mxu0 0.0
        %1688 = vmatpush.msra.mxu0 0.0
        %1689 = vmatpush.msra.mxu0 0.0
        %1690 = vmatpush.msra.mxu0 0.0
        %1691 = vmatpush.msra.mxu0 0.0
        %1692 = vmatpush.msra.mxu0 0.0
        %1693 = vmatpush.msra.mxu0 0.0
        %1694 = vmatpush.msra.mxu0 0.0
        %1695 = vmatpush.msra.mxu0 %v1546
        %1696 = vmatpush.msra.mxu0 %v1542
        %1697 = vmatmul.f32.gmra.mxu0 %v1561
        %v1698 = vpop.f32.mrf.mxu0
        %v1699 = vadd.f32 %v1676, %v1698
        %1700 = vmatmul.f32.gmra.mxu0 %v1564
        %v1701 = vpop.f32.mrf.mxu0
        %v1702 = vadd.f32 %v1679, %v1701
        %1703 = vdwg.mxu0
        %1704 = vmatpush.msra.mxu0 %v1539
        %1705 = vmatpush.msra.mxu0 %v1535
        %1706 = vmatpush.msra.mxu0 %v1531
        %1707 = vmatpush.msra.mxu0 %v1527
        %1708 = vmatpush.msra.mxu0 %v1523
        %1709 = vmatpush.msra.mxu0 %v1519
        %1710 = vmatpush.msra.mxu0 %v1515
        %1711 = vmatpush.msra.mxu0 %v1511
        %1712 = vmatpush.msra.mxu0 %v1507
        %1713 = vmatpush.msra.mxu0 %v1503
        %1714 = vmatpush.msra.mxu0 %v1499
        %1715 = vmatpush.msra.mxu0 %v1495
        %1716 = vmatpush.msra.mxu0 %v1491
        %1717 = vmatpush.msra.mxu0 %v1487
        %1718 = vmatpush.msra.mxu0 %v1483
        %1719 = vmatpush.msra.mxu0 %v1479
        %1720 = vmatmul.f32.gmra.mxu0 %v329
        %v1721 = vpop.f32.mrf.mxu0
        %v1722 = vadd.f32 %v1553, %v1721
        %1723 = vmatmul.f32.gmra.mxu0 %v331
        %v1724 = vpop.f32.mrf.mxu0
        %v1725 = vadd.f32 %v1558, %v1724
        %1726 = vdwg.mxu0
        %1727 = vmatpush.msra.mxu0 0.0
        %1728 = vmatpush.msra.mxu0 0.0
        %1729 = vmatpush.msra.mxu0 0.0
        %1730 = vmatpush.msra.mxu0 0.0
        %1731 = vmatpush.msra.mxu0 0.0
        %1732 = vmatpush.msra.mxu0 0.0
        %1733 = vmatpush.msra.mxu0 0.0
        %1734 = vmatpush.msra.mxu0 0.0
        %1735 = vmatpush.msra.mxu0 0.0
        %1736 = vmatpush.msra.mxu0 0.0
        %1737 = vmatpush.msra.mxu0 0.0
        %1738 = vmatpush.msra.mxu0 0.0
        %1739 = vmatpush.msra.mxu0 0.0
        %1740 = vmatpush.msra.mxu0 0.0
        %1741 = vmatpush.msra.mxu0 %v1547
        %1742 = vmatpush.msra.mxu0 %v1543
        %1743 = vmatmul.f32.gmra.mxu0 %v1561
        %v1744 = vpop.f32.mrf.mxu0
        %v1745 = vadd.f32 %v1722, %v1744
        %1746 = vmatmul.f32.gmra.mxu0 %v1564
        %v1747 = vpop.f32.mrf.mxu0
        %v1748 = vadd.f32 %v1725, %v1747
        %1749 = vdwg.mxu0
        %v1750 = vadd.f32 %v1607, %v897
        %v1751 = vadd.f32 %v1653, %v955
        %v1752 = vadd.f32 %v1699, %v1013
        %v1753 = vadd.f32 %v1745, %v1071
        %v1754 = vadd.f32 %v1610, %v900
        %v1755 = vadd.f32 %v1656, %v958
        %v1756 = vadd.f32 %v1702, %v1016
        %v1757 = vadd.f32 %v1748, %v1074
        %v1758 = vmax.f32 %v1750, 0.0
        %v1759 = vmax.f32 %v1751, 0.0
        %v1760 = vmax.f32 %v1752, 0.0
        %v1761 = vmax.f32 %v1753, 0.0
        %v1762 = vmax.f32 %v1754, 0.0
        %v1763 = vmax.f32 %v1755, 0.0
        %v1764 = vmax.f32 %v1756, 0.0
        %v1765 = vmax.f32 %v1757, 0.0
        %v1766 = vld [vmem:[%s5] sm:$0xff]
        %v1767 = vld [vmem:[%s5 + $0x8] sm:$0xff]
        %v1768 = vld [vmem:[%s5 + $0x10] sm:$0xff]
        %v1769 = vld [vmem:[%s5 + $0x18] sm:$0xff]
        %v1770 = vld [vmem:[%s6] sm:$0xff]
        %1771 = vrot.lane.b32.xlu0 %v1758, 17
        %v1772 = vpop.permute.xlu0 %1771
        %1773 = vrot.lane.b32.xlu0 %v1762, 17
        %v1774 = vpop.permute.xlu0 %1773
        %1775 = vrot.lane.b32.xlu0 %v1759, 17
        %v1776 = vpop.permute.xlu0 %1775
        %1777 = vrot.lane.b32.xlu0 %v1763, 17
        %v1778 = vpop.permute.xlu0 %1777
        %1779 = vrot.lane.b32.xlu0 %v1760, 17
        %v1780 = vpop.permute.xlu0 %1779
        %1781 = vrot.lane.b32.xlu0 %v1764, 17
        %v1782 = vpop.permute.xlu0 %1781
        %1783 = vrot.lane.b32.xlu0 %v1761, 17
        %v1784 = vpop.permute.xlu0 %1783
        %1785 = vrot.lane.b32.xlu0 %v1765, 17
        %v1786 = vpop.permute.xlu0 %1785
        %v1787 = vsel %vm351, %v1780, %v1784
        %v1788 = vsel %vm351, %v1782, %v1786
        %v1789 = vsel %vm351, %v1776, %v1780
        %v1790 = vsel %vm351, %v1778, %v1782
        %v1791 = vsel %vm351, %v1772, %v1776
        %v1792 = vsel %vm351, %v1774, %v1778
        %v1793 = vsel %vm351, %v1784, %v1772
        %v1794 = vsel %vm351, %v1786, %v1774
        %v1795 = vld [vmem:[%s1] sm:$0xff]
        %v1796 = vld [vmem:[%s1 + $0x8] sm:$0xff]
        %v1797 = vld [vmem:[%s1 + $0x10] sm:$0xff]
        %v1798 = vld [vmem:[%s1 + $0x18] sm:$0xff]
        %v1799 = vld [vmem:[%s1 + $0x20] sm:$0xff]
        %v1800 = vld [vmem:[%s1 + $0x28] sm:$0xff]
        %v1801 = vld [vmem:[%s1 + $0x30] sm:$0xff]
        %v1802 = vld [vmem:[%s1 + $0x38] sm:$0xff]
        %v1803 = vmul.f32 %v1793, %v1795
        %v1804 = vmul.f32 %v1791, %v1796
        %v1805 = vmul.f32 %v1789, %v1797
        %v1806 = vmul.f32 %v1787, %v1798
        %v1807 = vmul.f32 %v1794, %v1799
        %v1808 = vmul.f32 %v1792, %v1800
        %v1809 = vmul.f32 %v1790, %v1801
        %v1810 = vmul.f32 %v1788, %v1802
        %1811 = vst [vmem:[#allocation2] sm:$0xff] %v1803
        %1812 = vst [vmem:[#allocation2 + $0x8] sm:$0xff] %v1804
        %1813 = vst [vmem:[#allocation2 + $0x10] sm:$0xff] %v1805
        %1814 = vst [vmem:[#allocation2 + $0x18] sm:$0xff] %v1806
        %1815 = vst [vmem:[#allocation2 + $0x20] sm:$0xff] %v1807
        %1816 = vst [vmem:[#allocation2 + $0x28] sm:$0xff] %v1808
        %1817 = vst [vmem:[#allocation2 + $0x30] sm:$0xff] %v1809
        %1818 = vst [vmem:[#allocation2 + $0x38] sm:$0xff] %v1810
        %1819 = vrot.lane.b32.xlu0 %v1758, 16
        %v1820 = vpop.permute.xlu0 %1819
        %1821 = vrot.lane.b32.xlu0 %v1762, 16
        %v1822 = vpop.permute.xlu0 %1821
        %1823 = vrot.lane.b32.xlu0 %v1759, 16
        %v1824 = vpop.permute.xlu0 %1823
        %1825 = vrot.lane.b32.xlu0 %v1763, 16
        %v1826 = vpop.permute.xlu0 %1825
        %1827 = vrot.lane.b32.xlu0 %v1760, 16
        %v1828 = vpop.permute.xlu0 %1827
        %1829 = vrot.lane.b32.xlu0 %v1764, 16
        %v1830 = vpop.permute.xlu0 %1829
        %1831 = vrot.lane.b32.xlu0 %v1761, 16
        %v1832 = vpop.permute.xlu0 %1831
        %1833 = vrot.lane.b32.xlu0 %v1765, 16
        %v1834 = vpop.permute.xlu0 %1833
        %v1835 = vsel %vm400, %v1828, %v1832
        %v1836 = vsel %vm400, %v1830, %v1834
        %v1837 = vsel %vm400, %v1824, %v1828
        %v1838 = vsel %vm400, %v1826, %v1830
        %v1839 = vsel %vm400, %v1820, %v1824
        %v1840 = vsel %vm400, %v1822, %v1826
        %v1841 = vsel %vm400, %v1832, %v1820
        %v1842 = vsel %vm400, %v1834, %v1822
        %v1843 = vld [vmem:[%s1 + $0x40] sm:$0xff]
        %v1844 = vld [vmem:[%s1 + $0x48] sm:$0xff]
        %v1845 = vld [vmem:[%s1 + $0x50] sm:$0xff]
        %v1846 = vld [vmem:[%s1 + $0x58] sm:$0xff]
        %v1847 = vld [vmem:[%s1 + $0x60] sm:$0xff]
        %v1848 = vld [vmem:[%s1 + $0x68] sm:$0xff]
        %v1849 = vld [vmem:[%s1 + $0x70] sm:$0xff]
        %v1850 = vld [vmem:[%s1 + $0x78] sm:$0xff]
        %v1851 = vmul.f32 %v1841, %v1843
        %v1852 = vmul.f32 %v1839, %v1844
        %v1853 = vmul.f32 %v1837, %v1845
        %v1854 = vmul.f32 %v1835, %v1846
        %v1855 = vmul.f32 %v1842, %v1847
        %v1856 = vmul.f32 %v1840, %v1848
        %v1857 = vmul.f32 %v1838, %v1849
        %v1858 = vmul.f32 %v1836, %v1850
        %1859 = vst [vmem:[#allocation2 + $0x40] sm:$0xff] %v1851
        %1860 = vst [vmem:[#allocation2 + $0x48] sm:$0xff] %v1852
        %1861 = vst [vmem:[#allocation2 + $0x50] sm:$0xff] %v1853
        %1862 = vst [vmem:[#allocation2 + $0x58] sm:$0xff] %v1854
        %1863 = vst [vmem:[#allocation2 + $0x60] sm:$0xff] %v1855
        %1864 = vst [vmem:[#allocation2 + $0x68] sm:$0xff] %v1856
        %1865 = vst [vmem:[#allocation2 + $0x70] sm:$0xff] %v1857
        %1866 = vst [vmem:[#allocation2 + $0x78] sm:$0xff] %v1858
        %1867 = vrot.lane.b32.xlu0 %v1758, 15
        %v1868 = vpop.permute.xlu0 %1867
        %1869 = vrot.lane.b32.xlu0 %v1762, 15
        %v1870 = vpop.permute.xlu0 %1869
        %1871 = vrot.lane.b32.xlu0 %v1759, 15
        %v1872 = vpop.permute.xlu0 %1871
        %1873 = vrot.lane.b32.xlu0 %v1763, 15
        %v1874 = vpop.permute.xlu0 %1873
        %1875 = vrot.lane.b32.xlu0 %v1760, 15
        %v1876 = vpop.permute.xlu0 %1875
        %1877 = vrot.lane.b32.xlu0 %v1764, 15
        %v1878 = vpop.permute.xlu0 %1877
        %1879 = vrot.lane.b32.xlu0 %v1761, 15
        %v1880 = vpop.permute.xlu0 %1879
        %1881 = vrot.lane.b32.xlu0 %v1765, 15
        %v1882 = vpop.permute.xlu0 %1881
        %v1883 = vsel %vm449, %v1876, %v1880
        %v1884 = vsel %vm449, %v1878, %v1882
        %v1885 = vsel %vm449, %v1872, %v1876
        %v1886 = vsel %vm449, %v1874, %v1878
        %v1887 = vsel %vm449, %v1868, %v1872
        %v1888 = vsel %vm449, %v1870, %v1874
        %v1889 = vsel %vm449, %v1880, %v1868
        %v1890 = vsel %vm449, %v1882, %v1870
        %v1891 = vld [vmem:[%s1 + $0x80] sm:$0xff]
        %v1892 = vld [vmem:[%s1 + $0x88] sm:$0xff]
        %v1893 = vld [vmem:[%s1 + $0x90] sm:$0xff]
        %v1894 = vld [vmem:[%s1 + $0x98] sm:$0xff]
        %v1895 = vld [vmem:[%s1 + $0xa0] sm:$0xff]
        %v1896 = vld [vmem:[%s1 + $0xa8] sm:$0xff]
        %v1897 = vld [vmem:[%s1 + $0xb0] sm:$0xff]
        %v1898 = vld [vmem:[%s1 + $0xb8] sm:$0xff]
        %v1899 = vmul.f32 %v1889, %v1891
        %v1900 = vmul.f32 %v1887, %v1892
        %v1901 = vmul.f32 %v1885, %v1893
        %v1902 = vmul.f32 %v1883, %v1894
        %v1903 = vmul.f32 %v1890, %v1895
        %v1904 = vmul.f32 %v1888, %v1896
        %v1905 = vmul.f32 %v1886, %v1897
        %v1906 = vmul.f32 %v1884, %v1898
        %1907 = vst [vmem:[#allocation2 + $0x80] sm:$0xff] %v1899
        %1908 = vst [vmem:[#allocation2 + $0x88] sm:$0xff] %v1900
        %1909 = vst [vmem:[#allocation2 + $0x90] sm:$0xff] %v1901
        %1910 = vst [vmem:[#allocation2 + $0x98] sm:$0xff] %v1902
        %1911 = vst [vmem:[#allocation2 + $0xa0] sm:$0xff] %v1903
        %1912 = vst [vmem:[#allocation2 + $0xa8] sm:$0xff] %v1904
        %1913 = vst [vmem:[#allocation2 + $0xb0] sm:$0xff] %v1905
        %1914 = vst [vmem:[#allocation2 + $0xb8] sm:$0xff] %v1906
        %1915 = vrot.lane.b32.xlu0 %v1758, 1
        %v1916 = vpop.permute.xlu0 %1915
        %1917 = vrot.lane.b32.xlu0 %v1762, 1
        %v1918 = vpop.permute.xlu0 %1917
        %1919 = vrot.lane.b32.xlu0 %v1759, 1
        %v1920 = vpop.permute.xlu0 %1919
        %1921 = vrot.lane.b32.xlu0 %v1763, 1
        %v1922 = vpop.permute.xlu0 %1921
        %1923 = vrot.lane.b32.xlu0 %v1760, 1
        %v1924 = vpop.permute.xlu0 %1923
        %1925 = vrot.lane.b32.xlu0 %v1764, 1
        %v1926 = vpop.permute.xlu0 %1925
        %1927 = vrot.lane.b32.xlu0 %v1761, 1
        %v1928 = vpop.permute.xlu0 %1927
        %1929 = vrot.lane.b32.xlu0 %v1765, 1
        %v1930 = vpop.permute.xlu0 %1929
        %v1931 = vsel %vm498, %v1924, %v1928
        %v1932 = vsel %vm498, %v1926, %v1930
        %v1933 = vsel %vm498, %v1920, %v1924
        %v1934 = vsel %vm498, %v1922, %v1926
        %v1935 = vsel %vm498, %v1916, %v1920
        %v1936 = vsel %vm498, %v1918, %v1922
        %v1937 = vsel %vm498, %v1928, %v1916
        %v1938 = vsel %vm498, %v1930, %v1918
        %v1939 = vld [vmem:[%s1 + $0xc0] sm:$0xff]
        %v1940 = vld [vmem:[%s1 + $0xc8] sm:$0xff]
        %v1941 = vld [vmem:[%s1 + $0xd0] sm:$0xff]
        %v1942 = vld [vmem:[%s1 + $0xd8] sm:$0xff]
        %v1943 = vld [vmem:[%s1 + $0xe0] sm:$0xff]
        %v1944 = vld [vmem:[%s1 + $0xe8] sm:$0xff]
        %v1945 = vld [vmem:[%s1 + $0xf0] sm:$0xff]
        %v1946 = vld [vmem:[%s1 + $0xf8] sm:$0xff]
        %v1947 = vmul.f32 %v1937, %v1939
        %v1948 = vmul.f32 %v1935, %v1940
        %v1949 = vmul.f32 %v1933, %v1941
        %v1950 = vmul.f32 %v1931, %v1942
        %v1951 = vmul.f32 %v1938, %v1943
        %v1952 = vmul.f32 %v1936, %v1944
        %v1953 = vmul.f32 %v1934, %v1945
        %v1954 = vmul.f32 %v1932, %v1946
        %1955 = vst [vmem:[#allocation2 + $0xc0] sm:$0xff] %v1947
        %1956 = vst [vmem:[#allocation2 + $0xc8] sm:$0xff] %v1948
        %1957 = vst [vmem:[#allocation2 + $0xd0] sm:$0xff] %v1949
        %1958 = vst [vmem:[#allocation2 + $0xd8] sm:$0xff] %v1950
        %1959 = vst [vmem:[#allocation2 + $0xe0] sm:$0xff] %v1951
        %1960 = vst [vmem:[#allocation2 + $0xe8] sm:$0xff] %v1952
        %1961 = vst [vmem:[#allocation2 + $0xf0] sm:$0xff] %v1953
        %1962 = vst [vmem:[#allocation2 + $0xf8] sm:$0xff] %v1954
        %1963 = vst [vmem:[#allocation2 + $0x100] sm:$0xff] %v1758
        %1964 = vst [vmem:[#allocation2 + $0x108] sm:$0xff] %v1759
        %1965 = vst [vmem:[#allocation2 + $0x110] sm:$0xff] %v1760
        %1966 = vst [vmem:[#allocation2 + $0x118] sm:$0xff] %v1761
        %1967 = vst [vmem:[#allocation2 + $0x120] sm:$0xff] %v1762
        %1968 = vst [vmem:[#allocation2 + $0x128] sm:$0xff] %v1763
        %1969 = vst [vmem:[#allocation2 + $0x130] sm:$0xff] %v1764
        %1970 = vst [vmem:[#allocation2 + $0x138] sm:$0xff] %v1765
        %1971 = vrot.lane.b32.xlu0 %v1758, 127
        %v1972 = vpop.permute.xlu0 %1971
        %1973 = vrot.lane.b32.xlu0 %v1762, 127
        %v1974 = vpop.permute.xlu0 %1973
        %1975 = vrot.lane.b32.xlu0 %v1759, 127
        %v1976 = vpop.permute.xlu0 %1975
        %1977 = vrot.lane.b32.xlu0 %v1763, 127
        %v1978 = vpop.permute.xlu0 %1977
        %1979 = vrot.lane.b32.xlu0 %v1760, 127
        %v1980 = vpop.permute.xlu0 %1979
        %1981 = vrot.lane.b32.xlu0 %v1764, 127
        %v1982 = vpop.permute.xlu0 %1981
        %1983 = vrot.lane.b32.xlu0 %v1761, 127
        %v1984 = vpop.permute.xlu0 %1983
        %1985 = vrot.lane.b32.xlu0 %v1765, 127
        %v1986 = vpop.permute.xlu0 %1985
        %v1987 = vsel %vm555, %v1980, %v1984
        %v1988 = vsel %vm555, %v1982, %v1986
        %v1989 = vsel %vm555, %v1976, %v1980
        %v1990 = vsel %vm555, %v1978, %v1982
        %v1991 = vsel %vm555, %v1972, %v1976
        %v1992 = vsel %vm555, %v1974, %v1978
        %v1993 = vsel %vm555, %v1984, %v1972
        %v1994 = vsel %vm555, %v1986, %v1974
        %v1995 = vld [vmem:[%s1 + $0x140] sm:$0xff]
        %v1996 = vld [vmem:[%s1 + $0x148] sm:$0xff]
        %v1997 = vld [vmem:[%s1 + $0x150] sm:$0xff]
        %v1998 = vld [vmem:[%s1 + $0x158] sm:$0xff]
        %v1999 = vld [vmem:[%s1 + $0x160] sm:$0xff]
        %v2000 = vld [vmem:[%s1 + $0x168] sm:$0xff]
        %v2001 = vld [vmem:[%s1 + $0x170] sm:$0xff]
        %v2002 = vld [vmem:[%s1 + $0x178] sm:$0xff]
        %v2003 = vmul.f32 %v1991, %v1995
        %v2004 = vmul.f32 %v1989, %v1996
        %v2005 = vmul.f32 %v1987, %v1997
        %v2006 = vmul.f32 %v1993, %v1998
        %v2007 = vmul.f32 %v1992, %v1999
        %v2008 = vmul.f32 %v1990, %v2000
        %v2009 = vmul.f32 %v1988, %v2001
        %v2010 = vmul.f32 %v1994, %v2002
        %2011 = vst [vmem:[#allocation2 + $0x140] sm:$0xff] %v2003
        %2012 = vst [vmem:[#allocation2 + $0x148] sm:$0xff] %v2004
        %2013 = vst [vmem:[#allocation2 + $0x150] sm:$0xff] %v2005
        %2014 = vst [vmem:[#allocation2 + $0x158] sm:$0xff] %v2006
        %2015 = vst [vmem:[#allocation2 + $0x160] sm:$0xff] %v2007
        %2016 = vst [vmem:[#allocation2 + $0x168] sm:$0xff] %v2008
        %2017 = vst [vmem:[#allocation2 + $0x170] sm:$0xff] %v2009
        %2018 = vst [vmem:[#allocation2 + $0x178] sm:$0xff] %v2010
        %2019 = vrot.lane.b32.xlu0 %v1758, 113
        %v2020 = vpop.permute.xlu0 %2019
        %2021 = vrot.lane.b32.xlu0 %v1762, 113
        %v2022 = vpop.permute.xlu0 %2021
        %2023 = vrot.lane.b32.xlu0 %v1759, 113
        %v2024 = vpop.permute.xlu0 %2023
        %2025 = vrot.lane.b32.xlu0 %v1763, 113
        %v2026 = vpop.permute.xlu0 %2025
        %2027 = vrot.lane.b32.xlu0 %v1760, 113
        %v2028 = vpop.permute.xlu0 %2027
        %2029 = vrot.lane.b32.xlu0 %v1764, 113
        %v2030 = vpop.permute.xlu0 %2029
        %2031 = vrot.lane.b32.xlu0 %v1761, 113
        %v2032 = vpop.permute.xlu0 %2031
        %2033 = vrot.lane.b32.xlu0 %v1765, 113
        %v2034 = vpop.permute.xlu0 %2033
        %v2035 = vsel %vm604, %v2028, %v2032
        %v2036 = vsel %vm604, %v2030, %v2034
        %v2037 = vsel %vm604, %v2024, %v2028
        %v2038 = vsel %vm604, %v2026, %v2030
        %v2039 = vsel %vm604, %v2020, %v2024
        %v2040 = vsel %vm604, %v2022, %v2026
        %v2041 = vsel %vm604, %v2032, %v2020
        %v2042 = vsel %vm604, %v2034, %v2022
        %v2043 = vld [vmem:[%s1 + $0x180] sm:$0xff]
        %v2044 = vld [vmem:[%s1 + $0x188] sm:$0xff]
        %v2045 = vld [vmem:[%s1 + $0x190] sm:$0xff]
        %v2046 = vld [vmem:[%s1 + $0x198] sm:$0xff]
        %v2047 = vld [vmem:[%s1 + $0x1a0] sm:$0xff]
        %v2048 = vld [vmem:[%s1 + $0x1a8] sm:$0xff]
        %v2049 = vld [vmem:[%s1 + $0x1b0] sm:$0xff]
        %v2050 = vld [vmem:[%s1 + $0x1b8] sm:$0xff]
        %v2051 = vmul.f32 %v2039, %v2043
        %v2052 = vmul.f32 %v2037, %v2044
        %v2053 = vmul.f32 %v2035, %v2045
        %v2054 = vmul.f32 %v2041, %v2046
        %v2055 = vmul.f32 %v2040, %v2047
        %v2056 = vmul.f32 %v2038, %v2048
        %v2057 = vmul.f32 %v2036, %v2049
        %v2058 = vmul.f32 %v2042, %v2050
        %2059 = vst [vmem:[#allocation2 + $0x180] sm:$0xff] %v2051
        %2060 = vst [vmem:[#allocation2 + $0x188] sm:$0xff] %v2052
        %2061 = vst [vmem:[#allocation2 + $0x190] sm:$0xff] %v2053
        %2062 = vst [vmem:[#allocation2 + $0x198] sm:$0xff] %v2054
        %2063 = vst [vmem:[#allocation2 + $0x1a0] sm:$0xff] %v2055
        %2064 = vst [vmem:[#allocation2 + $0x1a8] sm:$0xff] %v2056
        %2065 = vst [vmem:[#allocation2 + $0x1b0] sm:$0xff] %v2057
        %2066 = vst [vmem:[#allocation2 + $0x1b8] sm:$0xff] %v2058
        %2067 = vrot.lane.b32.xlu0 %v1758, 112
        %v2068 = vpop.permute.xlu0 %2067
        %2069 = vrot.lane.b32.xlu0 %v1762, 112
        %v2070 = vpop.permute.xlu0 %2069
        %2071 = vrot.lane.b32.xlu0 %v1759, 112
        %v2072 = vpop.permute.xlu0 %2071
        %2073 = vrot.lane.b32.xlu0 %v1763, 112
        %v2074 = vpop.permute.xlu0 %2073
        %2075 = vrot.lane.b32.xlu0 %v1760, 112
        %v2076 = vpop.permute.xlu0 %2075
        %2077 = vrot.lane.b32.xlu0 %v1764, 112
        %v2078 = vpop.permute.xlu0 %2077
        %2079 = vrot.lane.b32.xlu0 %v1761, 112
        %v2080 = vpop.permute.xlu0 %2079
        %2081 = vrot.lane.b32.xlu0 %v1765, 112
        %v2082 = vpop.permute.xlu0 %2081
        %v2083 = vsel %vm653, %v2076, %v2080
        %v2084 = vsel %vm653, %v2078, %v2082
        %v2085 = vsel %vm653, %v2072, %v2076
        %v2086 = vsel %vm653, %v2074, %v2078
        %v2087 = vsel %vm653, %v2068, %v2072
        %v2088 = vsel %vm653, %v2070, %v2074
        %v2089 = vsel %vm653, %v2080, %v2068
        %v2090 = vsel %vm653, %v2082, %v2070
        %v2091 = vld [vmem:[%s1 + $0x1c0] sm:$0xff]
        %v2092 = vld [vmem:[%s1 + $0x1c8] sm:$0xff]
        %v2093 = vld [vmem:[%s1 + $0x1d0] sm:$0xff]
        %v2094 = vld [vmem:[%s1 + $0x1d8] sm:$0xff]
        %v2095 = vld [vmem:[%s1 + $0x1e0] sm:$0xff]
        %v2096 = vld [vmem:[%s1 + $0x1e8] sm:$0xff]
        %v2097 = vld [vmem:[%s1 + $0x1f0] sm:$0xff]
        %v2098 = vld [vmem:[%s1 + $0x1f8] sm:$0xff]
        %v2099 = vmul.f32 %v2087, %v2091
        %v2100 = vmul.f32 %v2085, %v2092
        %v2101 = vmul.f32 %v2083, %v2093
        %v2102 = vmul.f32 %v2089, %v2094
        %v2103 = vmul.f32 %v2088, %v2095
        %v2104 = vmul.f32 %v2086, %v2096
        %v2105 = vmul.f32 %v2084, %v2097
        %v2106 = vmul.f32 %v2090, %v2098
        %2107 = vst [vmem:[#allocation2 + $0x1c0] sm:$0xff] %v2099
        %2108 = vst [vmem:[#allocation2 + $0x1c8] sm:$0xff] %v2100
        %2109 = vst [vmem:[#allocation2 + $0x1d0] sm:$0xff] %v2101
        %2110 = vst [vmem:[#allocation2 + $0x1d8] sm:$0xff] %v2102
        %2111 = vst [vmem:[#allocation2 + $0x1e0] sm:$0xff] %v2103
        %2112 = vst [vmem:[#allocation2 + $0x1e8] sm:$0xff] %v2104
        %2113 = vst [vmem:[#allocation2 + $0x1f0] sm:$0xff] %v2105
        %2114 = vst [vmem:[#allocation2 + $0x1f8] sm:$0xff] %v2106
        %2115 = vrot.lane.b32.xlu0 %v1758, 111
        %v2116 = vpop.permute.xlu0 %2115
        %2117 = vrot.lane.b32.xlu0 %v1762, 111
        %v2118 = vpop.permute.xlu0 %2117
        %2119 = vrot.lane.b32.xlu0 %v1759, 111
        %v2120 = vpop.permute.xlu0 %2119
        %2121 = vrot.lane.b32.xlu0 %v1763, 111
        %v2122 = vpop.permute.xlu0 %2121
        %2123 = vrot.lane.b32.xlu0 %v1760, 111
        %v2124 = vpop.permute.xlu0 %2123
        %2125 = vrot.lane.b32.xlu0 %v1764, 111
        %v2126 = vpop.permute.xlu0 %2125
        %2127 = vrot.lane.b32.xlu0 %v1761, 111
        %v2128 = vpop.permute.xlu0 %2127
        %2129 = vrot.lane.b32.xlu0 %v1765, 111
        %v2130 = vpop.permute.xlu0 %2129
        %v2131 = vsel %vm702, %v2124, %v2128
        %v2132 = vsel %vm702, %v2126, %v2130
        %v2133 = vsel %vm702, %v2120, %v2124
        %v2134 = vsel %vm702, %v2122, %v2126
        %v2135 = vsel %vm702, %v2116, %v2120
        %v2136 = vsel %vm702, %v2118, %v2122
        %v2137 = vsel %vm702, %v2128, %v2116
        %v2138 = vsel %vm702, %v2130, %v2118
        %v2139 = vld [vmem:[%s1 + $0x200] sm:$0xff]
        %v2140 = vld [vmem:[%s1 + $0x208] sm:$0xff]
        %v2141 = vld [vmem:[%s1 + $0x210] sm:$0xff]
        %v2142 = vld [vmem:[%s1 + $0x218] sm:$0xff]
        %v2143 = vld [vmem:[%s1 + $0x220] sm:$0xff]
        %v2144 = vld [vmem:[%s1 + $0x228] sm:$0xff]
        %v2145 = vld [vmem:[%s1 + $0x230] sm:$0xff]
        %v2146 = vld [vmem:[%s1 + $0x238] sm:$0xff]
        %v2147 = vmul.f32 %v2135, %v2139
        %v2148 = vmul.f32 %v2133, %v2140
        %v2149 = vmul.f32 %v2131, %v2141
        %v2150 = vmul.f32 %v2137, %v2142
        %v2151 = vmul.f32 %v2136, %v2143
        %v2152 = vmul.f32 %v2134, %v2144
        %v2153 = vmul.f32 %v2132, %v2145
        %v2154 = vmul.f32 %v2138, %v2146
        %2155 = vst [vmem:[#allocation2 + $0x200] sm:$0xff] %v2147
        %2156 = vst [vmem:[#allocation2 + $0x208] sm:$0xff] %v2148
        %2157 = vst [vmem:[#allocation2 + $0x210] sm:$0xff] %v2149
        %2158 = vst [vmem:[#allocation2 + $0x218] sm:$0xff] %v2150
        %2159 = vst [vmem:[#allocation2 + $0x220] sm:$0xff] %v2151
        %2160 = vst [vmem:[#allocation2 + $0x228] sm:$0xff] %v2152
        %2161 = vst [vmem:[#allocation2 + $0x230] sm:$0xff] %v2153
        %2162 = vst [vmem:[#allocation2 + $0x238] sm:$0xff] %v2154
        %v2163 = vld [vmem:[#allocation2] sm:$0xff]
        %v2164 = vld [vmem:[#allocation2 + $0x8] sm:$0xff]
        %v2165 = vld [vmem:[#allocation2 + $0x10] sm:$0xff]
        %v2166 = vld [vmem:[#allocation2 + $0x18] sm:$0xff]
        %v2167 = vld [vmem:[#allocation2 + $0x20] sm:$0xff]
        %v2168 = vld [vmem:[#allocation2 + $0x28] sm:$0xff]
        %v2169 = vld [vmem:[#allocation2 + $0x30] sm:$0xff]
        %v2170 = vld [vmem:[#allocation2 + $0x38] sm:$0xff]
        %v2171 = vld [vmem:[#allocation2 + $0x40] sm:$0xff]
        %v2172 = vld [vmem:[#allocation2 + $0x48] sm:$0xff]
        %v2173 = vld [vmem:[#allocation2 + $0x50] sm:$0xff]
        %v2174 = vld [vmem:[#allocation2 + $0x58] sm:$0xff]
        %v2175 = vld [vmem:[#allocation2 + $0x60] sm:$0xff]
        %v2176 = vld [vmem:[#allocation2 + $0x68] sm:$0xff]
        %v2177 = vld [vmem:[#allocation2 + $0x70] sm:$0xff]
        %v2178 = vld [vmem:[#allocation2 + $0x78] sm:$0xff]
        %v2179 = vld [vmem:[#allocation2 + $0x80] sm:$0xff]
        %v2180 = vld [vmem:[#allocation2 + $0x88] sm:$0xff]
        %v2181 = vld [vmem:[#allocation2 + $0x90] sm:$0xff]
        %v2182 = vld [vmem:[#allocation2 + $0x98] sm:$0xff]
        %v2183 = vld [vmem:[#allocation2 + $0xa0] sm:$0xff]
        %v2184 = vld [vmem:[#allocation2 + $0xa8] sm:$0xff]
        %v2185 = vld [vmem:[#allocation2 + $0xb0] sm:$0xff]
        %v2186 = vld [vmem:[#allocation2 + $0xb8] sm:$0xff]
        %v2187 = vld [vmem:[#allocation2 + $0xc0] sm:$0xff]
        %v2188 = vld [vmem:[#allocation2 + $0xc8] sm:$0xff]
        %v2189 = vld [vmem:[#allocation2 + $0xd0] sm:$0xff]
        %v2190 = vld [vmem:[#allocation2 + $0xd8] sm:$0xff]
        %v2191 = vld [vmem:[#allocation2 + $0xe0] sm:$0xff]
        %v2192 = vld [vmem:[#allocation2 + $0xe8] sm:$0xff]
        %v2193 = vld [vmem:[#allocation2 + $0xf0] sm:$0xff]
        %v2194 = vld [vmem:[#allocation2 + $0xf8] sm:$0xff]
        %v2195 = vld [vmem:[#allocation2 + $0x100] sm:$0xff]
        %v2196 = vld [vmem:[#allocation2 + $0x108] sm:$0xff]
        %v2197 = vld [vmem:[#allocation2 + $0x110] sm:$0xff]
        %v2198 = vld [vmem:[#allocation2 + $0x118] sm:$0xff]
        %v2199 = vld [vmem:[#allocation2 + $0x120] sm:$0xff]
        %v2200 = vld [vmem:[#allocation2 + $0x128] sm:$0xff]
        %v2201 = vld [vmem:[#allocation2 + $0x130] sm:$0xff]
        %v2202 = vld [vmem:[#allocation2 + $0x138] sm:$0xff]
        %v2203 = vld [vmem:[#allocation2 + $0x140] sm:$0xff]
        %v2204 = vld [vmem:[#allocation2 + $0x148] sm:$0xff]
        %v2205 = vld [vmem:[#allocation2 + $0x150] sm:$0xff]
        %v2206 = vld [vmem:[#allocation2 + $0x158] sm:$0xff]
        %v2207 = vld [vmem:[#allocation2 + $0x160] sm:$0xff]
        %v2208 = vld [vmem:[#allocation2 + $0x168] sm:$0xff]
        %v2209 = vld [vmem:[#allocation2 + $0x170] sm:$0xff]
        %v2210 = vld [vmem:[#allocation2 + $0x178] sm:$0xff]
        %v2211 = vld [vmem:[#allocation2 + $0x180] sm:$0xff]
        %v2212 = vld [vmem:[#allocation2 + $0x188] sm:$0xff]
        %v2213 = vld [vmem:[#allocation2 + $0x190] sm:$0xff]
        %v2214 = vld [vmem:[#allocation2 + $0x198] sm:$0xff]
        %v2215 = vld [vmem:[#allocation2 + $0x1a0] sm:$0xff]
        %v2216 = vld [vmem:[#allocation2 + $0x1a8] sm:$0xff]
        %v2217 = vld [vmem:[#allocation2 + $0x1b0] sm:$0xff]
        %v2218 = vld [vmem:[#allocation2 + $0x1b8] sm:$0xff]
        %v2219 = vld [vmem:[#allocation2 + $0x1c0] sm:$0xff]
        %v2220 = vld [vmem:[#allocation2 + $0x1c8] sm:$0xff]
        %v2221 = vld [vmem:[#allocation2 + $0x1d0] sm:$0xff]
        %v2222 = vld [vmem:[#allocation2 + $0x1d8] sm:$0xff]
        %v2223 = vld [vmem:[#allocation2 + $0x1e0] sm:$0xff]
        %v2224 = vld [vmem:[#allocation2 + $0x1e8] sm:$0xff]
        %v2225 = vld [vmem:[#allocation2 + $0x1f0] sm:$0xff]
        %v2226 = vld [vmem:[#allocation2 + $0x1f8] sm:$0xff]
        %v2227 = vld [vmem:[#allocation2 + $0x200] sm:$0xff]
        %v2228 = vld [vmem:[#allocation2 + $0x208] sm:$0xff]
        %v2229 = vld [vmem:[#allocation2 + $0x210] sm:$0xff]
        %v2230 = vld [vmem:[#allocation2 + $0x218] sm:$0xff]
        %v2231 = vld [vmem:[#allocation2 + $0x220] sm:$0xff]
        %v2232 = vld [vmem:[#allocation2 + $0x228] sm:$0xff]
        %v2233 = vld [vmem:[#allocation2 + $0x230] sm:$0xff]
        %v2234 = vld [vmem:[#allocation2 + $0x238] sm:$0xff]
        %v2235 = vld [vmem:[%s2 + $0x30] sm:$0xff]
        %v2236 = vld [vmem:[%s2 + $0x38] sm:$0xff]
        %2238 = vset.pattern.permute.xlu0 0
        %2239 = vperm.xlu0 %2238, %v2235
        %v2240 = vpop.permute.xlu0 %2239
        %2243 = vset.pattern.permute.xlu0 0
        %2244 = vperm.xlu0 %2243, %v2236
        %v2245 = vpop.permute.xlu0 %2244
        %v2248 = vsel %vm831, %v1767, 0
        %v2251 = vsel %vm831, %v1769, 0
        %2253 = vmatpush.msra.mxu0 %v2223
        %2254 = vmatpush.msra.mxu0 %v2219
        %2255 = vmatpush.msra.mxu0 %v2215
        %2256 = vmatpush.msra.mxu0 %v2211
        %2257 = vmatpush.msra.mxu0 %v2207
        %2258 = vmatpush.msra.mxu0 %v2203
        %2259 = vmatpush.msra.mxu0 %v2199
        %2260 = vmatpush.msra.mxu0 %v2195
        %2261 = vmatpush.msra.mxu0 %v2191
        %2262 = vmatpush.msra.mxu0 %v2187
        %2263 = vmatpush.msra.mxu0 %v2183
        %2264 = vmatpush.msra.mxu0 %v2179
        %2265 = vmatpush.msra.mxu0 %v2175
        %2266 = vmatpush.msra.mxu0 %v2171
        %2267 = vmatpush.msra.mxu0 %v2167
        %2268 = vmatpush.msra.mxu0 %v2163
        %2269 = vmatmul.f32.gmra.mxu0 %v1766
        %v2270 = vpop.f32.mrf.mxu0
        %v2271 = vadd.f32 %v2240, %v2270
        %2272 = vmatmul.f32.gmra.mxu0 %v1768
        %v2273 = vpop.f32.mrf.mxu0
        %v2274 = vadd.f32 %v2245, %v2273
        %2275 = vdwg.mxu0
        %2276 = vmatpush.msra.mxu0 0.0
        %2277 = vmatpush.msra.mxu0 0.0
        %2278 = vmatpush.msra.mxu0 0.0
        %2279 = vmatpush.msra.mxu0 0.0
        %2280 = vmatpush.msra.mxu0 0.0
        %2281 = vmatpush.msra.mxu0 0.0
        %2282 = vmatpush.msra.mxu0 0.0
        %2283 = vmatpush.msra.mxu0 0.0
        %2284 = vmatpush.msra.mxu0 0.0
        %2285 = vmatpush.msra.mxu0 0.0
        %2286 = vmatpush.msra.mxu0 0.0
        %2287 = vmatpush.msra.mxu0 0.0
        %2288 = vmatpush.msra.mxu0 0.0
        %2289 = vmatpush.msra.mxu0 0.0
        %2290 = vmatpush.msra.mxu0 %v2231
        %2291 = vmatpush.msra.mxu0 %v2227
        %2292 = vmatmul.f32.gmra.mxu0 %v2248
        %v2293 = vpop.f32.mrf.mxu0
        %v2294 = vadd.f32 %v2271, %v2293
        %2295 = vmatmul.f32.gmra.mxu0 %v2251
        %v2296 = vpop.f32.mrf.mxu0
        %v2297 = vadd.f32 %v2274, %v2296
        %2298 = vdwg.mxu0
        %2299 = vmatpush.msra.mxu0 %v2224
        %2300 = vmatpush.msra.mxu0 %v2220
        %2301 = vmatpush.msra.mxu0 %v2216
        %2302 = vmatpush.msra.mxu0 %v2212
        %2303 = vmatpush.msra.mxu0 %v2208
        %2304 = vmatpush.msra.mxu0 %v2204
        %2305 = vmatpush.msra.mxu0 %v2200
        %2306 = vmatpush.msra.mxu0 %v2196
        %2307 = vmatpush.msra.mxu0 %v2192
        %2308 = vmatpush.msra.mxu0 %v2188
        %2309 = vmatpush.msra.mxu0 %v2184
        %2310 = vmatpush.msra.mxu0 %v2180
        %2311 = vmatpush.msra.mxu0 %v2176
        %2312 = vmatpush.msra.mxu0 %v2172
        %2313 = vmatpush.msra.mxu0 %v2168
        %2314 = vmatpush.msra.mxu0 %v2164
        %2315 = vmatmul.f32.gmra.mxu0 %v1766
        %v2316 = vpop.f32.mrf.mxu0
        %v2317 = vadd.f32 %v2240, %v2316
        %2318 = vmatmul.f32.gmra.mxu0 %v1768
        %v2319 = vpop.f32.mrf.mxu0
        %v2320 = vadd.f32 %v2245, %v2319
        %2321 = vdwg.mxu0
        %2322 = vmatpush.msra.mxu0 0.0
        %2323 = vmatpush.msra.mxu0 0.0
        %2324 = vmatpush.msra.mxu0 0.0
        %2325 = vmatpush.msra.mxu0 0.0
        %2326 = vmatpush.msra.mxu0 0.0
        %2327 = vmatpush.msra.mxu0 0.0
        %2328 = vmatpush.msra.mxu0 0.0
        %2329 = vmatpush.msra.mxu0 0.0
        %2330 = vmatpush.msra.mxu0 0.0
        %2331 = vmatpush.msra.mxu0 0.0
        %2332 = vmatpush.msra.mxu0 0.0
        %2333 = vmatpush.msra.mxu0 0.0
        %2334 = vmatpush.msra.mxu0 0.0
        %2335 = vmatpush.msra.mxu0 0.0
        %2336 = vmatpush.msra.mxu0 %v2232
        %2337 = vmatpush.msra.mxu0 %v2228
        %2338 = vmatmul.f32.gmra.mxu0 %v2248
        %v2339 = vpop.f32.mrf.mxu0
        %v2340 = vadd.f32 %v2317, %v2339
        %2341 = vmatmul.f32.gmra.mxu0 %v2251
        %v2342 = vpop.f32.mrf.mxu0
        %v2343 = vadd.f32 %v2320, %v2342
        %2344 = vdwg.mxu0
        %2345 = vmatpush.msra.mxu0 %v2225
        %2346 = vmatpush.msra.mxu0 %v2221
        %2347 = vmatpush.msra.mxu0 %v2217
        %2348 = vmatpush.msra.mxu0 %v2213
        %2349 = vmatpush.msra.mxu0 %v2209
        %2350 = vmatpush.msra.mxu0 %v2205
        %2351 = vmatpush.msra.mxu0 %v2201
        %2352 = vmatpush.msra.mxu0 %v2197
        %2353 = vmatpush.msra.mxu0 %v2193
        %2354 = vmatpush.msra.mxu0 %v2189
        %2355 = vmatpush.msra.mxu0 %v2185
        %2356 = vmatpush.msra.mxu0 %v2181
        %2357 = vmatpush.msra.mxu0 %v2177
        %2358 = vmatpush.msra.mxu0 %v2173
        %2359 = vmatpush.msra.mxu0 %v2169
        %2360 = vmatpush.msra.mxu0 %v2165
        %2361 = vmatmul.f32.gmra.mxu0 %v1766
        %v2362 = vpop.f32.mrf.mxu0
        %v2363 = vadd.f32 %v2240, %v2362
        %2364 = vmatmul.f32.gmra.mxu0 %v1768
        %v2365 = vpop.f32.mrf.mxu0
        %v2366 = vadd.f32 %v2245, %v2365
        %2367 = vdwg.mxu0
        %2368 = vmatpush.msra.mxu0 0.0
        %2369 = vmatpush.msra.mxu0 0.0
        %2370 = vmatpush.msra.mxu0 0.0
        %2371 = vmatpush.msra.mxu0 0.0
        %2372 = vmatpush.msra.mxu0 0.0
        %2373 = vmatpush.msra.mxu0 0.0
        %2374 = vmatpush.msra.mxu0 0.0
        %2375 = vmatpush.msra.mxu0 0.0
        %2376 = vmatpush.msra.mxu0 0.0
        %2377 = vmatpush.msra.mxu0 0.0
        %2378 = vmatpush.msra.mxu0 0.0
        %2379 = vmatpush.msra.mxu0 0.0
        %2380 = vmatpush.msra.mxu0 0.0
        %2381 = vmatpush.msra.mxu0 0.0
        %2382 = vmatpush.msra.mxu0 %v2233
        %2383 = vmatpush.msra.mxu0 %v2229
        %2384 = vmatmul.f32.gmra.mxu0 %v2248
        %v2385 = vpop.f32.mrf.mxu0
        %v2386 = vadd.f32 %v2363, %v2385
        %2387 = vmatmul.f32.gmra.mxu0 %v2251
        %v2388 = vpop.f32.mrf.mxu0
        %v2389 = vadd.f32 %v2366, %v2388
        %2390 = vdwg.mxu0
        %2391 = vmatpush.msra.mxu0 %v2226
        %2392 = vmatpush.msra.mxu0 %v2222
        %2393 = vmatpush.msra.mxu0 %v2218
        %2394 = vmatpush.msra.mxu0 %v2214
        %2395 = vmatpush.msra.mxu0 %v2210
        %2396 = vmatpush.msra.mxu0 %v2206
        %2397 = vmatpush.msra.mxu0 %v2202
        %2398 = vmatpush.msra.mxu0 %v2198
        %2399 = vmatpush.msra.mxu0 %v2194
        %2400 = vmatpush.msra.mxu0 %v2190
        %2401 = vmatpush.msra.mxu0 %v2186
        %2402 = vmatpush.msra.mxu0 %v2182
        %2403 = vmatpush.msra.mxu0 %v2178
        %2404 = vmatpush.msra.mxu0 %v2174
        %2405 = vmatpush.msra.mxu0 %v2170
        %2406 = vmatpush.msra.mxu0 %v2166
        %2407 = vmatmul.f32.gmra.mxu0 %v1766
        %v2408 = vpop.f32.mrf.mxu0
        %v2409 = vadd.f32 %v2240, %v2408
        %2410 = vmatmul.f32.gmra.mxu0 %v1768
        %v2411 = vpop.f32.mrf.mxu0
        %v2412 = vadd.f32 %v2245, %v2411
        %2413 = vdwg.mxu0
        %2414 = vmatpush.msra.mxu0 0.0
        %2415 = vmatpush.msra.mxu0 0.0
        %2416 = vmatpush.msra.mxu0 0.0
        %2417 = vmatpush.msra.mxu0 0.0
        %2418 = vmatpush.msra.mxu0 0.0
        %2419 = vmatpush.msra.mxu0 0.0
        %2420 = vmatpush.msra.mxu0 0.0
        %2421 = vmatpush.msra.mxu0 0.0
        %2422 = vmatpush.msra.mxu0 0.0
        %2423 = vmatpush.msra.mxu0 0.0
        %2424 = vmatpush.msra.mxu0 0.0
        %2425 = vmatpush.msra.mxu0 0.0
        %2426 = vmatpush.msra.mxu0 0.0
        %2427 = vmatpush.msra.mxu0 0.0
        %2428 = vmatpush.msra.mxu0 %v2234
        %2429 = vmatpush.msra.mxu0 %v2230
        %2430 = vmatmul.f32.gmra.mxu0 %v2248
        %v2431 = vpop.f32.mrf.mxu0
        %v2432 = vadd.f32 %v2409, %v2431
        %2433 = vmatmul.f32.gmra.mxu0 %v2251
        %v2434 = vpop.f32.mrf.mxu0
        %v2435 = vadd.f32 %v2412, %v2434
        %2436 = vdwg.mxu0
        %v2437 = vmax.f32 %v2294, 0.0
        %v2438 = vmax.f32 %v2340, 0.0
        %v2439 = vmax.f32 %v2386, 0.0
        %v2440 = vmax.f32 %v2432, 0.0
        %2441 = vrot.lane.b32.xlu0 %v2437, 17
        %v2442 = vpop.permute.xlu0 %2441
        %2443 = vrot.lane.b32.xlu0 %v2438, 17
        %v2444 = vpop.permute.xlu0 %2443
        %2445 = vrot.lane.b32.xlu0 %v2439, 17
        %v2446 = vpop.permute.xlu0 %2445
        %2447 = vrot.lane.b32.xlu0 %v2440, 17
        %v2448 = vpop.permute.xlu0 %2447
        %v2449 = vsel %vm351, %v2446, %v2448
        %v2450 = vsel %vm351, %v2444, %v2446
        %v2451 = vsel %vm351, %v2442, %v2444
        %v2452 = vsel %vm351, %v2448, %v2442
        %v2453 = vld [vmem:[%s1] sm:$0xff]
        %v2454 = vld [vmem:[%s1 + $0x8] sm:$0xff]
        %v2455 = vld [vmem:[%s1 + $0x10] sm:$0xff]
        %v2456 = vld [vmem:[%s1 + $0x18] sm:$0xff]
        %v2457 = vmul.f32 %v2452, %v2453
        %v2458 = vmul.f32 %v2451, %v2454
        %v2459 = vmul.f32 %v2450, %v2455
        %v2460 = vmul.f32 %v2449, %v2456
        %2461 = vst [vmem:[#allocation2] sm:$0xff] %v2457
        %2462 = vst [vmem:[#allocation2 + $0x8] sm:$0xff] %v2458
        %2463 = vst [vmem:[#allocation2 + $0x10] sm:$0xff] %v2459
        %2464 = vst [vmem:[#allocation2 + $0x18] sm:$0xff] %v2460
        %2465 = vrot.lane.b32.xlu0 %v2437, 16
        %v2466 = vpop.permute.xlu0 %2465
        %2467 = vrot.lane.b32.xlu0 %v2438, 16
        %v2468 = vpop.permute.xlu0 %2467
        %2469 = vrot.lane.b32.xlu0 %v2439, 16
        %v2470 = vpop.permute.xlu0 %2469
        %2471 = vrot.lane.b32.xlu0 %v2440, 16
        %v2472 = vpop.permute.xlu0 %2471
        %v2473 = vsel %vm400, %v2470, %v2472
        %v2474 = vsel %vm400, %v2468, %v2470
        %v2475 = vsel %vm400, %v2466, %v2468
        %v2476 = vsel %vm400, %v2472, %v2466
        %v2477 = vld [vmem:[%s1 + $0x40] sm:$0xff]
        %v2478 = vld [vmem:[%s1 + $0x48] sm:$0xff]
        %v2479 = vld [vmem:[%s1 + $0x50] sm:$0xff]
        %v2480 = vld [vmem:[%s1 + $0x58] sm:$0xff]
        %v2481 = vmul.f32 %v2476, %v2477
        %v2482 = vmul.f32 %v2475, %v2478
        %v2483 = vmul.f32 %v2474, %v2479
        %v2484 = vmul.f32 %v2473, %v2480
        %2485 = vst [vmem:[#allocation2 + $0x20] sm:$0xff] %v2481
        %2486 = vst [vmem:[#allocation2 + $0x28] sm:$0xff] %v2482
        %2487 = vst [vmem:[#allocation2 + $0x30] sm:$0xff] %v2483
        %2488 = vst [vmem:[#allocation2 + $0x38] sm:$0xff] %v2484
        %2489 = vrot.lane.b32.xlu0 %v2437, 15
        %v2490 = vpop.permute.xlu0 %2489
        %2491 = vrot.lane.b32.xlu0 %v2438, 15
        %v2492 = vpop.permute.xlu0 %2491
        %2493 = vrot.lane.b32.xlu0 %v2439, 15
        %v2494 = vpop.permute.xlu0 %2493
        %2495 = vrot.lane.b32.xlu0 %v2440, 15
        %v2496 = vpop.permute.xlu0 %2495
        %v2497 = vsel %vm449, %v2494, %v2496
        %v2498 = vsel %vm449, %v2492, %v2494
        %v2499 = vsel %vm449, %v2490, %v2492
        %v2500 = vsel %vm449, %v2496, %v2490
        %v2501 = vld [vmem:[%s1 + $0x80] sm:$0xff]
        %v2502 = vld [vmem:[%s1 + $0x88] sm:$0xff]
        %v2503 = vld [vmem:[%s1 + $0x90] sm:$0xff]
        %v2504 = vld [vmem:[%s1 + $0x98] sm:$0xff]
        %v2505 = vmul.f32 %v2500, %v2501
        %v2506 = vmul.f32 %v2499, %v2502
        %v2507 = vmul.f32 %v2498, %v2503
        %v2508 = vmul.f32 %v2497, %v2504
        %2509 = vst [vmem:[#allocation2 + $0x40] sm:$0xff] %v2505
        %2510 = vst [vmem:[#allocation2 + $0x48] sm:$0xff] %v2506
        %2511 = vst [vmem:[#allocation2 + $0x50] sm:$0xff] %v2507
        %2512 = vst [vmem:[#allocation2 + $0x58] sm:$0xff] %v2508
        %2513 = vrot.lane.b32.xlu0 %v2437, 1
        %v2514 = vpop.permute.xlu0 %2513
        %2515 = vrot.lane.b32.xlu0 %v2438, 1
        %v2516 = vpop.permute.xlu0 %2515
        %2517 = vrot.lane.b32.xlu0 %v2439, 1
        %v2518 = vpop.permute.xlu0 %2517
        %2519 = vrot.lane.b32.xlu0 %v2440, 1
        %v2520 = vpop.permute.xlu0 %2519
        %v2521 = vsel %vm498, %v2518, %v2520
        %v2522 = vsel %vm498, %v2516, %v2518
        %v2523 = vsel %vm498, %v2514, %v2516
        %v2524 = vsel %vm498, %v2520, %v2514
        %v2525 = vld [vmem:[%s1 + $0xc0] sm:$0xff]
        %v2526 = vld [vmem:[%s1 + $0xc8] sm:$0xff]
        %v2527 = vld [vmem:[%s1 + $0xd0] sm:$0xff]
        %v2528 = vld [vmem:[%s1 + $0xd8] sm:$0xff]
        %v2529 = vmul.f32 %v2524, %v2525
        %v2530 = vmul.f32 %v2523, %v2526
        %v2531 = vmul.f32 %v2522, %v2527
        %v2532 = vmul.f32 %v2521, %v2528
        %2533 = vst [vmem:[#allocation2 + $0x60] sm:$0xff] %v2529
        %2534 = vst [vmem:[#allocation2 + $0x68] sm:$0xff] %v2530
        %2535 = vst [vmem:[#allocation2 + $0x70] sm:$0xff] %v2531
        %2536 = vst [vmem:[#allocation2 + $0x78] sm:$0xff] %v2532
        %2537 = vst [vmem:[#allocation2 + $0x80] sm:$0xff] %v2437
        %2538 = vst [vmem:[#allocation2 + $0x88] sm:$0xff] %v2438
        %2539 = vst [vmem:[#allocation2 + $0x90] sm:$0xff] %v2439
        %2540 = vst [vmem:[#allocation2 + $0x98] sm:$0xff] %v2440
        %2541 = vrot.lane.b32.xlu0 %v2437, 127
        %v2542 = vpop.permute.xlu0 %2541
        %2543 = vrot.lane.b32.xlu0 %v2438, 127
        %v2544 = vpop.permute.xlu0 %2543
        %2545 = vrot.lane.b32.xlu0 %v2439, 127
        %v2546 = vpop.permute.xlu0 %2545
        %2547 = vrot.lane.b32.xlu0 %v2440, 127
        %v2548 = vpop.permute.xlu0 %2547
        %v2549 = vsel %vm555, %v2546, %v2548
        %v2550 = vsel %vm555, %v2544, %v2546
        %v2551 = vsel %vm555, %v2542, %v2544
        %v2552 = vsel %vm555, %v2548, %v2542
        %v2553 = vld [vmem:[%s1 + $0x140] sm:$0xff]
        %v2554 = vld [vmem:[%s1 + $0x148] sm:$0xff]
        %v2555 = vld [vmem:[%s1 + $0x150] sm:$0xff]
        %v2556 = vld [vmem:[%s1 + $0x158] sm:$0xff]
        %v2557 = vmul.f32 %v2551, %v2553
        %v2558 = vmul.f32 %v2550, %v2554
        %v2559 = vmul.f32 %v2549, %v2555
        %v2560 = vmul.f32 %v2552, %v2556
        %2561 = vst [vmem:[#allocation2 + $0xa0] sm:$0xff] %v2557
        %2562 = vst [vmem:[#allocation2 + $0xa8] sm:$0xff] %v2558
        %2563 = vst [vmem:[#allocation2 + $0xb0] sm:$0xff] %v2559
        %2564 = vst [vmem:[#allocation2 + $0xb8] sm:$0xff] %v2560
        %2565 = vrot.lane.b32.xlu0 %v2437, 113
        %v2566 = vpop.permute.xlu0 %2565
        %2567 = vrot.lane.b32.xlu0 %v2438, 113
        %v2568 = vpop.permute.xlu0 %2567
        %2569 = vrot.lane.b32.xlu0 %v2439, 113
        %v2570 = vpop.permute.xlu0 %2569
        %2571 = vrot.lane.b32.xlu0 %v2440, 113
        %v2572 = vpop.permute.xlu0 %2571
        %v2573 = vsel %vm604, %v2570, %v2572
        %v2574 = vsel %vm604, %v2568, %v2570
        %v2575 = vsel %vm604, %v2566, %v2568
        %v2576 = vsel %vm604, %v2572, %v2566
        %v2577 = vld [vmem:[%s1 + $0x180] sm:$0xff]
        %v2578 = vld [vmem:[%s1 + $0x188] sm:$0xff]
        %v2579 = vld [vmem:[%s1 + $0x190] sm:$0xff]
        %v2580 = vld [vmem:[%s1 + $0x198] sm:$0xff]
        %v2581 = vmul.f32 %v2575, %v2577
        %v2582 = vmul.f32 %v2574, %v2578
        %v2583 = vmul.f32 %v2573, %v2579
        %v2584 = vmul.f32 %v2576, %v2580
        %2585 = vst [vmem:[#allocation2 + $0xc0] sm:$0xff] %v2581
        %2586 = vst [vmem:[#allocation2 + $0xc8] sm:$0xff] %v2582
        %2587 = vst [vmem:[#allocation2 + $0xd0] sm:$0xff] %v2583
        %2588 = vst [vmem:[#allocation2 + $0xd8] sm:$0xff] %v2584
        %2589 = vrot.lane.b32.xlu0 %v2437, 112
        %v2590 = vpop.permute.xlu0 %2589
        %2591 = vrot.lane.b32.xlu0 %v2438, 112
        %v2592 = vpop.permute.xlu0 %2591
        %2593 = vrot.lane.b32.xlu0 %v2439, 112
        %v2594 = vpop.permute.xlu0 %2593
        %2595 = vrot.lane.b32.xlu0 %v2440, 112
        %v2596 = vpop.permute.xlu0 %2595
        %v2597 = vsel %vm653, %v2594, %v2596
        %v2598 = vsel %vm653, %v2592, %v2594
        %v2599 = vsel %vm653, %v2590, %v2592
        %v2600 = vsel %vm653, %v2596, %v2590
        %v2601 = vld [vmem:[%s1 + $0x1c0] sm:$0xff]
        %v2602 = vld [vmem:[%s1 + $0x1c8] sm:$0xff]
        %v2603 = vld [vmem:[%s1 + $0x1d0] sm:$0xff]
        %v2604 = vld [vmem:[%s1 + $0x1d8] sm:$0xff]
        %v2605 = vmul.f32 %v2599, %v2601
        %v2606 = vmul.f32 %v2598, %v2602
        %v2607 = vmul.f32 %v2597, %v2603
        %v2608 = vmul.f32 %v2600, %v2604
        %2609 = vst [vmem:[#allocation2 + $0xe0] sm:$0xff] %v2605
        %2610 = vst [vmem:[#allocation2 + $0xe8] sm:$0xff] %v2606
        %2611 = vst [vmem:[#allocation2 + $0xf0] sm:$0xff] %v2607
        %2612 = vst [vmem:[#allocation2 + $0xf8] sm:$0xff] %v2608
        %2613 = vrot.lane.b32.xlu0 %v2437, 111
        %v2614 = vpop.permute.xlu0 %2613
        %2615 = vrot.lane.b32.xlu0 %v2438, 111
        %v2616 = vpop.permute.xlu0 %2615
        %2617 = vrot.lane.b32.xlu0 %v2439, 111
        %v2618 = vpop.permute.xlu0 %2617
        %2619 = vrot.lane.b32.xlu0 %v2440, 111
        %v2620 = vpop.permute.xlu0 %2619
        %v2621 = vsel %vm702, %v2618, %v2620
        %v2622 = vsel %vm702, %v2616, %v2618
        %v2623 = vsel %vm702, %v2614, %v2616
        %v2624 = vsel %vm702, %v2620, %v2614
        %v2625 = vld [vmem:[%s1 + $0x200] sm:$0xff]
        %v2626 = vld [vmem:[%s1 + $0x208] sm:$0xff]
        %v2627 = vld [vmem:[%s1 + $0x210] sm:$0xff]
        %v2628 = vld [vmem:[%s1 + $0x218] sm:$0xff]
        %v2629 = vmul.f32 %v2623, %v2625
        %v2630 = vmul.f32 %v2622, %v2626
        %v2631 = vmul.f32 %v2621, %v2627
        %v2632 = vmul.f32 %v2624, %v2628
        %2633 = vst [vmem:[#allocation2 + $0x100] sm:$0xff] %v2629
        %2634 = vst [vmem:[#allocation2 + $0x108] sm:$0xff] %v2630
        %2635 = vst [vmem:[#allocation2 + $0x110] sm:$0xff] %v2631
        %2636 = vst [vmem:[#allocation2 + $0x118] sm:$0xff] %v2632
        %v2637 = vld [vmem:[#allocation2] sm:$0xff]
        %v2638 = vld [vmem:[#allocation2 + $0x8] sm:$0xff]
        %v2639 = vld [vmem:[#allocation2 + $0x10] sm:$0xff]
        %v2640 = vld [vmem:[#allocation2 + $0x18] sm:$0xff]
        %v2641 = vld [vmem:[#allocation2 + $0x20] sm:$0xff]
        %v2642 = vld [vmem:[#allocation2 + $0x28] sm:$0xff]
        %v2643 = vld [vmem:[#allocation2 + $0x30] sm:$0xff]
        %v2644 = vld [vmem:[#allocation2 + $0x38] sm:$0xff]
        %v2645 = vld [vmem:[#allocation2 + $0x40] sm:$0xff]
        %v2646 = vld [vmem:[#allocation2 + $0x48] sm:$0xff]
        %v2647 = vld [vmem:[#allocation2 + $0x50] sm:$0xff]
        %v2648 = vld [vmem:[#allocation2 + $0x58] sm:$0xff]
        %v2649 = vld [vmem:[#allocation2 + $0x60] sm:$0xff]
        %v2650 = vld [vmem:[#allocation2 + $0x68] sm:$0xff]
        %v2651 = vld [vmem:[#allocation2 + $0x70] sm:$0xff]
        %v2652 = vld [vmem:[#allocation2 + $0x78] sm:$0xff]
        %v2653 = vld [vmem:[#allocation2 + $0x80] sm:$0xff]
        %v2654 = vld [vmem:[#allocation2 + $0x88] sm:$0xff]
        %v2655 = vld [vmem:[#allocation2 + $0x90] sm:$0xff]
        %v2656 = vld [vmem:[#allocation2 + $0x98] sm:$0xff]
        %v2657 = vld [vmem:[#allocation2 + $0xa0] sm:$0xff]
        %v2658 = vld [vmem:[#allocation2 + $0xa8] sm:$0xff]
        %v2659 = vld [vmem:[#allocation2 + $0xb0] sm:$0xff]
        %v2660 = vld [vmem:[#allocation2 + $0xb8] sm:$0xff]
        %v2661 = vld [vmem:[#allocation2 + $0xc0] sm:$0xff]
        %v2662 = vld [vmem:[#allocation2 + $0xc8] sm:$0xff]
        %v2663 = vld [vmem:[#allocation2 + $0xd0] sm:$0xff]
        %v2664 = vld [vmem:[#allocation2 + $0xd8] sm:$0xff]
        %v2665 = vld [vmem:[#allocation2 + $0xe0] sm:$0xff]
        %v2666 = vld [vmem:[#allocation2 + $0xe8] sm:$0xff]
        %v2667 = vld [vmem:[#allocation2 + $0xf0] sm:$0xff]
        %v2668 = vld [vmem:[#allocation2 + $0xf8] sm:$0xff]
        %v2669 = vld [vmem:[#allocation2 + $0x100] sm:$0xff]
        %v2670 = vld [vmem:[#allocation2 + $0x108] sm:$0xff]
        %v2671 = vld [vmem:[#allocation2 + $0x110] sm:$0xff]
        %v2672 = vld [vmem:[#allocation2 + $0x118] sm:$0xff]
        %v2673 = vld [vmem:[%s2 + $0x40] sm:$0xff]
        %2675 = vset.pattern.permute.xlu0 0
        %2676 = vperm.xlu0 %2675, %v2673
        %v2677 = vpop.permute.xlu0 %2676
        %vm2679 = vcmask 588800
        %v2681 = vsel %vm2679, %v1770, 0
        %2683 = vmatpush.msra.mxu0 0.0
        %2684 = vmatpush.msra.mxu0 0.0
        %2685 = vmatpush.msra.mxu0 0.0
        %2686 = vmatpush.msra.mxu0 0.0
        %2687 = vmatpush.msra.mxu0 0.0
        %2688 = vmatpush.msra.mxu0 0.0
        %2689 = vmatpush.msra.mxu0 0.0
        %2690 = vmatpush.msra.mxu0 %v2669
        %2691 = vmatpush.msra.mxu0 %v2665
        %2692 = vmatpush.msra.mxu0 %v2661
        %2693 = vmatpush.msra.mxu0 %v2657
        %2694 = vmatpush.msra.mxu0 %v2653
        %2695 = vmatpush.msra.mxu0 %v2649
        %2696 = vmatpush.msra.mxu0 %v2645
        %2697 = vmatpush.msra.mxu0 %v2641
        %2698 = vmatpush.msra.mxu0 %v2637
        %2699 = vmatmul.f32.gmra.mxu0 %v2681
        %v2700 = vpop.f32.mrf.mxu0
        %v2701 = vadd.f32 %v2677, %v2700
        %2702 = vdwg.mxu0
        %2703 = vmatpush.msra.mxu0 0.0
        %2704 = vmatpush.msra.mxu0 0.0
        %2705 = vmatpush.msra.mxu0 0.0
        %2706 = vmatpush.msra.mxu0 0.0
        %2707 = vmatpush.msra.mxu0 0.0
        %2708 = vmatpush.msra.mxu0 0.0
        %2709 = vmatpush.msra.mxu0 0.0
        %2710 = vmatpush.msra.mxu0 %v2670
        %2711 = vmatpush.msra.mxu0 %v2666
        %2712 = vmatpush.msra.mxu0 %v2662
        %2713 = vmatpush.msra.mxu0 %v2658
        %2714 = vmatpush.msra.mxu0 %v2654
        %2715 = vmatpush.msra.mxu0 %v2650
        %2716 = vmatpush.msra.mxu0 %v2646
        %2717 = vmatpush.msra.mxu0 %v2642
        %2718 = vmatpush.msra.mxu0 %v2638
        %2719 = vmatmul.f32.gmra.mxu0 %v2681
        %v2720 = vpop.f32.mrf.mxu0
        %v2721 = vadd.f32 %v2677, %v2720
        %2722 = vdwg.mxu0
        %2723 = vmatpush.msra.mxu0 0.0
        %2724 = vmatpush.msra.mxu0 0.0
        %2725 = vmatpush.msra.mxu0 0.0
        %2726 = vmatpush.msra.mxu0 0.0
        %2727 = vmatpush.msra.mxu0 0.0
        %2728 = vmatpush.msra.mxu0 0.0
        %2729 = vmatpush.msra.mxu0 0.0
        %2730 = vmatpush.msra.mxu0 %v2671
        %2731 = vmatpush.msra.mxu0 %v2667
        %2732 = vmatpush.msra.mxu0 %v2663
        %2733 = vmatpush.msra.mxu0 %v2659
        %2734 = vmatpush.msra.mxu0 %v2655
        %2735 = vmatpush.msra.mxu0 %v2651
        %2736 = vmatpush.msra.mxu0 %v2647
        %2737 = vmatpush.msra.mxu0 %v2643
        %2738 = vmatpush.msra.mxu0 %v2639
        %2739 = vmatmul.f32.gmra.mxu0 %v2681
        %v2740 = vpop.f32.mrf.mxu0
        %v2741 = vadd.f32 %v2677, %v2740
        %2742 = vdwg.mxu0
        %2743 = vmatpush.msra.mxu0 0.0
        %2744 = vmatpush.msra.mxu0 0.0
        %2745 = vmatpush.msra.mxu0 0.0
        %2746 = vmatpush.msra.mxu0 0.0
        %2747 = vmatpush.msra.mxu0 0.0
        %2748 = vmatpush.msra.mxu0 0.0
        %2749 = vmatpush.msra.mxu0 0.0
        %2750 = vmatpush.msra.mxu0 %v2672
        %2751 = vmatpush.msra.mxu0 %v2668
        %2752 = vmatpush.msra.mxu0 %v2664
        %2753 = vmatpush.msra.mxu0 %v2660
        %2754 = vmatpush.msra.mxu0 %v2656
        %2755 = vmatpush.msra.mxu0 %v2652
        %2756 = vmatpush.msra.mxu0 %v2648
        %2757 = vmatpush.msra.mxu0 %v2644
        %2758 = vmatpush.msra.mxu0 %v2640
        %2759 = vmatmul.f32.gmra.mxu0 %v2681
        %v2760 = vpop.f32.mrf.mxu0
        %v2761 = vadd.f32 %v2677, %v2760
        %2762 = vdwg.mxu0
        %v2763 = vadd.f32 %v2701, %v2297
        %v2764 = vadd.f32 %v2721, %v2343
        %v2765 = vadd.f32 %v2741, %v2389
        %v2766 = vadd.f32 %v2761, %v2435
        %v2767 = vmax.f32 %v2763, 0.0
        %v2768 = vmax.f32 %v2764, 0.0
        %v2769 = vmax.f32 %v2765, 0.0
        %v2770 = vmax.f32 %v2766, 0.0
        %v2771 = vld [vmem:[%s2 + $0x48] sm:$0xff]
        %v2772 = vld [vmem:[%s2 + $0x50] sm:$0x1]
        %2774 = vset.pattern.permute.xlu0 0
        %2775 = vperm.xlu0 %2774, %v2771
        %v2776 = vpop.permute.xlu0 %2775
        %v2778 = vmul.f32 %v2767, %v2776
        %v2779 = vmul.f32 %v2768, %v2776
        %v2780 = vmul.f32 %v2769, %v2776
        %v2781 = vmul.f32 %v2770, %v2776
        %v2782 = vrot.slane %v2778, 4
        %v2783 = vadd.f32 %v2778, %v2782
        %v2784 = vrot.slane %v2783, 2
        %v2785 = vadd.f32 %v2783, %v2784
        %v2786 = vrot.slane %v2785, 1
        %v2787 = vadd.f32 %v2785, %v2786
        %v2788 = vrot.slane %v2779, 4
        %v2789 = vadd.f32 %v2779, %v2788
        %v2790 = vrot.slane %v2789, 2
        %v2791 = vadd.f32 %v2789, %v2790
        %v2792 = vrot.slane %v2791, 1
        %v2793 = vadd.f32 %v2791, %v2792
        %v2794 = vrot.slane %v2780, 4
        %v2795 = vadd.f32 %v2780, %v2794
        %v2796 = vrot.slane %v2795, 2
        %v2797 = vadd.f32 %v2795, %v2796
        %v2798 = vrot.slane %v2797, 1
        %v2799 = vadd.f32 %v2797, %v2798
        %v2800 = vrot.slane %v2781, 4
        %v2801 = vadd.f32 %v2781, %v2800
        %v2802 = vrot.slane %v2801, 2
        %v2803 = vadd.f32 %v2801, %v2802
        %v2804 = vrot.slane %v2803, 1
        %v2805 = vadd.f32 %v2803, %v2804
        %2807 = vset.pattern.permute.xlu0 0
        %2808 = vperm.xlu0 %2807, %v2772
        %v2809 = vpop.permute.xlu0 %2808
        %v2811 = vadd.f32 %v2787, %v2809
        %v2812 = vadd.f32 %v2793, %v2809
        %v2813 = vadd.f32 %v2799, %v2809
        %v2814 = vadd.f32 %v2805, %v2809
        %v2819 = vrot.slane %v2812, 7
        %v2820 = vrot.slane %v2813, 6
        %v2821 = vrot.slane %v2814, 5
        %vm2822 = vcmask 1040384
        %v2823 = vsel %vm2822, %v2811, %v2819
        %vm2824 = vcmask 1042434
        %v2825 = vsel %vm2824, %v2820, %v2821
        %vm2826 = vcmask 1041408
        %v2827 = vsel %vm2826, %v2823, %v2825
        %v2829 = vlaneseq
        %vm2830 = vcmp.ge.s32.totalorder %v2829, 0
        %vm2831 = vcmp.lt.s32.totalorder %v2829, 512
        %vm2832 = vmand %vm2830, %vm2831
        %2833 = vst.msk [vmem:[%s311] sm:$0xf] %vm2832, %v2827
        %s2834 = smul.u32 4, %s18
        %p2835 = scmp.lt.s32.totalorder %s2834, 7
        %s2836 = scalar_select %p2835, %s2834, 7
        %s2837 = scalar_lea.vmem %s7, %s2836
        // Predicated region
        $region72: #{model_forward.1} parent=66 // pred_check
          %p2838 = pneg %p188
        $region73: #{model_forward.1} parent=66 // pred_check_branch
          %2840 = sbr.rel (%p2838) target = $region75
        $region74: #{model_forward.1} parent=66 // pred_region
          %s2841 = smul.u32 4, %s18
        $region75: #{model_forward.1} parent=66 // pred_fallthru
          _
      $region67: #{model_forward.1} parent=5 // pred_fallthru
        _
      %p2842 = scmp.le.s32.totalorder 2, %s13
      // Predicated region
      $region76: #{model_forward.1} parent=5 // pred_check
        %p2843 = pneg %p2842
      $region77: #{model_forward.1} parent=5 // pred_check_branch
        %2845 = sbr.rel (%p2843) target = $region79
      $region78: #{model_forward.1} parent=5 // pred_region
        %s2846 = ssub.s32 %s13, 2
        // Predicated region
        $region80: #{model_forward.1} parent=78 // pred_check
          %p2847 = pneg %p194
        $region81: #{model_forward.1} parent=78 // pred_check_branch
          %2849 = sbr.rel (%p2847) target = $region83
        $region82: #{model_forward.1} parent=78 // pred_region
          %s2850 = smul.u32 4, %s19
          %p2851 = scmp.lt.s32.totalorder %s2850, 7
          %s2852 = scalar_select %p2851, %s2850, 7
          %s2853 = scalar_lea.vmem %s7, %s2852
        $region83: #{model_forward.1} parent=78 // pred_fallthru
          _
      $region79: #{model_forward.1} parent=5 // pred_fallthru
        _
    $region6: #{model_forward.1} parent=1 // loop_footer
      %s17 = sadd.s32 1, %s13
    $region7: #{model_forward.1} parent=1 // loop_footer_branch
      %12 = sbr.rel target = $region3
    $region8: #{model_forward.1} parent=1 // loop_exit
      _

</llo_original>
